<compile_context>
chip_gen: v6e
topology: v6e:2x2x1
jax: 0.10.0
libtpu: 0.0.40
codegen_flags: <defaults>
</compile_context>

<pallas_src>
import functools

import jax
import jax.numpy as jnp
from jax.experimental import pallas as pl
from jax.experimental.pallas import tpu as pltpu


def _round_up(x, m):
    return ((x + m - 1) // m) * m


def _interior_offset(W):
    # Lane offset of the padded-image interior inside the scratch: a multiple of 128 that
    # is >= Wpad+1, so every 3x3 tap read (lane offset in [-Wpad-1, +Wpad+1] relative to
    # the interior) stays in bounds while interior stores stay 128-lane aligned.
    return _round_up(W + 2 + 1, 128)


# ----------------------------- fused RDB kernel ------------------------------

def _rdb_fused_kernel(x_ref, *args, C, H, W, G0, G):
    """Whole RDB for one batch element (one grid step).

    Scratch layout (channel-major, flattened zero-padded spatial on lanes):
        act_ref[ch, OFF + i*Wpad + j] = activation of padded pixel (i+1, j+1)
    so each conv3x3 tap is one contiguous lane-shifted slice (XLU shift, co-issues with
    MXU pushes) and every matmul has the large spatial dim on the MXU output lanes.
    """
    Wpad = W + 2
    L = H * Wpad                      # one interior slab: H rows of Wpad lanes
    OFF = _interior_offset(W)         # 128-aligned interior start lane

    conv_w = [args[2 * c] for c in range(C)]       # (9, G, cin_c): tap-major, transposed
    conv_b = [args[2 * c + 1] for c in range(C)]   # (G, 1) f32
    lff_w_ref = args[2 * C]                        # (G0, Ctot)
    lff_b_ref = args[2 * C + 1]                    # (G0, 1) f32
    mask_ref = args[2 * C + 2]                     # (1, L) f32: 0 on the 2 pad cols/row
    out_ref = args[2 * C + 3]                      # (1, G0, L)
    ssq_ref = args[2 * C + 4]                      # (1, 1, 128)
    act_ref = args[2 * C + 5]                      # (Ctot, S_alloc) scratch, matmul dtype
    cdt = act_ref.dtype
    Ctot = act_ref.shape[0]

    mask = mask_ref[...]                                               # (1, L)

    # Zero ONLY the halo lanes the interior stores never touch (top halo row + first
    # left-halo pixel, and the bottom halo row): 2*(Wpad+1) lanes instead of a whole
    # scratch memset.  Done every grid step -> no reliance on program_id==0 init or on
    # scratch persistence (safe under dimension_semantics=("parallel",) / megacore).
    halo0 = jnp.zeros((Ctot, Wpad + 1), cdt)
    act_ref[:, OFF - Wpad - 1:OFF] = halo0
    act_ref[:, OFF + L:OFF + L + Wpad + 1] = halo0

    # Place x (pre-padded to Wpad columns by the wrapper, pad columns already zero so the
    # halo invariant holds) into channels [0:G0]: one aligned full-width store.
    x_f32 = x_ref[0].astype(jnp.float32)                               # (G0, L)
    act_ref[pl.ds(0, G0), pl.ds(OFF, L)] = x_f32.astype(cdt)

    # Dense growth: C stages of conv3x3 + ReLU.  Each conv = 9 tap-wise MXU matmuls
    # accumulated in f32 (no im2col concat, no big temporaries); the new G channels are
    # stored in place at a (multiple-of-8 channel, 128-aligned lane) offset.
    cin = G0
    for c in range(C):
        acc = jnp.zeros((G, L), jnp.float32)
        for t in range(9):
            dy, dx = divmod(t, 3)
            tap = act_ref[pl.ds(0, cin),
                          pl.ds(OFF - Wpad - 1 + dy * Wpad + dx, L)]   # (cin, L)
            acc = acc + jnp.dot(conv_w[c][t], tap,
                                preferred_element_type=jnp.float32)
        y = jnp.maximum(acc + conv_b[c][...], 0.0) * mask              # bias+ReLU, pad->0
        act_ref[pl.ds(cin, G), pl.ds(OFF, L)] = y.astype(cdt)
        cin += G

    # LFF 1x1 conv over all G0 + C*G channels, then residual add (all elementwise in f32;
    # residual uses the original f32 x, not its scratch-dtype copy).
    dense = act_ref[pl.ds(0, cin), pl.ds(OFF, L)]                      # (Ctot, L)
    out = jnp.dot(lff_w_ref[...], dense, preferred_element_type=jnp.float32)
    out = (out + lff_b_ref[...] + x_f32) * mask                        # (G0, L)

    out_ref[0] = out.astype(out_ref.dtype)
    # Per-batch sum of squares (pad columns are exactly zero) for the GLOBAL feat norm,
    # replicated across 128 lanes.
    ssq_ref[...] = jnp.sum(out * out) * jnp.ones((1, 1, 128), jnp.float32)


# ------------------------------ pallas_call glue ------------------------------

@functools.partial(jax.jit, static_argnames=("matmul_dtype",))
def _rdb_core(params, x_nchw, matmul_dtype):
    N, G0, H, W = x_nchw.shape
    C = len(params["convs"])
    G = params["convs"][0][0].shape[-1]
    Ctot = G0 + C * G
    Wpad = W + 2
    L = H * Wpad
    OFF = _interior_offset(W)
    S_alloc = _round_up(OFF + L + Wpad + 1, 128)

    # x in channel-major, flattened right-zero-padded spatial: lane k = i*Wpad + j, with
    # zeros at j in {W, W+1} (these two columns double as the conv halo in the kernel).
    x_pad = jnp.pad(x_nchw, ((0, 0), (0, 0), (0, 0), (0, 2))).reshape(N, G0, L)
    x_pad = x_pad.astype(jnp.float32)

    # Interior-column mask (0 on the two pad columns of each row), built once in XLA.
    mask = jnp.tile(jnp.arange(Wpad) < W, H).astype(jnp.float32).reshape(1, L)

    # Pre-pack weights once: conv taps transposed to (9, G, cin); LFF transposed.
    conv_args = []
    for (w, b) in params["convs"]:
        kh, kw, cin, g = w.shape
        conv_args.append(
            jnp.transpose(w, (0, 1, 3, 2)).reshape(kh * kw, g, cin).astype(matmul_dtype))
        conv_args.append(b.reshape(g, 1).astype(jnp.float32))
    lff_w = params["lff_w"].T.astype(matmul_dtype)                     # (G0, Ctot)
    lff_b = params["lff_b"].reshape(G0, 1).astype(jnp.float32)

    kernel = functools.partial(_rdb_fused_kernel, C=C, H=H, W=W, G0=G0, G=G)

    in_specs = [pl.BlockSpec((1, G0, L), lambda n: (n, 0, 0))]
    for c in range(C):
        cin = G0 + c * G
        in_specs.append(pl.BlockSpec((9, G, cin), lambda n: (0, 0, 0)))
        in_specs.append(pl.BlockSpec((G, 1), lambda n: (0, 0)))
    in_specs.append(pl.BlockSpec((G0, Ctot), lambda n: (0, 0)))
    in_specs.append(pl.BlockSpec((G0, 1), lambda n: (0, 0)))
    in_specs.append(pl.BlockSpec((1, L), lambda n: (0, 0)))

    out_pad, ssq = pl.pallas_call(
        kernel,
        out_shape=(jax.ShapeDtypeStruct((N, G0, L), x_nchw.dtype),
                   jax.ShapeDtypeStruct((N, 1, 128), jnp.float32)),
        grid=(N,),
        in_specs=in_specs,
        out_specs=(pl.BlockSpec((1, G0, L), lambda n: (n, 0, 0)),
                   pl.BlockSpec((1, 1, 128), lambda n: (n, 0, 0))),
        scratch_shapes=[pltpu.VMEM((Ctot, S_alloc), matmul_dtype)],
        compiler_params=pltpu.CompilerParams(
            dimension_semantics=("parallel",),        # v7x/v5p: 2 TCs split the batch
            vmem_limit_bytes=48 * 1024 * 1024),       # explicit budget (v7x: 64 MiB phys)
    )(x_pad, *conv_args, lff_w, lff_b, mask)

    # Drop the two per-row pad columns -> (N, G0, H, W).
    out = out_pad.reshape(N, G0, H, Wpad)[..., :W]

    # feat_ = out / ||out||_F / (G0*H*W).  The Frobenius norm is GLOBAL (all batches), so
    # the cheap HBM-bound scale stays in plain XLA instead of a second pallas_call.
    total_ssq = jnp.sum(ssq[:, 0, 0])
    scale = (1.0 / jnp.sqrt(total_ssq)) / jnp.float32(G0 * H * W)
    feat_ = (out.astype(jnp.float32) * scale).astype(x_nchw.dtype)
    return out, feat_


# --------------------------------- RDB forward --------------------------------

def rdb_forward(params, x_nchw, feat, bit, *, matmul_dtype=jnp.bfloat16):
    """Equivalent of RDB.forward([x, feat, bit]) with args.imgwise=False.

    Default matmul_dtype=bfloat16 (native MXU on v5e/v6e/v7x, f32 accumulation and f32
    elementwise).  Pass matmul_dtype=jnp.float32 for the near-exact path.
    """
    out, feat_ = _rdb_core(params, x_nchw, matmul_dtype=matmul_dtype)
    feat = feat_ if feat is None else jnp.concatenate([feat, feat_], axis=0)
    return out, feat, bit


# --------------------------- reference (pure JAX) -----------------------------

def rdb_reference(params, x_nchw, feat, bit):
    out = x_nchw
    for (w, b) in params["convs"]:
        y = jax.lax.conv_general_dilated(
            out, w, window_strides=(1, 1), padding="SAME",
            dimension_numbers=("NCHW", "HWIO", "NCHW"),
            precision=jax.lax.Precision.HIGHEST)
        y = jnp.maximum(y + b.reshape(1, -1, 1, 1), 0.0)
        out = jnp.concatenate([out, y], axis=1)
    w = params["lff_w"][None, None]  # (1,1,Cin,G0)
    y = jax.lax.conv_general_dilated(
        out, w, window_strides=(1, 1), padding="VALID",
        dimension_numbers=("NCHW", "HWIO", "NCHW"),
        precision=jax.lax.Precision.HIGHEST)
    out = y + params["lff_b"].reshape(1, -1, 1, 1) + x_nchw
    feat_ = out / jnp.linalg.norm(out.reshape(-1)) / float(
        out.shape[1] * out.shape[2] * out.shape[3])
    feat = feat_ if feat is None else jnp.concatenate([feat, feat_], axis=0)
    return out, feat, bit


# ----------------------------------- params -----------------------------------

def init_params(key, G0, G, C, kSize=3):
    params = {"convs": []}
    for c in range(C):
        Cin = G0 + c * G
        key, kw, kb = jax.random.split(key, 3)
        scale = 1.0 / jnp.sqrt(Cin * kSize * kSize)
        w = jax.random.normal(kw, (kSize, kSize, Cin, G), jnp.float32) * scale
        b = jax.random.normal(kb, (G,), jnp.float32) * scale
        params["convs"].append((w, b))
    Cin = G0 + C * G
    key, kw, kb = jax.random.split(key, 3)
    scale = 1.0 / jnp.sqrt(Cin)
    params["lff_w"] = jax.random.normal(kw, (Cin, G0), jnp.float32) * scale
    params["lff_b"] = jax.random.normal(kb, (G0,), jnp.float32) * scale
    return params


# ------------------------------------ main -------------------------------------

if __name__ == "__main__":
    N, G0, G, C, H, W = 2, 8, 8, 3, 16, 16

    key = jax.random.PRNGKey(0)
    key, kx = jax.random.split(key)
    x = jax.random.normal(kx, (N, G0, H, W), jnp.float32)
    feat = None                       # RDB is typically called with feat=None first
    bit = jnp.array(8, jnp.int32)     # passthrough

    params = init_params(key, G0, G, C)
    ref_out, ref_feat, _ = rdb_reference(params, x, feat, bit)

    # f32 MXU path (tight tolerance).
    out, feat_out, bit_out = rdb_forward(params, x, feat, bit, matmul_dtype=jnp.float32)
    out = jax.block_until_ready(out)
    feat_out = jax.block_until_ready(feat_out)
    assert jnp.allclose(out, ref_out, rtol=2e-3, atol=2e-3), "out mismatch (f32)"
    assert jnp.allclose(feat_out, ref_feat, rtol=2e-3, atol=2e-3), "feat mismatch (f32)"
    assert int(bit_out) == 8

    # Default bf16 MXU path (f32 accumulation, looser tolerance).
    out_bf, feat_bf, _ = rdb_forward(params, x, feat, bit)
    out_bf = jax.block_until_ready(out_bf)
    assert jnp.allclose(out_bf, ref_out, rtol=5e-2, atol=5e-2), "out mismatch (bf16)"
    assert jnp.allclose(feat_bf, ref_feat, rtol=5e-2, atol=5e-2), "feat mismatch (bf16)"

    # feat-concat branch (second call with feat is not None).
    out2, feat2, _ = rdb_forward(params, x, feat_out, bit, matmul_dtype=jnp.float32)
    jax.block_until_ready(feat2)
    assert feat2.shape == (2 * N, G0, H, W)
    assert jnp.array_equal(feat2[:N], feat_out)

    print("KERNEL_OK")
</pallas_src>

<mosaic_0001>
module attributes {stable_mosaic.version = 11 : i64} {
  func.func @_rdb_fused_kernel(%arg0: i32, %arg1: memref<1x8x288xf32, #tpu.memory_space<vmem>>, %arg2: memref<9x8x8xf32, #tpu.memory_space<vmem>>, %arg3: memref<8x1xf32, #tpu.memory_space<vmem>>, %arg4: memref<9x8x16xf32, #tpu.memory_space<vmem>>, %arg5: memref<8x1xf32, #tpu.memory_space<vmem>>, %arg6: memref<9x8x24xf32, #tpu.memory_space<vmem>>, %arg7: memref<8x1xf32, #tpu.memory_space<vmem>>, %arg8: memref<8x32xf32, #tpu.memory_space<vmem>>, %arg9: memref<8x1xf32, #tpu.memory_space<vmem>>, %arg10: memref<1x288xf32, #tpu.memory_space<vmem>>, %arg11: memref<1x8x288xf32, #tpu.memory_space<vmem>>, %arg12: memref<1x1x128xf32, #tpu.memory_space<vmem>>, %arg13: memref<32x512xf32, #tpu.memory_space<vmem>>) attributes {dimension_semantics = [#tpu.dimension_semantics<parallel>], iteration_bounds = array<i64: 2>, scalar_prefetch = 0 : i64, scratch_operands = 1 : i64, tpu.core_type = #tpu.core_type<tc>, window_params = [{transform_indices = @transform_0, window_bounds = array<i64: 1, 8, 288>}, {pipeline_mode = #tpu.pipeline_mode<synchronous>, transform_indices = @transform_1, window_bounds = array<i64: 9, 8, 8>}, {pipeline_mode = #tpu.pipeline_mode<synchronous>, transform_indices = @transform_2, window_bounds = array<i64: 8, 1>}, {pipeline_mode = #tpu.pipeline_mode<synchronous>, transform_indices = @transform_3, window_bounds = array<i64: 9, 8, 16>}, {pipeline_mode = #tpu.pipeline_mode<synchronous>, transform_indices = @transform_4, window_bounds = array<i64: 8, 1>}, {pipeline_mode = #tpu.pipeline_mode<synchronous>, transform_indices = @transform_5, window_bounds = array<i64: 9, 8, 24>}, {pipeline_mode = #tpu.pipeline_mode<synchronous>, transform_indices = @transform_6, window_bounds = array<i64: 8, 1>}, {pipeline_mode = #tpu.pipeline_mode<synchronous>, transform_indices = @transform_7, window_bounds = array<i64: 8, 32>}, {pipeline_mode = #tpu.pipeline_mode<synchronous>, transform_indices = @transform_8, window_bounds = array<i64: 8, 1>}, {pipeline_mode = #tpu.pipeline_mode<synchronous>, transform_indices = @transform_9, window_bounds = array<i64: 1, 288>}, {transform_indices = @transform_10, window_bounds = array<i64: 1, 8, 288>}, {transform_indices = @transform_11, window_bounds = array<i64: 1, 1, 128>}]} {
    %c0 = arith.constant 0 : index
    %c0_0 = arith.constant 0 : index
    %0 = vector.load %arg10[%c0, %c0_0] : memref<1x288xf32, #tpu.memory_space<vmem>>, vector<1x288xf32>
    %cst = arith.constant 0.000000e+00 : f32
    %1 = vector.broadcast %cst : f32 to vector<32x19xf32>
    %c0_1 = arith.constant 0 : index
    %c109 = arith.constant 109 : index
    %2 = vector.load %arg13[%c0_1, %c109] : memref<32x512xf32, #tpu.memory_space<vmem>>, vector<32x19xf32>
    tpu.vector_store %arg13[%c0_1, %c109], %1 {strides = array<i32>} : memref<32x512xf32, #tpu.memory_space<vmem>>, vector<32x19xf32>,
    %c0_2 = arith.constant 0 : index
    %c416 = arith.constant 416 : index
    %3 = vector.load %arg13[%c0_2, %c416] : memref<32x512xf32, #tpu.memory_space<vmem>>, vector<32x19xf32>
    tpu.vector_store %arg13[%c0_2, %c416], %1 {strides = array<i32>} : memref<32x512xf32, #tpu.memory_space<vmem>>, vector<32x19xf32>,
    %c0_3 = arith.constant 0 : index
    %c0_4 = arith.constant 0 : index
    %c0_5 = arith.constant 0 : index
    %4 = vector.load %arg1[%c0_3, %c0_4, %c0_5] : memref<1x8x288xf32, #tpu.memory_space<vmem>>, vector<1x8x288xf32>
    %5 = vector.shape_cast %4 : vector<1x8x288xf32> to vector<8x288xf32>
    %c0_6 = arith.constant 0 : index
    %c128 = arith.constant 128 : index
    %6 = vector.load %arg13[%c0_6, %c128] : memref<32x512xf32, #tpu.memory_space<vmem>>, vector<8x288xf32>
    tpu.vector_store %arg13[%c0_6, %c128], %5 {strides = array<i32>} : memref<32x512xf32, #tpu.memory_space<vmem>>, vector<8x288xf32>,
    %cst_7 = arith.constant 0.000000e+00 : f32
    %7 = vector.broadcast %cst_7 : f32 to vector<8x288xf32>
    %c0_8 = arith.constant 0 : index
    %c109_9 = arith.constant 109 : index
    %8 = vector.load %arg13[%c0_8, %c109_9] : memref<32x512xf32, #tpu.memory_space<vmem>>, vector<8x288xf32>
    %c0_10 = arith.constant 0 : index
    %c0_11 = arith.constant 0 : index
    %c0_12 = arith.constant 0 : index
    %9 = vector.load %arg2[%c0_10, %c0_11, %c0_12] : memref<9x8x8xf32, #tpu.memory_space<vmem>>, vector<1x8x8xf32>
    %10 = vector.shape_cast %9 : vector<1x8x8xf32> to vector<8x8xf32>
    %cst_13 = arith.constant dense<0.000000e+00> : vector<8x288xf32>
    %11 = tpu.matmul %10, %8, %cst_13 {dimension_numbers = #tpu.dot_dimension_numbers<[1], [0], [0], [1], [0, 0, 1, 1], [], []>} : vector<8x8xf32>, vector<8x288xf32>, vector<8x288xf32> -> vector<8x288xf32>
    %12 = arith.addf %7, %11 : vector<8x288xf32>
    %c0_14 = arith.constant 0 : index
    %c110 = arith.constant 110 : index
    %13 = vector.load %arg13[%c0_14, %c110] : memref<32x512xf32, #tpu.memory_space<vmem>>, vector<8x288xf32>
    %c1 = arith.constant 1 : index
    %c0_15 = arith.constant 0 : index
    %c0_16 = arith.constant 0 : index
    %14 = vector.load %arg2[%c1, %c0_15, %c0_16] : memref<9x8x8xf32, #tpu.memory_space<vmem>>, vector<1x8x8xf32>
    %15 = vector.shape_cast %14 : vector<1x8x8xf32> to vector<8x8xf32>
    %cst_17 = arith.constant dense<0.000000e+00> : vector<8x288xf32>
    %16 = tpu.matmul %15, %13, %cst_17 {dimension_numbers = #tpu.dot_dimension_numbers<[1], [0], [0], [1], [0, 0, 1, 1], [], []>} : vector<8x8xf32>, vector<8x288xf32>, vector<8x288xf32> -> vector<8x288xf32>
    %17 = arith.addf %12, %16 : vector<8x288xf32>
    %c0_18 = arith.constant 0 : index
    %c111 = arith.constant 111 : index
    %18 = vector.load %arg13[%c0_18, %c111] : memref<32x512xf32, #tpu.memory_space<vmem>>, vector<8x288xf32>
    %c2 = arith.constant 2 : index
    %c0_19 = arith.constant 0 : index
    %c0_20 = arith.constant 0 : index
    %19 = vector.load %arg2[%c2, %c0_19, %c0_20] : memref<9x8x8xf32, #tpu.memory_space<vmem>>, vector<1x8x8xf32>
    %20 = vector.shape_cast %19 : vector<1x8x8xf32> to vector<8x8xf32>
    %cst_21 = arith.constant dense<0.000000e+00> : vector<8x288xf32>
    %21 = tpu.matmul %20, %18, %cst_21 {dimension_numbers = #tpu.dot_dimension_numbers<[1], [0], [0], [1], [0, 0, 1, 1], [], []>} : vector<8x8xf32>, vector<8x288xf32>, vector<8x288xf32> -> vector<8x288xf32>
    %22 = arith.addf %17, %21 : vector<8x288xf32>
    %c0_22 = arith.constant 0 : index
    %c127 = arith.constant 127 : index
    %23 = vector.load %arg13[%c0_22, %c127] : memref<32x512xf32, #tpu.memory_space<vmem>>, vector<8x288xf32>
    %c3 = arith.constant 3 : index
    %c0_23 = arith.constant 0 : index
    %c0_24 = arith.constant 0 : index
    %24 = vector.load %arg2[%c3, %c0_23, %c0_24] : memref<9x8x8xf32, #tpu.memory_space<vmem>>, vector<1x8x8xf32>
    %25 = vector.shape_cast %24 : vector<1x8x8xf32> to vector<8x8xf32>
    %cst_25 = arith.constant dense<0.000000e+00> : vector<8x288xf32>
    %26 = tpu.matmul %25, %23, %cst_25 {dimension_numbers = #tpu.dot_dimension_numbers<[1], [0], [0], [1], [0, 0, 1, 1], [], []>} : vector<8x8xf32>, vector<8x288xf32>, vector<8x288xf32> -> vector<8x288xf32>
    %27 = arith.addf %22, %26 : vector<8x288xf32>
    %c0_26 = arith.constant 0 : index
    %c128_27 = arith.constant 128 : index
    %28 = vector.load %arg13[%c0_26, %c128_27] : memref<32x512xf32, #tpu.memory_space<vmem>>, vector<8x288xf32>
    %c4 = arith.constant 4 : index
    %c0_28 = arith.constant 0 : index
    %c0_29 = arith.constant 0 : index
    %29 = vector.load %arg2[%c4, %c0_28, %c0_29] : memref<9x8x8xf32, #tpu.memory_space<vmem>>, vector<1x8x8xf32>
    %30 = vector.shape_cast %29 : vector<1x8x8xf32> to vector<8x8xf32>
    %cst_30 = arith.constant dense<0.000000e+00> : vector<8x288xf32>
    %31 = tpu.matmul %30, %28, %cst_30 {dimension_numbers = #tpu.dot_dimension_numbers<[1], [0], [0], [1], [0, 0, 1, 1], [], []>} : vector<8x8xf32>, vector<8x288xf32>, vector<8x288xf32> -> vector<8x288xf32>
    %32 = arith.addf %27, %31 : vector<8x288xf32>
    %c0_31 = arith.constant 0 : index
    %c129 = arith.constant 129 : index
    %33 = vector.load %arg13[%c0_31, %c129] : memref<32x512xf32, #tpu.memory_space<vmem>>, vector<8x288xf32>
    %c5 = arith.constant 5 : index
    %c0_32 = arith.constant 0 : index
    %c0_33 = arith.constant 0 : index
    %34 = vector.load %arg2[%c5, %c0_32, %c0_33] : memref<9x8x8xf32, #tpu.memory_space<vmem>>, vector<1x8x8xf32>
    %35 = vector.shape_cast %34 : vector<1x8x8xf32> to vector<8x8xf32>
    %cst_34 = arith.constant dense<0.000000e+00> : vector<8x288xf32>
    %36 = tpu.matmul %35, %33, %cst_34 {dimension_numbers = #tpu.dot_dimension_numbers<[1], [0], [0], [1], [0, 0, 1, 1], [], []>} : vector<8x8xf32>, vector<8x288xf32>, vector<8x288xf32> -> vector<8x288xf32>
    %37 = arith.addf %32, %36 : vector<8x288xf32>
    %c0_35 = arith.constant 0 : index
    %c145 = arith.constant 145 : index
    %38 = vector.load %arg13[%c0_35, %c145] : memref<32x512xf32, #tpu.memory_space<vmem>>, vector<8x288xf32>
    %c6 = arith.constant 6 : index
    %c0_36 = arith.constant 0 : index
    %c0_37 = arith.constant 0 : index
    %39 = vector.load %arg2[%c6, %c0_36, %c0_37] : memref<9x8x8xf32, #tpu.memory_space<vmem>>, vector<1x8x8xf32>
    %40 = vector.shape_cast %39 : vector<1x8x8xf32> to vector<8x8xf32>
    %cst_38 = arith.constant dense<0.000000e+00> : vector<8x288xf32>
    %41 = tpu.matmul %40, %38, %cst_38 {dimension_numbers = #tpu.dot_dimension_numbers<[1], [0], [0], [1], [0, 0, 1, 1], [], []>} : vector<8x8xf32>, vector<8x288xf32>, vector<8x288xf32> -> vector<8x288xf32>
    %42 = arith.addf %37, %41 : vector<8x288xf32>
    %c0_39 = arith.constant 0 : index
    %c146 = arith.constant 146 : index
    %43 = vector.load %arg13[%c0_39, %c146] : memref<32x512xf32, #tpu.memory_space<vmem>>, vector<8x288xf32>
    %c7 = arith.constant 7 : index
    %c0_40 = arith.constant 0 : index
    %c0_41 = arith.constant 0 : index
    %44 = vector.load %arg2[%c7, %c0_40, %c0_41] : memref<9x8x8xf32, #tpu.memory_space<vmem>>, vector<1x8x8xf32>
    %45 = vector.shape_cast %44 : vector<1x8x8xf32> to vector<8x8xf32>
    %cst_42 = arith.constant dense<0.000000e+00> : vector<8x288xf32>
    %46 = tpu.matmul %45, %43, %cst_42 {dimension_numbers = #tpu.dot_dimension_numbers<[1], [0], [0], [1], [0, 0, 1, 1], [], []>} : vector<8x8xf32>, vector<8x288xf32>, vector<8x288xf32> -> vector<8x288xf32>
    %47 = arith.addf %42, %46 : vector<8x288xf32>
    %c0_43 = arith.constant 0 : index
    %c147 = arith.constant 147 : index
    %48 = vector.load %arg13[%c0_43, %c147] : memref<32x512xf32, #tpu.memory_space<vmem>>, vector<8x288xf32>
    %c8 = arith.constant 8 : index
    %c0_44 = arith.constant 0 : index
    %c0_45 = arith.constant 0 : index
    %49 = vector.load %arg2[%c8, %c0_44, %c0_45] : memref<9x8x8xf32, #tpu.memory_space<vmem>>, vector<1x8x8xf32>
    %50 = vector.shape_cast %49 : vector<1x8x8xf32> to vector<8x8xf32>
    %cst_46 = arith.constant dense<0.000000e+00> : vector<8x288xf32>
    %51 = tpu.matmul %50, %48, %cst_46 {dimension_numbers = #tpu.dot_dimension_numbers<[1], [0], [0], [1], [0, 0, 1, 1], [], []>} : vector<8x8xf32>, vector<8x288xf32>, vector<8x288xf32> -> vector<8x288xf32>
    %52 = arith.addf %47, %51 : vector<8x288xf32>
    %c0_47 = arith.constant 0 : index
    %c0_48 = arith.constant 0 : index
    %53 = vector.load %arg3[%c0_47, %c0_48] : memref<8x1xf32, #tpu.memory_space<vmem>>, vector<8x1xf32>
    %54 = vector.broadcast %53 : vector<8x1xf32> to vector<8x288xf32>
    %55 = arith.addf %52, %54 : vector<8x288xf32>
    %cst_49 = arith.constant 0.000000e+00 : f32
    %56 = vector.broadcast %cst_49 : f32 to vector<8x288xf32>
    %57 = arith.maximumf %55, %56 : vector<8x288xf32>
    %58 = vector.broadcast %0 : vector<1x288xf32> to vector<8x288xf32>
    %59 = arith.mulf %57, %58 : vector<8x288xf32>
    %c8_50 = arith.constant 8 : index
    %c128_51 = arith.constant 128 : index
    %60 = vector.load %arg13[%c8_50, %c128_51] : memref<32x512xf32, #tpu.memory_space<vmem>>, vector<8x288xf32>
    tpu.vector_store %arg13[%c8_50, %c128_51], %59 {strides = array<i32>} : memref<32x512xf32, #tpu.memory_space<vmem>>, vector<8x288xf32>,
    %cst_52 = arith.constant 0.000000e+00 : f32
    %61 = vector.broadcast %cst_52 : f32 to vector<8x288xf32>
    %c0_53 = arith.constant 0 : index
    %c109_54 = arith.constant 109 : index
    %62 = vector.load %arg13[%c0_53, %c109_54] : memref<32x512xf32, #tpu.memory_space<vmem>>, vector<16x288xf32>
    %c0_55 = arith.constant 0 : index
    %c0_56 = arith.constant 0 : index
    %c0_57 = arith.constant 0 : index
    %63 = vector.load %arg4[%c0_55, %c0_56, %c0_57] : memref<9x8x16xf32, #tpu.memory_space<vmem>>, vector<1x8x16xf32>
    %64 = vector.shape_cast %63 : vector<1x8x16xf32> to vector<8x16xf32>
    %cst_58 = arith.constant dense<0.000000e+00> : vector<8x288xf32>
    %65 = tpu.matmul %64, %62, %cst_58 {dimension_numbers = #tpu.dot_dimension_numbers<[1], [0], [0], [1], [0, 0, 1, 1], [], []>} : vector<8x16xf32>, vector<16x288xf32>, vector<8x288xf32> -> vector<8x288xf32>
    %66 = arith.addf %61, %65 : vector<8x288xf32>
    %c0_59 = arith.constant 0 : index
    %c110_60 = arith.constant 110 : index
    %67 = vector.load %arg13[%c0_59, %c110_60] : memref<32x512xf32, #tpu.memory_space<vmem>>, vector<16x288xf32>
    %c1_61 = arith.constant 1 : index
    %c0_62 = arith.constant 0 : index
    %c0_63 = arith.constant 0 : index
    %68 = vector.load %arg4[%c1_61, %c0_62, %c0_63] : memref<9x8x16xf32, #tpu.memory_space<vmem>>, vector<1x8x16xf32>
    %69 = vector.shape_cast %68 : vector<1x8x16xf32> to vector<8x16xf32>
    %cst_64 = arith.constant dense<0.000000e+00> : vector<8x288xf32>
    %70 = tpu.matmul %69, %67, %cst_64 {dimension_numbers = #tpu.dot_dimension_numbers<[1], [0], [0], [1], [0, 0, 1, 1], [], []>} : vector<8x16xf32>, vector<16x288xf32>, vector<8x288xf32> -> vector<8x288xf32>
    %71 = arith.addf %66, %70 : vector<8x288xf32>
    %c0_65 = arith.constant 0 : index
    %c111_66 = arith.constant 111 : index
    %72 = vector.load %arg13[%c0_65, %c111_66] : memref<32x512xf32, #tpu.memory_space<vmem>>, vector<16x288xf32>
    %c2_67 = arith.constant 2 : index
    %c0_68 = arith.constant 0 : index
    %c0_69 = arith.constant 0 : index
    %73 = vector.load %arg4[%c2_67, %c0_68, %c0_69] : memref<9x8x16xf32, #tpu.memory_space<vmem>>, vector<1x8x16xf32>
    %74 = vector.shape_cast %73 : vector<1x8x16xf32> to vector<8x16xf32>
    %cst_70 = arith.constant dense<0.000000e+00> : vector<8x288xf32>
    %75 = tpu.matmul %74, %72, %cst_70 {dimension_numbers = #tpu.dot_dimension_numbers<[1], [0], [0], [1], [0, 0, 1, 1], [], []>} : vector<8x16xf32>, vector<16x288xf32>, vector<8x288xf32> -> vector<8x288xf32>
    %76 = arith.addf %71, %75 : vector<8x288xf32>
    %c0_71 = arith.constant 0 : index
    %c127_72 = arith.constant 127 : index
    %77 = vector.load %arg13[%c0_71, %c127_72] : memref<32x512xf32, #tpu.memory_space<vmem>>, vector<16x288xf32>
    %c3_73 = arith.constant 3 : index
    %c0_74 = arith.constant 0 : index
    %c0_75 = arith.constant 0 : index
    %78 = vector.load %arg4[%c3_73, %c0_74, %c0_75] : memref<9x8x16xf32, #tpu.memory_space<vmem>>, vector<1x8x16xf32>
    %79 = vector.shape_cast %78 : vector<1x8x16xf32> to vector<8x16xf32>
    %cst_76 = arith.constant dense<0.000000e+00> : vector<8x288xf32>
    %80 = tpu.matmul %79, %77, %cst_76 {dimension_numbers = #tpu.dot_dimension_numbers<[1], [0], [0], [1], [0, 0, 1, 1], [], []>} : vector<8x16xf32>, vector<16x288xf32>, vector<8x288xf32> -> vector<8x288xf32>
    %81 = arith.addf %76, %80 : vector<8x288xf32>
    %c0_77 = arith.constant 0 : index
    %c128_78 = arith.constant 128 : index
    %82 = vector.load %arg13[%c0_77, %c128_78] : memref<32x512xf32, #tpu.memory_space<vmem>>, vector<16x288xf32>
    %c4_79 = arith.constant 4 : index
    %c0_80 = arith.constant 0 : index
    %c0_81 = arith.constant 0 : index
    %83 = vector.load %arg4[%c4_79, %c0_80, %c0_81] : memref<9x8x16xf32, #tpu.memory_space<vmem>>, vector<1x8x16xf32>
    %84 = vector.shape_cast %83 : vector<1x8x16xf32> to vector<8x16xf32>
    %cst_82 = arith.constant dense<0.000000e+00> : vector<8x288xf32>
    %85 = tpu.matmul %84, %82, %cst_82 {dimension_numbers = #tpu.dot_dimension_numbers<[1], [0], [0], [1], [0, 0, 1, 1], [], []>} : vector<8x16xf32>, vector<16x288xf32>, vector<8x288xf32> -> vector<8x288xf32>
    %86 = arith.addf %81, %85 : vector<8x288xf32>
    %c0_83 = arith.constant 0 : index
    %c129_84 = arith.constant 129 : index
    %87 = vector.load %arg13[%c0_83, %c129_84] : memref<32x512xf32, #tpu.memory_space<vmem>>, vector<16x288xf32>
    %c5_85 = arith.constant 5 : index
    %c0_86 = arith.constant 0 : index
    %c0_87 = arith.constant 0 : index
    %88 = vector.load %arg4[%c5_85, %c0_86, %c0_87] : memref<9x8x16xf32, #tpu.memory_space<vmem>>, vector<1x8x16xf32>
    %89 = vector.shape_cast %88 : vector<1x8x16xf32> to vector<8x16xf32>
    %cst_88 = arith.constant dense<0.000000e+00> : vector<8x288xf32>
    %90 = tpu.matmul %89, %87, %cst_88 {dimension_numbers = #tpu.dot_dimension_numbers<[1], [0], [0], [1], [0, 0, 1, 1], [], []>} : vector<8x16xf32>, vector<16x288xf32>, vector<8x288xf32> -> vector<8x288xf32>
    %91 = arith.addf %86, %90 : vector<8x288xf32>
    %c0_89 = arith.constant 0 : index
    %c145_90 = arith.constant 145 : index
    %92 = vector.load %arg13[%c0_89, %c145_90] : memref<32x512xf32, #tpu.memory_space<vmem>>, vector<16x288xf32>
    %c6_91 = arith.constant 6 : index
    %c0_92 = arith.constant 0 : index
    %c0_93 = arith.constant 0 : index
    %93 = vector.load %arg4[%c6_91, %c0_92, %c0_93] : memref<9x8x16xf32, #tpu.memory_space<vmem>>, vector<1x8x16xf32>
    %94 = vector.shape_cast %93 : vector<1x8x16xf32> to vector<8x16xf32>
    %cst_94 = arith.constant dense<0.000000e+00> : vector<8x288xf32>
    %95 = tpu.matmul %94, %92, %cst_94 {dimension_numbers = #tpu.dot_dimension_numbers<[1], [0], [0], [1], [0, 0, 1, 1], [], []>} : vector<8x16xf32>, vector<16x288xf32>, vector<8x288xf32> -> vector<8x288xf32>
    %96 = arith.addf %91, %95 : vector<8x288xf32>
    %c0_95 = arith.constant 0 : index
    %c146_96 = arith.constant 146 : index
    %97 = vector.load %arg13[%c0_95, %c146_96] : memref<32x512xf32, #tpu.memory_space<vmem>>, vector<16x288xf32>
    %c7_97 = arith.constant 7 : index
    %c0_98 = arith.constant 0 : index
    %c0_99 = arith.constant 0 : index
    %98 = vector.load %arg4[%c7_97, %c0_98, %c0_99] : memref<9x8x16xf32, #tpu.memory_space<vmem>>, vector<1x8x16xf32>
    %99 = vector.shape_cast %98 : vector<1x8x16xf32> to vector<8x16xf32>
    %cst_100 = arith.constant dense<0.000000e+00> : vector<8x288xf32>
    %100 = tpu.matmul %99, %97, %cst_100 {dimension_numbers = #tpu.dot_dimension_numbers<[1], [0], [0], [1], [0, 0, 1, 1], [], []>} : vector<8x16xf32>, vector<16x288xf32>, vector<8x288xf32> -> vector<8x288xf32>
    %101 = arith.addf %96, %100 : vector<8x288xf32>
    %c0_101 = arith.constant 0 : index
    %c147_102 = arith.constant 147 : index
    %102 = vector.load %arg13[%c0_101, %c147_102] : memref<32x512xf32, #tpu.memory_space<vmem>>, vector<16x288xf32>
    %c8_103 = arith.constant 8 : index
    %c0_104 = arith.constant 0 : index
    %c0_105 = arith.constant 0 : index
    %103 = vector.load %arg4[%c8_103, %c0_104, %c0_105] : memref<9x8x16xf32, #tpu.memory_space<vmem>>, vector<1x8x16xf32>
    %104 = vector.shape_cast %103 : vector<1x8x16xf32> to vector<8x16xf32>
    %cst_106 = arith.constant dense<0.000000e+00> : vector<8x288xf32>
    %105 = tpu.matmul %104, %102, %cst_106 {dimension_numbers = #tpu.dot_dimension_numbers<[1], [0], [0], [1], [0, 0, 1, 1], [], []>} : vector<8x16xf32>, vector<16x288xf32>, vector<8x288xf32> -> vector<8x288xf32>
    %106 = arith.addf %101, %105 : vector<8x288xf32>
    %c0_107 = arith.constant 0 : index
    %c0_108 = arith.constant 0 : index
    %107 = vector.load %arg5[%c0_107, %c0_108] : memref<8x1xf32, #tpu.memory_space<vmem>>, vector<8x1xf32>
    %108 = vector.broadcast %107 : vector<8x1xf32> to vector<8x288xf32>
    %109 = arith.addf %106, %108 : vector<8x288xf32>
    %cst_109 = arith.constant 0.000000e+00 : f32
    %110 = vector.broadcast %cst_109 : f32 to vector<8x288xf32>
    %111 = arith.maximumf %109, %110 : vector<8x288xf32>
    %112 = vector.broadcast %0 : vector<1x288xf32> to vector<8x288xf32>
    %113 = arith.mulf %111, %112 : vector<8x288xf32>
    %c16 = arith.constant 16 : index
    %c128_110 = arith.constant 128 : index
    %114 = vector.load %arg13[%c16, %c128_110] : memref<32x512xf32, #tpu.memory_space<vmem>>, vector<8x288xf32>
    tpu.vector_store %arg13[%c16, %c128_110], %113 {strides = array<i32>} : memref<32x512xf32, #tpu.memory_space<vmem>>, vector<8x288xf32>,
    %cst_111 = arith.constant 0.000000e+00 : f32
    %115 = vector.broadcast %cst_111 : f32 to vector<8x288xf32>
    %c0_112 = arith.constant 0 : index
    %c109_113 = arith.constant 109 : index
    %116 = vector.load %arg13[%c0_112, %c109_113] : memref<32x512xf32, #tpu.memory_space<vmem>>, vector<24x288xf32>
    %c0_114 = arith.constant 0 : index
    %c0_115 = arith.constant 0 : index
    %c0_116 = arith.constant 0 : index
    %117 = vector.load %arg6[%c0_114, %c0_115, %c0_116] : memref<9x8x24xf32, #tpu.memory_space<vmem>>, vector<1x8x24xf32>
    %118 = vector.shape_cast %117 : vector<1x8x24xf32> to vector<8x24xf32>
    %cst_117 = arith.constant dense<0.000000e+00> : vector<8x288xf32>
    %119 = tpu.matmul %118, %116, %cst_117 {dimension_numbers = #tpu.dot_dimension_numbers<[1], [0], [0], [1], [0, 0, 1, 1], [], []>} : vector<8x24xf32>, vector<24x288xf32>, vector<8x288xf32> -> vector<8x288xf32>
    %120 = arith.addf %115, %119 : vector<8x288xf32>
    %c0_118 = arith.constant 0 : index
    %c110_119 = arith.constant 110 : index
    %121 = vector.load %arg13[%c0_118, %c110_119] : memref<32x512xf32, #tpu.memory_space<vmem>>, vector<24x288xf32>
    %c1_120 = arith.constant 1 : index
    %c0_121 = arith.constant 0 : index
    %c0_122 = arith.constant 0 : index
    %122 = vector.load %arg6[%c1_120, %c0_121, %c0_122] : memref<9x8x24xf32, #tpu.memory_space<vmem>>, vector<1x8x24xf32>
    %123 = vector.shape_cast %122 : vector<1x8x24xf32> to vector<8x24xf32>
    %cst_123 = arith.constant dense<0.000000e+00> : vector<8x288xf32>
    %124 = tpu.matmul %123, %121, %cst_123 {dimension_numbers = #tpu.dot_dimension_numbers<[1], [0], [0], [1], [0, 0, 1, 1], [], []>} : vector<8x24xf32>, vector<24x288xf32>, vector<8x288xf32> -> vector<8x288xf32>
    %125 = arith.addf %120, %124 : vector<8x288xf32>
    %c0_124 = arith.constant 0 : index
    %c111_125 = arith.constant 111 : index
    %126 = vector.load %arg13[%c0_124, %c111_125] : memref<32x512xf32, #tpu.memory_space<vmem>>, vector<24x288xf32>
    %c2_126 = arith.constant 2 : index
    %c0_127 = arith.constant 0 : index
    %c0_128 = arith.constant 0 : index
    %127 = vector.load %arg6[%c2_126, %c0_127, %c0_128] : memref<9x8x24xf32, #tpu.memory_space<vmem>>, vector<1x8x24xf32>
    %128 = vector.shape_cast %127 : vector<1x8x24xf32> to vector<8x24xf32>
    %cst_129 = arith.constant dense<0.000000e+00> : vector<8x288xf32>
    %129 = tpu.matmul %128, %126, %cst_129 {dimension_numbers = #tpu.dot_dimension_numbers<[1], [0], [0], [1], [0, 0, 1, 1], [], []>} : vector<8x24xf32>, vector<24x288xf32>, vector<8x288xf32> -> vector<8x288xf32>
    %130 = arith.addf %125, %129 : vector<8x288xf32>
    %c0_130 = arith.constant 0 : index
    %c127_131 = arith.constant 127 : index
    %131 = vector.load %arg13[%c0_130, %c127_131] : memref<32x512xf32, #tpu.memory_space<vmem>>, vector<24x288xf32>
    %c3_132 = arith.constant 3 : index
    %c0_133 = arith.constant 0 : index
    %c0_134 = arith.constant 0 : index
    %132 = vector.load %arg6[%c3_132, %c0_133, %c0_134] : memref<9x8x24xf32, #tpu.memory_space<vmem>>, vector<1x8x24xf32>
    %133 = vector.shape_cast %132 : vector<1x8x24xf32> to vector<8x24xf32>
    %cst_135 = arith.constant dense<0.000000e+00> : vector<8x288xf32>
    %134 = tpu.matmul %133, %131, %cst_135 {dimension_numbers = #tpu.dot_dimension_numbers<[1], [0], [0], [1], [0, 0, 1, 1], [], []>} : vector<8x24xf32>, vector<24x288xf32>, vector<8x288xf32> -> vector<8x288xf32>
    %135 = arith.addf %130, %134 : vector<8x288xf32>
    %c0_136 = arith.constant 0 : index
    %c128_137 = arith.constant 128 : index
    %136 = vector.load %arg13[%c0_136, %c128_137] : memref<32x512xf32, #tpu.memory_space<vmem>>, vector<24x288xf32>
    %c4_138 = arith.constant 4 : index
    %c0_139 = arith.constant 0 : index
    %c0_140 = arith.constant 0 : index
    %137 = vector.load %arg6[%c4_138, %c0_139, %c0_140] : memref<9x8x24xf32, #tpu.memory_space<vmem>>, vector<1x8x24xf32>
    %138 = vector.shape_cast %137 : vector<1x8x24xf32> to vector<8x24xf32>
    %cst_141 = arith.constant dense<0.000000e+00> : vector<8x288xf32>
    %139 = tpu.matmul %138, %136, %cst_141 {dimension_numbers = #tpu.dot_dimension_numbers<[1], [0], [0], [1], [0, 0, 1, 1], [], []>} : vector<8x24xf32>, vector<24x288xf32>, vector<8x288xf32> -> vector<8x288xf32>
    %140 = arith.addf %135, %139 : vector<8x288xf32>
    %c0_142 = arith.constant 0 : index
    %c129_143 = arith.constant 129 : index
    %141 = vector.load %arg13[%c0_142, %c129_143] : memref<32x512xf32, #tpu.memory_space<vmem>>, vector<24x288xf32>
    %c5_144 = arith.constant 5 : index
    %c0_145 = arith.constant 0 : index
    %c0_146 = arith.constant 0 : index
    %142 = vector.load %arg6[%c5_144, %c0_145, %c0_146] : memref<9x8x24xf32, #tpu.memory_space<vmem>>, vector<1x8x24xf32>
    %143 = vector.shape_cast %142 : vector<1x8x24xf32> to vector<8x24xf32>
    %cst_147 = arith.constant dense<0.000000e+00> : vector<8x288xf32>
    %144 = tpu.matmul %143, %141, %cst_147 {dimension_numbers = #tpu.dot_dimension_numbers<[1], [0], [0], [1], [0, 0, 1, 1], [], []>} : vector<8x24xf32>, vector<24x288xf32>, vector<8x288xf32> -> vector<8x288xf32>
    %145 = arith.addf %140, %144 : vector<8x288xf32>
    %c0_148 = arith.constant 0 : index
    %c145_149 = arith.constant 145 : index
    %146 = vector.load %arg13[%c0_148, %c145_149] : memref<32x512xf32, #tpu.memory_space<vmem>>, vector<24x288xf32>
    %c6_150 = arith.constant 6 : index
    %c0_151 = arith.constant 0 : index
    %c0_152 = arith.constant 0 : index
    %147 = vector.load %arg6[%c6_150, %c0_151, %c0_152] : memref<9x8x24xf32, #tpu.memory_space<vmem>>, vector<1x8x24xf32>
    %148 = vector.shape_cast %147 : vector<1x8x24xf32> to vector<8x24xf32>
    %cst_153 = arith.constant dense<0.000000e+00> : vector<8x288xf32>
    %149 = tpu.matmul %148, %146, %cst_153 {dimension_numbers = #tpu.dot_dimension_numbers<[1], [0], [0], [1], [0, 0, 1, 1], [], []>} : vector<8x24xf32>, vector<24x288xf32>, vector<8x288xf32> -> vector<8x288xf32>
    %150 = arith.addf %145, %149 : vector<8x288xf32>
    %c0_154 = arith.constant 0 : index
    %c146_155 = arith.constant 146 : index
    %151 = vector.load %arg13[%c0_154, %c146_155] : memref<32x512xf32, #tpu.memory_space<vmem>>, vector<24x288xf32>
    %c7_156 = arith.constant 7 : index
    %c0_157 = arith.constant 0 : index
    %c0_158 = arith.constant 0 : index
    %152 = vector.load %arg6[%c7_156, %c0_157, %c0_158] : memref<9x8x24xf32, #tpu.memory_space<vmem>>, vector<1x8x24xf32>
    %153 = vector.shape_cast %152 : vector<1x8x24xf32> to vector<8x24xf32>
    %cst_159 = arith.constant dense<0.000000e+00> : vector<8x288xf32>
    %154 = tpu.matmul %153, %151, %cst_159 {dimension_numbers = #tpu.dot_dimension_numbers<[1], [0], [0], [1], [0, 0, 1, 1], [], []>} : vector<8x24xf32>, vector<24x288xf32>, vector<8x288xf32> -> vector<8x288xf32>
    %155 = arith.addf %150, %154 : vector<8x288xf32>
    %c0_160 = arith.constant 0 : index
    %c147_161 = arith.constant 147 : index
    %156 = vector.load %arg13[%c0_160, %c147_161] : memref<32x512xf32, #tpu.memory_space<vmem>>, vector<24x288xf32>
    %c8_162 = arith.constant 8 : index
    %c0_163 = arith.constant 0 : index
    %c0_164 = arith.constant 0 : index
    %157 = vector.load %arg6[%c8_162, %c0_163, %c0_164] : memref<9x8x24xf32, #tpu.memory_space<vmem>>, vector<1x8x24xf32>
    %158 = vector.shape_cast %157 : vector<1x8x24xf32> to vector<8x24xf32>
    %cst_165 = arith.constant dense<0.000000e+00> : vector<8x288xf32>
    %159 = tpu.matmul %158, %156, %cst_165 {dimension_numbers = #tpu.dot_dimension_numbers<[1], [0], [0], [1], [0, 0, 1, 1], [], []>} : vector<8x24xf32>, vector<24x288xf32>, vector<8x288xf32> -> vector<8x288xf32>
    %160 = arith.addf %155, %159 : vector<8x288xf32>
    %c0_166 = arith.constant 0 : index
    %c0_167 = arith.constant 0 : index
    %161 = vector.load %arg7[%c0_166, %c0_167] : memref<8x1xf32, #tpu.memory_space<vmem>>, vector<8x1xf32>
    %162 = vector.broadcast %161 : vector<8x1xf32> to vector<8x288xf32>
    %163 = arith.addf %160, %162 : vector<8x288xf32>
    %cst_168 = arith.constant 0.000000e+00 : f32
    %164 = vector.broadcast %cst_168 : f32 to vector<8x288xf32>
    %165 = arith.maximumf %163, %164 : vector<8x288xf32>
    %166 = vector.broadcast %0 : vector<1x288xf32> to vector<8x288xf32>
    %167 = arith.mulf %165, %166 : vector<8x288xf32>
    %c24 = arith.constant 24 : index
    %c128_169 = arith.constant 128 : index
    %168 = vector.load %arg13[%c24, %c128_169] : memref<32x512xf32, #tpu.memory_space<vmem>>, vector<8x288xf32>
    tpu.vector_store %arg13[%c24, %c128_169], %167 {strides = array<i32>} : memref<32x512xf32, #tpu.memory_space<vmem>>, vector<8x288xf32>,
    %c0_170 = arith.constant 0 : index
    %c128_171 = arith.constant 128 : index
    %169 = vector.load %arg13[%c0_170, %c128_171] : memref<32x512xf32, #tpu.memory_space<vmem>>, vector<32x288xf32>
    %c0_172 = arith.constant 0 : index
    %c0_173 = arith.constant 0 : index
    %170 = vector.load %arg8[%c0_172, %c0_173] : memref<8x32xf32, #tpu.memory_space<vmem>>, vector<8x32xf32>
    %cst_174 = arith.constant dense<0.000000e+00> : vector<8x288xf32>
    %171 = tpu.matmul %170, %169, %cst_174 {dimension_numbers = #tpu.dot_dimension_numbers<[1], [0], [0], [1], [0, 0, 1, 1], [], []>} : vector<8x32xf32>, vector<32x288xf32>, vector<8x288xf32> -> vector<8x288xf32>
    %c0_175 = arith.constant 0 : index
    %c0_176 = arith.constant 0 : index
    %172 = vector.load %arg9[%c0_175, %c0_176] : memref<8x1xf32, #tpu.memory_space<vmem>>, vector<8x1xf32>
    %173 = vector.broadcast %172 : vector<8x1xf32> to vector<8x288xf32>
    %174 = arith.addf %171, %173 : vector<8x288xf32>
    %175 = arith.addf %174, %5 : vector<8x288xf32>
    %176 = vector.broadcast %0 : vector<1x288xf32> to vector<8x288xf32>
    %177 = arith.mulf %175, %176 : vector<8x288xf32>
    %c0_177 = arith.constant 0 : index
    %c0_178 = arith.constant 0 : index
    %c0_179 = arith.constant 0 : index
    %178 = vector.load %arg11[%c0_177, %c0_178, %c0_179] : memref<1x8x288xf32, #tpu.memory_space<vmem>>, vector<1x8x288xf32>
    %179 = vector.shape_cast %178 : vector<1x8x288xf32> to vector<8x288xf32>
    %180 = vector.shape_cast %177 : vector<8x288xf32> to vector<1x8x288xf32>
    tpu.vector_store %arg11[%c0_177, %c0_178, %c0_179], %180 {strides = array<i32>} : memref<1x8x288xf32, #tpu.memory_space<vmem>>, vector<1x8x288xf32>,
    %181 = arith.mulf %177, %177 : vector<8x288xf32>
    %182 = vector.shape_cast %181 : vector<8x288xf32> to vector<1x8x288xf32>
    %cst_180 = arith.constant dense<0.000000e+00> : vector<1xf32>
    %183 = vector.multi_reduction <add>, %182, %cst_180 [1, 2] : vector<1x8x288xf32> to vector<1xf32>
    %184 = vector.shape_cast %183 : vector<1xf32> to vector<1x1x1xf32>
    %185 = vector.extract %184[0, 0, 0] : f32 from vector<1x1x1xf32>
    %cst_181 = arith.constant 1.000000e+00 : f32
    %186 = vector.broadcast %cst_181 : f32 to vector<1x1x128xf32>
    %187 = vector.broadcast %185 : f32 to vector<1x1x128xf32>
    %188 = arith.mulf %187, %186 : vector<1x1x128xf32>
    %c0_182 = arith.constant 0 : index
    %c0_183 = arith.constant 0 : index
    %c0_184 = arith.constant 0 : index
    %189 = vector.load %arg12[%c0_182, %c0_183, %c0_184] : memref<1x1x128xf32, #tpu.memory_space<vmem>>, vector<1x1x128xf32>
    tpu.vector_store %arg12[%c0_182, %c0_183, %c0_184], %188 {strides = array<i32>} : memref<1x1x128xf32, #tpu.memory_space<vmem>>, vector<1x1x128xf32>,
    return
  }
  func.func @transform_0(%arg0: i32) -> (i32, i32, i32) {
    %c0_i32 = arith.constant 0 : i32
    %c0_i32_0 = arith.constant 0 : i32
    %c0_i32_1 = arith.constant 0 : i32
    return %arg0, %c0_i32, %c0_i32_0 : i32, i32, i32
  }
  func.func @transform_1(%arg0: i32) -> (i32, i32, i32) {
    %c0_i32 = arith.constant 0 : i32
    %c0_i32_0 = arith.constant 0 : i32
    %c0_i32_1 = arith.constant 0 : i32
    %c0_i32_2 = arith.constant 0 : i32
    return %c0_i32, %c0_i32_0, %c0_i32_1 : i32, i32, i32
  }
  func.func @transform_2(%arg0: i32) -> (i32, i32) {
    %c0_i32 = arith.constant 0 : i32
    %c0_i32_0 = arith.constant 0 : i32
    %c0_i32_1 = arith.constant 0 : i32
    return %c0_i32, %c0_i32_0 : i32, i32
  }
  func.func @transform_3(%arg0: i32) -> (i32, i32, i32) {
    %c0_i32 = arith.constant 0 : i32
    %c0_i32_0 = arith.constant 0 : i32
    %c0_i32_1 = arith.constant 0 : i32
    %c0_i32_2 = arith.constant 0 : i32
    return %c0_i32, %c0_i32_0, %c0_i32_1 : i32, i32, i32
  }
  func.func @transform_4(%arg0: i32) -> (i32, i32) {
    %c0_i32 = arith.constant 0 : i32
    %c0_i32_0 = arith.constant 0 : i32
    %c0_i32_1 = arith.constant 0 : i32
    return %c0_i32, %c0_i32_0 : i32, i32
  }
  func.func @transform_5(%arg0: i32) -> (i32, i32, i32) {
    %c0_i32 = arith.constant 0 : i32
    %c0_i32_0 = arith.constant 0 : i32
    %c0_i32_1 = arith.constant 0 : i32
    %c0_i32_2 = arith.constant 0 : i32
    return %c0_i32, %c0_i32_0, %c0_i32_1 : i32, i32, i32
  }
  func.func @transform_6(%arg0: i32) -> (i32, i32) {
    %c0_i32 = arith.constant 0 : i32
    %c0_i32_0 = arith.constant 0 : i32
    %c0_i32_1 = arith.constant 0 : i32
    return %c0_i32, %c0_i32_0 : i32, i32
  }
  func.func @transform_7(%arg0: i32) -> (i32, i32) {
    %c0_i32 = arith.constant 0 : i32
    %c0_i32_0 = arith.constant 0 : i32
    %c0_i32_1 = arith.constant 0 : i32
    return %c0_i32, %c0_i32_0 : i32, i32
  }
  func.func @transform_8(%arg0: i32) -> (i32, i32) {
    %c0_i32 = arith.constant 0 : i32
    %c0_i32_0 = arith.constant 0 : i32
    %c0_i32_1 = arith.constant 0 : i32
    return %c0_i32, %c0_i32_0 : i32, i32
  }
  func.func @transform_9(%arg0: i32) -> (i32, i32) {
    %c0_i32 = arith.constant 0 : i32
    %c0_i32_0 = arith.constant 0 : i32
    %c0_i32_1 = arith.constant 0 : i32
    return %c0_i32, %c0_i32_0 : i32, i32
  }
  func.func @transform_10(%arg0: i32) -> (i32, i32, i32) {
    %c0_i32 = arith.constant 0 : i32
    %c0_i32_0 = arith.constant 0 : i32
    %c0_i32_1 = arith.constant 0 : i32
    return %arg0, %c0_i32, %c0_i32_0 : i32, i32, i32
  }
  func.func @transform_11(%arg0: i32) -> (i32, i32, i32) {
    %c0_i32 = arith.constant 0 : i32
    %c0_i32_0 = arith.constant 0 : i32
    %c0_i32_1 = arith.constant 0 : i32
    return %arg0, %c0_i32, %c0_i32_0 : i32, i32, i32
  }
}

</mosaic_0001>

<llo_original>
// kernel: _rdb_core.1
$region0: #{_rdb_core.1}
  #allocation0 [shape = 'u32[]', space=smem, size = 0x4, offset = 0x4, fixed_abs, tag = 'smem constant byte address 0x4 - core index']
  #allocation1 [shape = 'u32[144,128]{1,0:T(1,128)}', space=vmem, size = 0x12000, scoped, tag = 'internal scratch']
  #allocation2 [shape = 'f32[32,512]{1,0:T(8,128)}', space=vmem, size = 0x10000, scoped, tag = 'scratch operand']
  %s0 = inlined_call_operand.vmem [shape: f32[2,8,288], index: 0, kind: input, shape index: {}]
  %s1 = inlined_call_operand.vmem [shape: f32[9,8,8], index: 1, kind: input, shape index: {}]
  %s2 = inlined_call_operand.vmem [shape: f32[8,1], index: 2, kind: input, shape index: {}]
  %s3 = inlined_call_operand.vmem [shape: f32[9,8,16], index: 3, kind: input, shape index: {}]
  %s4 = inlined_call_operand.vmem [shape: f32[8,1], index: 4, kind: input, shape index: {}]
  %s5 = inlined_call_operand.vmem [shape: f32[9,8,24], index: 5, kind: input, shape index: {}]
  %s6 = inlined_call_operand.vmem [shape: f32[8,1], index: 6, kind: input, shape index: {}]
  %s7 = inlined_call_operand.vmem [shape: f32[8,32], index: 7, kind: input, shape index: {}]
  %s8 = inlined_call_operand.vmem [shape: f32[8,1], index: 8, kind: input, shape index: {}]
  %s9 = inlined_call_operand.vmem [shape: f32[1,288], index: 9, kind: input, shape index: {}]
  %s10 = inlined_call_operand.vmem [shape: f32[2,8,288], index: 10, kind: output, shape index: {0}]
  %s11 = inlined_call_operand.vmem [shape: f32[2,1,128], index: 11, kind: output, shape index: {1}]
  %12 = xla_tuple %s10, %s11
  %s13 = sld [smem:[#allocation0]]
  $region81: #{_rdb_core.1} parent=0
    _
  %s15 = ssub.s32 1, %s13
  %s16 = scalar_select 0, %s15, %s13
  loop: start=0, step=1, limit=4
  $region2: #{_rdb_core.1} parent=0 // loop_pre_header
    _
  $region3: #{_rdb_core.1} parent=0 // loop_header
    %s18 = sphi 0, %s22
    %p19 = scmp.ge.s32.totalorder %s18, 4
    %s28 = sphi 0, %s30
    %s31 = sphi 0, %s28
    %s32 = sphi 0, %s31
    %s48 = sphi 0, %s32
    %s52 = sphi 0, %s52
    %s54 = sphi 0, %s52
    %s55 = sphi 0, %s54
    %s69 = sphi 0, %s55
    %s73 = sphi 0, %s73
    %s75 = sphi 0, %s73
    %s76 = sphi 0, %s75
    %s90 = sphi 0, %s76
    %s94 = sphi 0, %s94
    %s96 = sphi 0, %s94
    %s97 = sphi 0, %s96
    %s111 = sphi 0, %s97
    %s115 = sphi 0, %s115
    %s117 = sphi 0, %s115
    %s118 = sphi 0, %s117
    %s132 = sphi 0, %s118
    %s136 = sphi 0, %s136
    %s138 = sphi 0, %s136
    %s139 = sphi 0, %s138
    %s153 = sphi 0, %s139
    %s157 = sphi 0, %s157
    %s159 = sphi 0, %s157
    %s160 = sphi 0, %s159
    %s174 = sphi 0, %s160
    %s178 = sphi 0, %s178
    %s180 = sphi 0, %s178
    %s181 = sphi 0, %s180
    %s195 = sphi 0, %s181
    %s199 = sphi 0, %s199
    %s201 = sphi 0, %s199
    %s202 = sphi 0, %s201
    %s216 = sphi 0, %s202
    %s220 = sphi 0, %s220
    %s222 = sphi 0, %s220
    %s223 = sphi 0, %s222
    %s237 = sphi 0, %s223
    %s243 = sphi 0, %s245
    %s246 = sphi 0, %s243
    %s247 = sphi 0, %s246
    %s263 = sphi 0, %s247
    %s269 = sphi 0, %s271
    %s272 = sphi 0, %s269
    %s273 = sphi 0, %s272
    %s289 = sphi 0, %s273
  $region4: #{_rdb_core.1} parent=0 // loop_header_branch
    %21 = sbr.rel (%p19) target = $region8
  $region5: #{_rdb_core.1} parent=0 // loop_body
    %s23 = ssub.s32 %s18, 1
    %s24 = ssub.s32 %s18, 2
    %s25 = sadd.s32 %s18, 1
    %s26 = ssub.s32 %s18, %s25
    %p27 = scmp.eq.s32.totalorder %s26, 0
    %s29 = sadd.s32 %s28, 1
    %s30 = scalar_select %p27, %s28, %s29
    %p33 = pneg %p27
    %p34 = scmp.eq.s32.totalorder %s18, 1
    %p35 = por %p33, %p34
    %p36 = scmp.ne.s32.totalorder %s28, %s31
    %p37 = scmp.eq.s32.totalorder %s18, 0
    %p38 = por %p36, %p37
    %p39 = scmp.ne.s32.totalorder %s28, %s31
    %p40 = scmp.eq.s32.totalorder %s23, 1
    %p41 = por %p39, %p40
    %p42 = scmp.ne.s32.totalorder %s31, %s32
    %p43 = scmp.eq.s32.totalorder %s23, 0
    %p44 = por %p42, %p43
    %p45 = scmp.ne.s32.totalorder %s31, %s32
    %p46 = scmp.eq.s32.totalorder %s24, 1
    %p47 = por %p45, %p46
    %p49 = scmp.ne.s32.totalorder %s32, %s48
    %p50 = scmp.eq.s32.totalorder %s24, 0
    %p51 = por %p49, %p50
    %s53 = sadd.s32 %s52, 1
    %p56 = scmp.eq.s32.totalorder %s18, 1
    %p57 = scmp.ne.s32.totalorder %s52, %s54
    %p58 = scmp.eq.s32.totalorder %s18, 0
    %p59 = por %p57, %p58
    %p60 = scmp.ne.s32.totalorder %s52, %s54
    %p61 = scmp.eq.s32.totalorder %s23, 1
    %p62 = por %p60, %p61
    %p63 = scmp.ne.s32.totalorder %s54, %s55
    %p64 = scmp.eq.s32.totalorder %s23, 0
    %p65 = por %p63, %p64
    %p66 = scmp.ne.s32.totalorder %s54, %s55
    %p67 = scmp.eq.s32.totalorder %s24, 1
    %p68 = por %p66, %p67
    %p70 = scmp.ne.s32.totalorder %s55, %s69
    %p71 = scmp.eq.s32.totalorder %s24, 0
    %p72 = por %p70, %p71
    %s74 = sadd.s32 %s73, 1
    %p77 = scmp.eq.s32.totalorder %s18, 1
    %p78 = scmp.ne.s32.totalorder %s73, %s75
    %p79 = scmp.eq.s32.totalorder %s18, 0
    %p80 = por %p78, %p79
    %p81 = scmp.ne.s32.totalorder %s73, %s75
    %p82 = scmp.eq.s32.totalorder %s23, 1
    %p83 = por %p81, %p82
    %p84 = scmp.ne.s32.totalorder %s75, %s76
    %p85 = scmp.eq.s32.totalorder %s23, 0
    %p86 = por %p84, %p85
    %p87 = scmp.ne.s32.totalorder %s75, %s76
    %p88 = scmp.eq.s32.totalorder %s24, 1
    %p89 = por %p87, %p88
    %p91 = scmp.ne.s32.totalorder %s76, %s90
    %p92 = scmp.eq.s32.totalorder %s24, 0
    %p93 = por %p91, %p92
    %s95 = sadd.s32 %s94, 1
    %p98 = scmp.eq.s32.totalorder %s18, 1
    %p99 = scmp.ne.s32.totalorder %s94, %s96
    %p100 = scmp.eq.s32.totalorder %s18, 0
    %p101 = por %p99, %p100
    %p102 = scmp.ne.s32.totalorder %s94, %s96
    %p103 = scmp.eq.s32.totalorder %s23, 1
    %p104 = por %p102, %p103
    %p105 = scmp.ne.s32.totalorder %s96, %s97
    %p106 = scmp.eq.s32.totalorder %s23, 0
    %p107 = por %p105, %p106
    %p108 = scmp.ne.s32.totalorder %s96, %s97
    %p109 = scmp.eq.s32.totalorder %s24, 1
    %p110 = por %p108, %p109
    %p112 = scmp.ne.s32.totalorder %s97, %s111
    %p113 = scmp.eq.s32.totalorder %s24, 0
    %p114 = por %p112, %p113
    %s116 = sadd.s32 %s115, 1
    %p119 = scmp.eq.s32.totalorder %s18, 1
    %p120 = scmp.ne.s32.totalorder %s115, %s117
    %p121 = scmp.eq.s32.totalorder %s18, 0
    %p122 = por %p120, %p121
    %p123 = scmp.ne.s32.totalorder %s115, %s117
    %p124 = scmp.eq.s32.totalorder %s23, 1
    %p125 = por %p123, %p124
    %p126 = scmp.ne.s32.totalorder %s117, %s118
    %p127 = scmp.eq.s32.totalorder %s23, 0
    %p128 = por %p126, %p127
    %p129 = scmp.ne.s32.totalorder %s117, %s118
    %p130 = scmp.eq.s32.totalorder %s24, 1
    %p131 = por %p129, %p130
    %p133 = scmp.ne.s32.totalorder %s118, %s132
    %p134 = scmp.eq.s32.totalorder %s24, 0
    %p135 = por %p133, %p134
    %s137 = sadd.s32 %s136, 1
    %p140 = scmp.eq.s32.totalorder %s18, 1
    %p141 = scmp.ne.s32.totalorder %s136, %s138
    %p142 = scmp.eq.s32.totalorder %s18, 0
    %p143 = por %p141, %p142
    %p144 = scmp.ne.s32.totalorder %s136, %s138
    %p145 = scmp.eq.s32.totalorder %s23, 1
    %p146 = por %p144, %p145
    %p147 = scmp.ne.s32.totalorder %s138, %s139
    %p148 = scmp.eq.s32.totalorder %s23, 0
    %p149 = por %p147, %p148
    %p150 = scmp.ne.s32.totalorder %s138, %s139
    %p151 = scmp.eq.s32.totalorder %s24, 1
    %p152 = por %p150, %p151
    %p154 = scmp.ne.s32.totalorder %s139, %s153
    %p155 = scmp.eq.s32.totalorder %s24, 0
    %p156 = por %p154, %p155
    %s158 = sadd.s32 %s157, 1
    %p161 = scmp.eq.s32.totalorder %s18, 1
    %p162 = scmp.ne.s32.totalorder %s157, %s159
    %p163 = scmp.eq.s32.totalorder %s18, 0
    %p164 = por %p162, %p163
    %p165 = scmp.ne.s32.totalorder %s157, %s159
    %p166 = scmp.eq.s32.totalorder %s23, 1
    %p167 = por %p165, %p166
    %p168 = scmp.ne.s32.totalorder %s159, %s160
    %p169 = scmp.eq.s32.totalorder %s23, 0
    %p170 = por %p168, %p169
    %p171 = scmp.ne.s32.totalorder %s159, %s160
    %p172 = scmp.eq.s32.totalorder %s24, 1
    %p173 = por %p171, %p172
    %p175 = scmp.ne.s32.totalorder %s160, %s174
    %p176 = scmp.eq.s32.totalorder %s24, 0
    %p177 = por %p175, %p176
    %s179 = sadd.s32 %s178, 1
    %p182 = scmp.eq.s32.totalorder %s18, 1
    %p183 = scmp.ne.s32.totalorder %s178, %s180
    %p184 = scmp.eq.s32.totalorder %s18, 0
    %p185 = por %p183, %p184
    %p186 = scmp.ne.s32.totalorder %s178, %s180
    %p187 = scmp.eq.s32.totalorder %s23, 1
    %p188 = por %p186, %p187
    %p189 = scmp.ne.s32.totalorder %s180, %s181
    %p190 = scmp.eq.s32.totalorder %s23, 0
    %p191 = por %p189, %p190
    %p192 = scmp.ne.s32.totalorder %s180, %s181
    %p193 = scmp.eq.s32.totalorder %s24, 1
    %p194 = por %p192, %p193
    %p196 = scmp.ne.s32.totalorder %s181, %s195
    %p197 = scmp.eq.s32.totalorder %s24, 0
    %p198 = por %p196, %p197
    %s200 = sadd.s32 %s199, 1
    %p203 = scmp.eq.s32.totalorder %s18, 1
    %p204 = scmp.ne.s32.totalorder %s199, %s201
    %p205 = scmp.eq.s32.totalorder %s18, 0
    %p206 = por %p204, %p205
    %p207 = scmp.ne.s32.totalorder %s199, %s201
    %p208 = scmp.eq.s32.totalorder %s23, 1
    %p209 = por %p207, %p208
    %p210 = scmp.ne.s32.totalorder %s201, %s202
    %p211 = scmp.eq.s32.totalorder %s23, 0
    %p212 = por %p210, %p211
    %p213 = scmp.ne.s32.totalorder %s201, %s202
    %p214 = scmp.eq.s32.totalorder %s24, 1
    %p215 = por %p213, %p214
    %p217 = scmp.ne.s32.totalorder %s202, %s216
    %p218 = scmp.eq.s32.totalorder %s24, 0
    %p219 = por %p217, %p218
    %s221 = sadd.s32 %s220, 1
    %p224 = scmp.eq.s32.totalorder %s18, 1
    %p225 = scmp.ne.s32.totalorder %s220, %s222
    %p226 = scmp.eq.s32.totalorder %s18, 0
    %p227 = por %p225, %p226
    %p228 = scmp.ne.s32.totalorder %s220, %s222
    %p229 = scmp.eq.s32.totalorder %s23, 1
    %p230 = por %p228, %p229
    %p231 = scmp.ne.s32.totalorder %s222, %s223
    %p232 = scmp.eq.s32.totalorder %s23, 0
    %p233 = por %p231, %p232
    %p234 = scmp.ne.s32.totalorder %s222, %s223
    %p235 = scmp.eq.s32.totalorder %s24, 1
    %p236 = por %p234, %p235
    %p238 = scmp.ne.s32.totalorder %s223, %s237
    %p239 = scmp.eq.s32.totalorder %s24, 0
    %p240 = por %p238, %p239
    %s241 = ssub.s32 %s18, %s25
    %p242 = scmp.eq.s32.totalorder %s241, 0
    %s244 = sadd.s32 %s243, 1
    %s245 = scalar_select %p242, %s243, %s244
    %p248 = pneg %p242
    %p249 = scmp.eq.s32.totalorder %s18, 1
    %p250 = por %p248, %p249
    %p251 = scmp.ne.s32.totalorder %s243, %s246
    %p252 = scmp.eq.s32.totalorder %s18, 0
    %p253 = por %p251, %p252
    %p254 = scmp.ne.s32.totalorder %s243, %s246
    %p255 = scmp.eq.s32.totalorder %s23, 1
    %p256 = por %p254, %p255
    %p257 = scmp.ne.s32.totalorder %s246, %s247
    %p258 = scmp.eq.s32.totalorder %s23, 0
    %p259 = por %p257, %p258
    %p260 = scmp.ne.s32.totalorder %s246, %s247
    %p261 = scmp.eq.s32.totalorder %s24, 1
    %p262 = por %p260, %p261
    %p264 = scmp.ne.s32.totalorder %s247, %s263
    %p265 = scmp.eq.s32.totalorder %s24, 0
    %p266 = por %p264, %p265
    %s267 = ssub.s32 %s18, %s25
    %p268 = scmp.eq.s32.totalorder %s267, 0
    %s270 = sadd.s32 %s269, 1
    %s271 = scalar_select %p268, %s269, %s270
    %p274 = pneg %p268
    %p275 = scmp.eq.s32.totalorder %s18, 1
    %p276 = por %p274, %p275
    %p277 = scmp.ne.s32.totalorder %s269, %s272
    %p278 = scmp.eq.s32.totalorder %s18, 0
    %p279 = por %p277, %p278
    %p280 = scmp.ne.s32.totalorder %s269, %s272
    %p281 = scmp.eq.s32.totalorder %s23, 1
    %p282 = por %p280, %p281
    %p283 = scmp.ne.s32.totalorder %s272, %s273
    %p284 = scmp.eq.s32.totalorder %s23, 0
    %p285 = por %p283, %p284
    %p286 = scmp.ne.s32.totalorder %s272, %s273
    %p287 = scmp.eq.s32.totalorder %s24, 1
    %p288 = por %p286, %p287
    %p290 = scmp.ne.s32.totalorder %s273, %s289
    %p291 = scmp.eq.s32.totalorder %s24, 0
    %p292 = por %p290, %p291
    %p293 = scmp.le.s32.totalorder 1, %s18
    %p294 = scmp.lt.s32.totalorder %s18, 3
    %p295 = pnand %p293, %p294
    %p296 = pneg %p295
    // Predicated region
    $region9: #{_rdb_core.1} parent=5 // pred_check
      _
    $region10: #{_rdb_core.1} parent=5 // pred_check_branch
      %298 = sbr.rel (%p295) target = $region12
    $region11: #{_rdb_core.1} parent=5 // pred_region
      %s299 = ssub.s32 %s18, 1
      // Predicated region
      $region13: #{_rdb_core.1} parent=11 // pred_check
        %p300 = pneg %p65
      $region14: #{_rdb_core.1} parent=11 // pred_check_branch
        %302 = sbr.rel (%p300) target = $region16
      $region15: #{_rdb_core.1} parent=11 // pred_region
        _
      $region16: #{_rdb_core.1} parent=11 // pred_fallthru
        _
      // Predicated region
      $region17: #{_rdb_core.1} parent=11 // pred_check
        %p303 = pneg %p86
      $region18: #{_rdb_core.1} parent=11 // pred_check_branch
        %305 = sbr.rel (%p303) target = $region20
      $region19: #{_rdb_core.1} parent=11 // pred_region
        _
      $region20: #{_rdb_core.1} parent=11 // pred_fallthru
        _
      // Predicated region
      $region21: #{_rdb_core.1} parent=11 // pred_check
        %p306 = pneg %p107
      $region22: #{_rdb_core.1} parent=11 // pred_check_branch
        %308 = sbr.rel (%p306) target = $region24
      $region23: #{_rdb_core.1} parent=11 // pred_region
        _
      $region24: #{_rdb_core.1} parent=11 // pred_fallthru
        _
      // Predicated region
      $region25: #{_rdb_core.1} parent=11 // pred_check
        %p309 = pneg %p128
      $region26: #{_rdb_core.1} parent=11 // pred_check_branch
        %311 = sbr.rel (%p309) target = $region28
      $region27: #{_rdb_core.1} parent=11 // pred_region
        _
      $region28: #{_rdb_core.1} parent=11 // pred_fallthru
        _
      // Predicated region
      $region29: #{_rdb_core.1} parent=11 // pred_check
        %p312 = pneg %p149
      $region30: #{_rdb_core.1} parent=11 // pred_check_branch
        %314 = sbr.rel (%p312) target = $region32
      $region31: #{_rdb_core.1} parent=11 // pred_region
        _
      $region32: #{_rdb_core.1} parent=11 // pred_fallthru
        _
      // Predicated region
      $region33: #{_rdb_core.1} parent=11 // pred_check
        %p315 = pneg %p170
      $region34: #{_rdb_core.1} parent=11 // pred_check_branch
        %317 = sbr.rel (%p315) target = $region36
      $region35: #{_rdb_core.1} parent=11 // pred_region
        _
      $region36: #{_rdb_core.1} parent=11 // pred_fallthru
        _
      // Predicated region
      $region37: #{_rdb_core.1} parent=11 // pred_check
        %p318 = pneg %p191
      $region38: #{_rdb_core.1} parent=11 // pred_check_branch
        %320 = sbr.rel (%p318) target = $region40
      $region39: #{_rdb_core.1} parent=11 // pred_region
        _
      $region40: #{_rdb_core.1} parent=11 // pred_fallthru
        _
      // Predicated region
      $region41: #{_rdb_core.1} parent=11 // pred_check
        %p321 = pneg %p212
      $region42: #{_rdb_core.1} parent=11 // pred_check_branch
        %323 = sbr.rel (%p321) target = $region44
      $region43: #{_rdb_core.1} parent=11 // pred_region
        _
      $region44: #{_rdb_core.1} parent=11 // pred_fallthru
        _
      // Predicated region
      $region45: #{_rdb_core.1} parent=11 // pred_check
        %p324 = pneg %p233
      $region46: #{_rdb_core.1} parent=11 // pred_check_branch
        %326 = sbr.rel (%p324) target = $region48
      $region47: #{_rdb_core.1} parent=11 // pred_region
        _
      $region48: #{_rdb_core.1} parent=11 // pred_fallthru
        _
    $region12: #{_rdb_core.1} parent=5 // pred_fallthru
      _
    %p327 = scmp.lt.s32.totalorder %s18, 2
    // Predicated region
    $region49: #{_rdb_core.1} parent=5 // pred_check
      %p328 = pneg %p327
    $region50: #{_rdb_core.1} parent=5 // pred_check_branch
      %330 = sbr.rel (%p328) target = $region52
    $region51: #{_rdb_core.1} parent=5 // pred_region
      // Predicated region
      $region53: #{_rdb_core.1} parent=51 // pred_check
        %p331 = pneg %p38
      $region54: #{_rdb_core.1} parent=51 // pred_check_branch
        %333 = sbr.rel (%p331) target = $region56
      $region55: #{_rdb_core.1} parent=51 // pred_region
        %p334 = scmp.lt.s32.totalorder %s18, 1
        %s335 = scalar_select %p334, %s18, 1
        %s336 = smul.addr %s335, 3
        %s337 = smul.addr %s336, 8
        %s338 = scalar_lea.vmem %s0, %s337
      $region56: #{_rdb_core.1} parent=51 // pred_fallthru
        _
    $region52: #{_rdb_core.1} parent=5 // pred_fallthru
      _
    %p339 = scmp.le.s32.totalorder 1, %s18
    %p340 = scmp.lt.s32.totalorder %s18, 3
    %p341 = pnand %p339, %p340
    %p342 = pneg %p341
    // Predicated region
    $region57: #{_rdb_core.1} parent=5 // pred_check
      _
    $region58: #{_rdb_core.1} parent=5 // pred_check_branch
      %344 = sbr.rel (%p341) target = $region60
    $region59: #{_rdb_core.1} parent=5 // pred_region
      %s345 = ssub.s32 %s18, 1
      %p346 = scmp.lt.s32.totalorder %s23, 1
      %s347 = scalar_select %p346, %s23, 1
      %s348 = smul.addr %s347, 3
      %s349 = smul.addr %s348, 8
      %s350 = scalar_lea.vmem %s0, %s349
      %p351 = pneg %p44
      %p352 = pneg %p41
      %p353 = pneg %p65
      %p354 = pneg %p62
      %p355 = pneg %p86
      %p356 = pneg %p83
      %p357 = pneg %p107
      %p358 = pneg %p104
      %p359 = pneg %p128
      %p360 = pneg %p125
      %p361 = pneg %p149
      %p362 = pneg %p146
      %p363 = pneg %p170
      %p364 = pneg %p167
      %p365 = pneg %p191
      %p366 = pneg %p188
      %p367 = pneg %p212
      %p368 = pneg %p209
      %p369 = pneg %p233
      %p370 = pneg %p230
      %p371 = pneg %p259
      %p372 = pneg %p256
      %p373 = scmp.lt.s32.totalorder %s23, 1
      %s374 = scalar_select %p373, %s23, 1
      %s375 = smul.addr %s374, 3
      %s376 = smul.addr %s375, 8
      %s377 = scalar_lea.vmem %s10, %s376
      %p378 = pneg %p285
      %p379 = pneg %p282
      %p380 = scmp.lt.s32.totalorder %s23, 1
      %s381 = scalar_select %p380, %s23, 1
      %s382 = scalar_lea.vmem %s11, %s381
      %p383 = scmp.lt.s32.totalorder %s23, 1
      %s384 = scalar_select %p383, %s23, 1
      %s385 = smul.addr %s384, 3
      %s386 = smul.addr %s385, 8
      %s387 = scalar_lea.vmem %s0, %s386
      %p388 = scmp.lt.s32.totalorder %s23, 1
      %s389 = scalar_select %p388, %s23, 1
      %s390 = smul.addr %s389, 3
      %s391 = smul.addr %s390, 8
      %s392 = scalar_lea.vmem %s10, %s391
      %p393 = scmp.lt.s32.totalorder %s23, 1
      %s394 = scalar_select %p393, %s23, 1
      %s395 = scalar_lea.vmem %s11, %s394
      %v396 = vld [vmem:[%s9] sm:$0x7]
      %vm397 = vcmask 1048424
      %398 = vst.msk [vmem:[#allocation2] sm:$0xff] %vm397, 0.0
      %399 = vst.msk [vmem:[#allocation2 + $0x20] sm:$0xff] %vm397, 0.0
      %400 = vst.msk [vmem:[#allocation2 + $0x40] sm:$0xff] %vm397, 0.0
      %401 = vst.msk [vmem:[#allocation2 + $0x60] sm:$0xff] %vm397, 0.0
      %vm402 = vcmask 417024
      %403 = vst.msk [vmem:[#allocation2 + $0x18] sm:$0xff] %vm402, 0.0
      %404 = vst.msk [vmem:[#allocation2 + $0x38] sm:$0xff] %vm402, 0.0
      %405 = vst.msk [vmem:[#allocation2 + $0x58] sm:$0xff] %vm402, 0.0
      %406 = vst.msk [vmem:[#allocation2 + $0x78] sm:$0xff] %vm402, 0.0
      %v407 = vld [vmem:[%s387] sm:$0xff]
      %v408 = vld [vmem:[%s387 + $0x8] sm:$0xff]
      %v409 = vld [vmem:[%s387 + $0x10] sm:$0xff]
      %410 = vst [vmem:[#allocation2 + $0x8] sm:$0xff] %v407
      %411 = vst [vmem:[#allocation2 + $0x10] sm:$0xff] %v408
      %vm412 = vcmask 261120
      %413 = vst.msk [vmem:[#allocation2 + $0x18] sm:$0xff] %vm412, %v409
      %v414 = vld [vmem:[#allocation2] sm:$0xff]
      %v415 = vld [vmem:[#allocation2 + $0x8] sm:$0xff]
      %v416 = vld [vmem:[#allocation2 + $0x10] sm:$0xff]
      %v417 = vld [vmem:[#allocation2 + $0x18] sm:$0xff]
      %v418 = vld [vmem:[%s1] sm:$0xff]
      %s419 = scalar_lea.vmem %s1, 8
      %v420 = vld [vmem:[%s419] sm:$0xff]
      %425 = vrot.lane.b32.xlu0 %v414, 18
      %v426 = vpop.permute.xlu0 %425
      %427 = vrot.lane.b32.xlu0 %v415, 18
      %v428 = vpop.permute.xlu0 %427
      %429 = vrot.lane.b32.xlu0 %v416, 18
      %v430 = vpop.permute.xlu0 %429
      %431 = vrot.lane.b32.xlu0 %v417, 18
      %v432 = vpop.permute.xlu0 %431
      %vm433 = vcmask 146432
      %v434 = vsel %vm433, %v426, %v428
      %v435 = vsel %vm433, %v428, %v430
      %v436 = vsel %vm433, %v430, %v432
      %vm440 = vcmask 64512
      %v442 = vsel %vm440, %v420, 0
      %444 = vmatprep.subr.mxu0 0.0
      %445 = vmatpush1.msra.mxu0 0.0
      %446 = vmatprep.subr.mxu0 0.0
      %447 = vmatpush1.msra.mxu0 0.0
      %448 = vmatprep.subr.mxu0 0.0
      %449 = vmatpush1.msra.mxu0 0.0
      %450 = vmatprep.subr.mxu0 0.0
      %451 = vmatpush1.msra.mxu0 0.0
      %452 = vmatprep.subr.mxu0 0.0
      %453 = vmatpush1.msra.mxu0 0.0
      %454 = vmatprep.subr.mxu0 0.0
      %455 = vmatpush1.msra.mxu0 0.0
      %456 = vmatprep.subr.mxu0 0.0
      %457 = vmatpush1.msra.mxu0 0.0
      %458 = vmatprep.subr.mxu0 0.0
      %459 = vmatpush1.msra.mxu0 0.0
      %460 = vmatprep.subr.mxu0 0.0
      %461 = vmatpush1.msra.mxu0 0.0
      %462 = vmatprep.subr.mxu0 0.0
      %463 = vmatpush1.msra.mxu0 0.0
      %464 = vmatprep.subr.mxu0 0.0
      %465 = vmatpush1.msra.mxu0 0.0
      %466 = vmatprep.subr.mxu0 0.0
      %467 = vmatpush1.msra.mxu0 0.0
      %468 = vmatprep.subr.mxu0 0.0
      %469 = vmatpush1.msra.mxu0 0.0
      %470 = vmatprep.subr.mxu0 0.0
      %471 = vmatpush1.msra.mxu0 0.0
      %472 = vmatprep.subr.mxu0 0.0
      %473 = vmatpush1.msra.mxu0 0.0
      %474 = vmatprep.subr.mxu0 %v435
      %475 = vmatpush1.msra.mxu0 %v434
      %476 = vmatprep.subr.mxu0 0.0
      %477 = vmatpush2.msra.mxu0 0.0
      %478 = vmatprep.subr.mxu0 0.0
      %479 = vmatpush2.msra.mxu0 0.0
      %480 = vmatprep.subr.mxu0 0.0
      %481 = vmatpush2.msra.mxu0 0.0
      %482 = vmatprep.subr.mxu0 0.0
      %483 = vmatpush2.msra.mxu0 0.0
      %484 = vmatprep.subr.mxu0 0.0
      %485 = vmatpush2.msra.mxu0 0.0
      %486 = vmatprep.subr.mxu0 0.0
      %487 = vmatpush2.msra.mxu0 0.0
      %488 = vmatprep.subr.mxu0 0.0
      %489 = vmatpush2.msra.mxu0 0.0
      %490 = vmatprep.subr.mxu0 0.0
      %491 = vmatpush2.msra.mxu0 0.0
      %492 = vmatprep.subr.mxu0 0.0
      %493 = vmatpush2.msra.mxu0 0.0
      %494 = vmatprep.subr.mxu0 0.0
      %495 = vmatpush2.msra.mxu0 0.0
      %496 = vmatprep.subr.mxu0 0.0
      %497 = vmatpush2.msra.mxu0 0.0
      %498 = vmatprep.subr.mxu0 0.0
      %499 = vmatpush2.msra.mxu0 0.0
      %500 = vmatprep.subr.mxu0 0.0
      %501 = vmatpush2.msra.mxu0 0.0
      %502 = vmatprep.subr.mxu0 0.0
      %503 = vmatpush2.msra.mxu0 0.0
      %504 = vmatprep.subr.mxu0 0.0
      %505 = vmatpush2.msra.mxu0 0.0
      %506 = vmatprep.subr.mxu0 0.0
      %507 = vmatpush2.msra.mxu0 0.0
      %508 = vmatprep.mubr.f32.mxu0 0.0
      %509 = vmatmul.mubr.f32.gmra.mxu0 %v442
      %v510 = vpop.f32.mrf.mxu0
      %v511 = vadd.f32 0.0, %v510
      %v512 = vpop.f32.mrf.mxu0
      %v513 = vadd.f32 0.0, %v512
      %514 = vdwg.mxu0
      %515 = vmatprep.subr.mxu0 0.0
      %516 = vmatpush1.msra.mxu0 0.0
      %517 = vmatprep.subr.mxu0 0.0
      %518 = vmatpush1.msra.mxu0 0.0
      %519 = vmatprep.subr.mxu0 0.0
      %520 = vmatpush1.msra.mxu0 0.0
      %521 = vmatprep.subr.mxu0 0.0
      %522 = vmatpush1.msra.mxu0 0.0
      %523 = vmatprep.subr.mxu0 0.0
      %524 = vmatpush1.msra.mxu0 0.0
      %525 = vmatprep.subr.mxu0 0.0
      %526 = vmatpush1.msra.mxu0 0.0
      %527 = vmatprep.subr.mxu0 0.0
      %528 = vmatpush1.msra.mxu0 0.0
      %529 = vmatprep.subr.mxu0 0.0
      %530 = vmatpush1.msra.mxu0 0.0
      %531 = vmatprep.subr.mxu0 0.0
      %532 = vmatpush1.msra.mxu0 0.0
      %533 = vmatprep.subr.mxu0 0.0
      %534 = vmatpush1.msra.mxu0 0.0
      %535 = vmatprep.subr.mxu0 0.0
      %536 = vmatpush1.msra.mxu0 0.0
      %537 = vmatprep.subr.mxu0 0.0
      %538 = vmatpush1.msra.mxu0 0.0
      %539 = vmatprep.subr.mxu0 0.0
      %540 = vmatpush1.msra.mxu0 0.0
      %541 = vmatprep.subr.mxu0 0.0
      %542 = vmatpush1.msra.mxu0 0.0
      %543 = vmatprep.subr.mxu0 0.0
      %544 = vmatpush1.msra.mxu0 0.0
      %545 = vmatprep.subr.mxu0 0.0
      %546 = vmatpush1.msra.mxu0 %v436
      %547 = vmatprep.subr.mxu0 0.0
      %548 = vmatpush2.msra.mxu0 0.0
      %549 = vmatprep.subr.mxu0 0.0
      %550 = vmatpush2.msra.mxu0 0.0
      %551 = vmatprep.subr.mxu0 0.0
      %552 = vmatpush2.msra.mxu0 0.0
      %553 = vmatprep.subr.mxu0 0.0
      %554 = vmatpush2.msra.mxu0 0.0
      %555 = vmatprep.subr.mxu0 0.0
      %556 = vmatpush2.msra.mxu0 0.0
      %557 = vmatprep.subr.mxu0 0.0
      %558 = vmatpush2.msra.mxu0 0.0
      %559 = vmatprep.subr.mxu0 0.0
      %560 = vmatpush2.msra.mxu0 0.0
      %561 = vmatprep.subr.mxu0 0.0
      %562 = vmatpush2.msra.mxu0 0.0
      %563 = vmatprep.subr.mxu0 0.0
      %564 = vmatpush2.msra.mxu0 0.0
      %565 = vmatprep.subr.mxu0 0.0
      %566 = vmatpush2.msra.mxu0 0.0
      %567 = vmatprep.subr.mxu0 0.0
      %568 = vmatpush2.msra.mxu0 0.0
      %569 = vmatprep.subr.mxu0 0.0
      %570 = vmatpush2.msra.mxu0 0.0
      %571 = vmatprep.subr.mxu0 0.0
      %572 = vmatpush2.msra.mxu0 0.0
      %573 = vmatprep.subr.mxu0 0.0
      %574 = vmatpush2.msra.mxu0 0.0
      %575 = vmatprep.subr.mxu0 0.0
      %576 = vmatpush2.msra.mxu0 0.0
      %577 = vmatprep.subr.mxu0 0.0
      %578 = vmatpush2.msra.mxu0 0.0
      %579 = vmatprep.mubr.f32.mxu0 0.0
      %580 = vmatmul.mubr.f32.gmra.mxu0 %v442
      %v581 = vpop.f32.mrf.mxu0
      %v582 = vadd.f32 0.0, %v581
      %v583 = vpop.f32.mrf.mxu0
      %584 = vdwg.mxu0
      %585 = vrot.lane.b32.xlu0 %v414, 19
      %v586 = vpop.permute.xlu0 %585
      %587 = vrot.lane.b32.xlu0 %v415, 19
      %v588 = vpop.permute.xlu0 %587
      %589 = vrot.lane.b32.xlu0 %v416, 19
      %v590 = vpop.permute.xlu0 %589
      %591 = vrot.lane.b32.xlu0 %v417, 19
      %v592 = vpop.permute.xlu0 %591
      %vm593 = vcmask 154624
      %v594 = vsel %vm593, %v586, %v588
      %v595 = vsel %vm593, %v588, %v590
      %v596 = vsel %vm593, %v590, %v592
      %v601 = vsel %vm440, %v418, 0
      %603 = vmatprep.subr.mxu0 0.0
      %604 = vmatpush1.msra.mxu0 0.0
      %605 = vmatprep.subr.mxu0 0.0
      %606 = vmatpush1.msra.mxu0 0.0
      %607 = vmatprep.subr.mxu0 0.0
      %608 = vmatpush1.msra.mxu0 0.0
      %609 = vmatprep.subr.mxu0 0.0
      %610 = vmatpush1.msra.mxu0 0.0
      %611 = vmatprep.subr.mxu0 0.0
      %612 = vmatpush1.msra.mxu0 0.0
      %613 = vmatprep.subr.mxu0 0.0
      %614 = vmatpush1.msra.mxu0 0.0
      %615 = vmatprep.subr.mxu0 0.0
      %616 = vmatpush1.msra.mxu0 0.0
      %617 = vmatprep.subr.mxu0 0.0
      %618 = vmatpush1.msra.mxu0 0.0
      %619 = vmatprep.subr.mxu0 0.0
      %620 = vmatpush1.msra.mxu0 0.0
      %621 = vmatprep.subr.mxu0 0.0
      %622 = vmatpush1.msra.mxu0 0.0
      %623 = vmatprep.subr.mxu0 0.0
      %624 = vmatpush1.msra.mxu0 0.0
      %625 = vmatprep.subr.mxu0 0.0
      %626 = vmatpush1.msra.mxu0 0.0
      %627 = vmatprep.subr.mxu0 0.0
      %628 = vmatpush1.msra.mxu0 0.0
      %629 = vmatprep.subr.mxu0 0.0
      %630 = vmatpush1.msra.mxu0 0.0
      %631 = vmatprep.subr.mxu0 0.0
      %632 = vmatpush1.msra.mxu0 0.0
      %633 = vmatprep.subr.mxu0 %v595
      %634 = vmatpush1.msra.mxu0 %v594
      %635 = vmatprep.subr.mxu0 0.0
      %636 = vmatpush2.msra.mxu0 0.0
      %637 = vmatprep.subr.mxu0 0.0
      %638 = vmatpush2.msra.mxu0 0.0
      %639 = vmatprep.subr.mxu0 0.0
      %640 = vmatpush2.msra.mxu0 0.0
      %641 = vmatprep.subr.mxu0 0.0
      %642 = vmatpush2.msra.mxu0 0.0
      %643 = vmatprep.subr.mxu0 0.0
      %644 = vmatpush2.msra.mxu0 0.0
      %645 = vmatprep.subr.mxu0 0.0
      %646 = vmatpush2.msra.mxu0 0.0
      %647 = vmatprep.subr.mxu0 0.0
      %648 = vmatpush2.msra.mxu0 0.0
      %649 = vmatprep.subr.mxu0 0.0
      %650 = vmatpush2.msra.mxu0 0.0
      %651 = vmatprep.subr.mxu0 0.0
      %652 = vmatpush2.msra.mxu0 0.0
      %653 = vmatprep.subr.mxu0 0.0
      %654 = vmatpush2.msra.mxu0 0.0
      %655 = vmatprep.subr.mxu0 0.0
      %656 = vmatpush2.msra.mxu0 0.0
      %657 = vmatprep.subr.mxu0 0.0
      %658 = vmatpush2.msra.mxu0 0.0
      %659 = vmatprep.subr.mxu0 0.0
      %660 = vmatpush2.msra.mxu0 0.0
      %661 = vmatprep.subr.mxu0 0.0
      %662 = vmatpush2.msra.mxu0 0.0
      %663 = vmatprep.subr.mxu0 0.0
      %664 = vmatpush2.msra.mxu0 0.0
      %665 = vmatprep.subr.mxu0 0.0
      %666 = vmatpush2.msra.mxu0 0.0
      %667 = vmatprep.mubr.f32.mxu0 0.0
      %668 = vmatmul.mubr.f32.gmra.mxu0 %v601
      %v669 = vpop.f32.mrf.mxu0
      %v670 = vadd.f32 %v511, %v669
      %v671 = vpop.f32.mrf.mxu0
      %v672 = vadd.f32 %v513, %v671
      %673 = vdwg.mxu0
      %674 = vmatprep.subr.mxu0 0.0
      %675 = vmatpush1.msra.mxu0 0.0
      %676 = vmatprep.subr.mxu0 0.0
      %677 = vmatpush1.msra.mxu0 0.0
      %678 = vmatprep.subr.mxu0 0.0
      %679 = vmatpush1.msra.mxu0 0.0
      %680 = vmatprep.subr.mxu0 0.0
      %681 = vmatpush1.msra.mxu0 0.0
      %682 = vmatprep.subr.mxu0 0.0
      %683 = vmatpush1.msra.mxu0 0.0
      %684 = vmatprep.subr.mxu0 0.0
      %685 = vmatpush1.msra.mxu0 0.0
      %686 = vmatprep.subr.mxu0 0.0
      %687 = vmatpush1.msra.mxu0 0.0
      %688 = vmatprep.subr.mxu0 0.0
      %689 = vmatpush1.msra.mxu0 0.0
      %690 = vmatprep.subr.mxu0 0.0
      %691 = vmatpush1.msra.mxu0 0.0
      %692 = vmatprep.subr.mxu0 0.0
      %693 = vmatpush1.msra.mxu0 0.0
      %694 = vmatprep.subr.mxu0 0.0
      %695 = vmatpush1.msra.mxu0 0.0
      %696 = vmatprep.subr.mxu0 0.0
      %697 = vmatpush1.msra.mxu0 0.0
      %698 = vmatprep.subr.mxu0 0.0
      %699 = vmatpush1.msra.mxu0 0.0
      %700 = vmatprep.subr.mxu0 0.0
      %701 = vmatpush1.msra.mxu0 0.0
      %702 = vmatprep.subr.mxu0 0.0
      %703 = vmatpush1.msra.mxu0 0.0
      %704 = vmatprep.subr.mxu0 0.0
      %705 = vmatpush1.msra.mxu0 %v596
      %706 = vmatprep.subr.mxu0 0.0
      %707 = vmatpush2.msra.mxu0 0.0
      %708 = vmatprep.subr.mxu0 0.0
      %709 = vmatpush2.msra.mxu0 0.0
      %710 = vmatprep.subr.mxu0 0.0
      %711 = vmatpush2.msra.mxu0 0.0
      %712 = vmatprep.subr.mxu0 0.0
      %713 = vmatpush2.msra.mxu0 0.0
      %714 = vmatprep.subr.mxu0 0.0
      %715 = vmatpush2.msra.mxu0 0.0
      %716 = vmatprep.subr.mxu0 0.0
      %717 = vmatpush2.msra.mxu0 0.0
      %718 = vmatprep.subr.mxu0 0.0
      %719 = vmatpush2.msra.mxu0 0.0
      %720 = vmatprep.subr.mxu0 0.0
      %721 = vmatpush2.msra.mxu0 0.0
      %722 = vmatprep.subr.mxu0 0.0
      %723 = vmatpush2.msra.mxu0 0.0
      %724 = vmatprep.subr.mxu0 0.0
      %725 = vmatpush2.msra.mxu0 0.0
      %726 = vmatprep.subr.mxu0 0.0
      %727 = vmatpush2.msra.mxu0 0.0
      %728 = vmatprep.subr.mxu0 0.0
      %729 = vmatpush2.msra.mxu0 0.0
      %730 = vmatprep.subr.mxu0 0.0
      %731 = vmatpush2.msra.mxu0 0.0
      %732 = vmatprep.subr.mxu0 0.0
      %733 = vmatpush2.msra.mxu0 0.0
      %734 = vmatprep.subr.mxu0 0.0
      %735 = vmatpush2.msra.mxu0 0.0
      %736 = vmatprep.subr.mxu0 0.0
      %737 = vmatpush2.msra.mxu0 0.0
      %738 = vmatprep.mubr.f32.mxu0 0.0
      %739 = vmatmul.mubr.f32.gmra.mxu0 %v601
      %v740 = vpop.f32.mrf.mxu0
      %v741 = vadd.f32 %v582, %v740
      %v742 = vpop.f32.mrf.mxu0
      %743 = vdwg.mxu0
      %s744 = scalar_lea.vmem %s1, 16
      %v745 = vld [vmem:[%s744] sm:$0xff]
      %746 = vrot.lane.b32.xlu0 %v414, 17
      %v747 = vpop.permute.xlu0 %746
      %748 = vrot.lane.b32.xlu0 %v415, 17
      %v749 = vpop.permute.xlu0 %748
      %750 = vrot.lane.b32.xlu0 %v416, 17
      %v751 = vpop.permute.xlu0 %750
      %752 = vrot.lane.b32.xlu0 %v417, 17
      %v753 = vpop.permute.xlu0 %752
      %vm754 = vcmask 138240
      %v755 = vsel %vm754, %v747, %v749
      %v756 = vsel %vm754, %v749, %v751
      %v757 = vsel %vm754, %v751, %v753
      %v762 = vsel %vm440, %v745, 0
      %764 = vmatprep.subr.mxu0 0.0
      %765 = vmatpush1.msra.mxu0 0.0
      %766 = vmatprep.subr.mxu0 0.0
      %767 = vmatpush1.msra.mxu0 0.0
      %768 = vmatprep.subr.mxu0 0.0
      %769 = vmatpush1.msra.mxu0 0.0
      %770 = vmatprep.subr.mxu0 0.0
      %771 = vmatpush1.msra.mxu0 0.0
      %772 = vmatprep.subr.mxu0 0.0
      %773 = vmatpush1.msra.mxu0 0.0
      %774 = vmatprep.subr.mxu0 0.0
      %775 = vmatpush1.msra.mxu0 0.0
      %776 = vmatprep.subr.mxu0 0.0
      %777 = vmatpush1.msra.mxu0 0.0
      %778 = vmatprep.subr.mxu0 0.0
      %779 = vmatpush1.msra.mxu0 0.0
      %780 = vmatprep.subr.mxu0 0.0
      %781 = vmatpush1.msra.mxu0 0.0
      %782 = vmatprep.subr.mxu0 0.0
      %783 = vmatpush1.msra.mxu0 0.0
      %784 = vmatprep.subr.mxu0 0.0
      %785 = vmatpush1.msra.mxu0 0.0
      %786 = vmatprep.subr.mxu0 0.0
      %787 = vmatpush1.msra.mxu0 0.0
      %788 = vmatprep.subr.mxu0 0.0
      %789 = vmatpush1.msra.mxu0 0.0
      %790 = vmatprep.subr.mxu0 0.0
      %791 = vmatpush1.msra.mxu0 0.0
      %792 = vmatprep.subr.mxu0 0.0
      %793 = vmatpush1.msra.mxu0 0.0
      %794 = vmatprep.subr.mxu0 %v756
      %795 = vmatpush1.msra.mxu0 %v755
      %796 = vmatprep.subr.mxu0 0.0
      %797 = vmatpush2.msra.mxu0 0.0
      %798 = vmatprep.subr.mxu0 0.0
      %799 = vmatpush2.msra.mxu0 0.0
      %800 = vmatprep.subr.mxu0 0.0
      %801 = vmatpush2.msra.mxu0 0.0
      %802 = vmatprep.subr.mxu0 0.0
      %803 = vmatpush2.msra.mxu0 0.0
      %804 = vmatprep.subr.mxu0 0.0
      %805 = vmatpush2.msra.mxu0 0.0
      %806 = vmatprep.subr.mxu0 0.0
      %807 = vmatpush2.msra.mxu0 0.0
      %808 = vmatprep.subr.mxu0 0.0
      %809 = vmatpush2.msra.mxu0 0.0
      %810 = vmatprep.subr.mxu0 0.0
      %811 = vmatpush2.msra.mxu0 0.0
      %812 = vmatprep.subr.mxu0 0.0
      %813 = vmatpush2.msra.mxu0 0.0
      %814 = vmatprep.subr.mxu0 0.0
      %815 = vmatpush2.msra.mxu0 0.0
      %816 = vmatprep.subr.mxu0 0.0
      %817 = vmatpush2.msra.mxu0 0.0
      %818 = vmatprep.subr.mxu0 0.0
      %819 = vmatpush2.msra.mxu0 0.0
      %820 = vmatprep.subr.mxu0 0.0
      %821 = vmatpush2.msra.mxu0 0.0
      %822 = vmatprep.subr.mxu0 0.0
      %823 = vmatpush2.msra.mxu0 0.0
      %824 = vmatprep.subr.mxu0 0.0
      %825 = vmatpush2.msra.mxu0 0.0
      %826 = vmatprep.subr.mxu0 0.0
      %827 = vmatpush2.msra.mxu0 0.0
      %828 = vmatprep.mubr.f32.mxu0 0.0
      %829 = vmatmul.mubr.f32.gmra.mxu0 %v762
      %v830 = vpop.f32.mrf.mxu0
      %v831 = vadd.f32 0.0, %v830
      %v832 = vpop.f32.mrf.mxu0
      %v833 = vadd.f32 0.0, %v832
      %834 = vdwg.mxu0
      %835 = vmatprep.subr.mxu0 0.0
      %836 = vmatpush1.msra.mxu0 0.0
      %837 = vmatprep.subr.mxu0 0.0
      %838 = vmatpush1.msra.mxu0 0.0
      %839 = vmatprep.subr.mxu0 0.0
      %840 = vmatpush1.msra.mxu0 0.0
      %841 = vmatprep.subr.mxu0 0.0
      %842 = vmatpush1.msra.mxu0 0.0
      %843 = vmatprep.subr.mxu0 0.0
      %844 = vmatpush1.msra.mxu0 0.0
      %845 = vmatprep.subr.mxu0 0.0
      %846 = vmatpush1.msra.mxu0 0.0
      %847 = vmatprep.subr.mxu0 0.0
      %848 = vmatpush1.msra.mxu0 0.0
      %849 = vmatprep.subr.mxu0 0.0
      %850 = vmatpush1.msra.mxu0 0.0
      %851 = vmatprep.subr.mxu0 0.0
      %852 = vmatpush1.msra.mxu0 0.0
      %853 = vmatprep.subr.mxu0 0.0
      %854 = vmatpush1.msra.mxu0 0.0
      %855 = vmatprep.subr.mxu0 0.0
      %856 = vmatpush1.msra.mxu0 0.0
      %857 = vmatprep.subr.mxu0 0.0
      %858 = vmatpush1.msra.mxu0 0.0
      %859 = vmatprep.subr.mxu0 0.0
      %860 = vmatpush1.msra.mxu0 0.0
      %861 = vmatprep.subr.mxu0 0.0
      %862 = vmatpush1.msra.mxu0 0.0
      %863 = vmatprep.subr.mxu0 0.0
      %864 = vmatpush1.msra.mxu0 0.0
      %865 = vmatprep.subr.mxu0 0.0
      %866 = vmatpush1.msra.mxu0 %v757
      %867 = vmatprep.subr.mxu0 0.0
      %868 = vmatpush2.msra.mxu0 0.0
      %869 = vmatprep.subr.mxu0 0.0
      %870 = vmatpush2.msra.mxu0 0.0
      %871 = vmatprep.subr.mxu0 0.0
      %872 = vmatpush2.msra.mxu0 0.0
      %873 = vmatprep.subr.mxu0 0.0
      %874 = vmatpush2.msra.mxu0 0.0
      %875 = vmatprep.subr.mxu0 0.0
      %876 = vmatpush2.msra.mxu0 0.0
      %877 = vmatprep.subr.mxu0 0.0
      %878 = vmatpush2.msra.mxu0 0.0
      %879 = vmatprep.subr.mxu0 0.0
      %880 = vmatpush2.msra.mxu0 0.0
      %881 = vmatprep.subr.mxu0 0.0
      %882 = vmatpush2.msra.mxu0 0.0
      %883 = vmatprep.subr.mxu0 0.0
      %884 = vmatpush2.msra.mxu0 0.0
      %885 = vmatprep.subr.mxu0 0.0
      %886 = vmatpush2.msra.mxu0 0.0
      %887 = vmatprep.subr.mxu0 0.0
      %888 = vmatpush2.msra.mxu0 0.0
      %889 = vmatprep.subr.mxu0 0.0
      %890 = vmatpush2.msra.mxu0 0.0
      %891 = vmatprep.subr.mxu0 0.0
      %892 = vmatpush2.msra.mxu0 0.0
      %893 = vmatprep.subr.mxu0 0.0
      %894 = vmatpush2.msra.mxu0 0.0
      %895 = vmatprep.subr.mxu0 0.0
      %896 = vmatpush2.msra.mxu0 0.0
      %897 = vmatprep.subr.mxu0 0.0
      %898 = vmatpush2.msra.mxu0 0.0
      %899 = vmatprep.mubr.f32.mxu0 0.0
      %900 = vmatmul.mubr.f32.gmra.mxu0 %v762
      %v901 = vpop.f32.mrf.mxu0
      %v902 = vadd.f32 0.0, %v901
      %v903 = vpop.f32.mrf.mxu0
      %904 = vdwg.mxu0
      %v905 = vadd.f32 %v670, %v831
      %v906 = vadd.f32 %v672, %v833
      %v907 = vadd.f32 %v741, %v902
      %s908 = scalar_lea.vmem %s1, 24
      %v909 = vld [vmem:[%s908] sm:$0xff]
      %910 = vrot.lane.b32.xlu0 %v414, 1
      %v911 = vpop.permute.xlu0 %910
      %912 = vrot.lane.b32.xlu0 %v415, 1
      %v913 = vpop.permute.xlu0 %912
      %914 = vrot.lane.b32.xlu0 %v416, 1
      %v915 = vpop.permute.xlu0 %914
      %916 = vrot.lane.b32.xlu0 %v417, 1
      %v917 = vpop.permute.xlu0 %916
      %vm918 = vcmask 7168
      %v919 = vsel %vm918, %v911, %v913
      %v920 = vsel %vm918, %v913, %v915
      %v921 = vsel %vm918, %v915, %v917
      %v926 = vsel %vm440, %v909, 0
      %928 = vmatprep.subr.mxu0 0.0
      %929 = vmatpush1.msra.mxu0 0.0
      %930 = vmatprep.subr.mxu0 0.0
      %931 = vmatpush1.msra.mxu0 0.0
      %932 = vmatprep.subr.mxu0 0.0
      %933 = vmatpush1.msra.mxu0 0.0
      %934 = vmatprep.subr.mxu0 0.0
      %935 = vmatpush1.msra.mxu0 0.0
      %936 = vmatprep.subr.mxu0 0.0
      %937 = vmatpush1.msra.mxu0 0.0
      %938 = vmatprep.subr.mxu0 0.0
      %939 = vmatpush1.msra.mxu0 0.0
      %940 = vmatprep.subr.mxu0 0.0
      %941 = vmatpush1.msra.mxu0 0.0
      %942 = vmatprep.subr.mxu0 0.0
      %943 = vmatpush1.msra.mxu0 0.0
      %944 = vmatprep.subr.mxu0 0.0
      %945 = vmatpush1.msra.mxu0 0.0
      %946 = vmatprep.subr.mxu0 0.0
      %947 = vmatpush1.msra.mxu0 0.0
      %948 = vmatprep.subr.mxu0 0.0
      %949 = vmatpush1.msra.mxu0 0.0
      %950 = vmatprep.subr.mxu0 0.0
      %951 = vmatpush1.msra.mxu0 0.0
      %952 = vmatprep.subr.mxu0 0.0
      %953 = vmatpush1.msra.mxu0 0.0
      %954 = vmatprep.subr.mxu0 0.0
      %955 = vmatpush1.msra.mxu0 0.0
      %956 = vmatprep.subr.mxu0 0.0
      %957 = vmatpush1.msra.mxu0 0.0
      %958 = vmatprep.subr.mxu0 %v920
      %959 = vmatpush1.msra.mxu0 %v919
      %960 = vmatprep.subr.mxu0 0.0
      %961 = vmatpush2.msra.mxu0 0.0
      %962 = vmatprep.subr.mxu0 0.0
      %963 = vmatpush2.msra.mxu0 0.0
      %964 = vmatprep.subr.mxu0 0.0
      %965 = vmatpush2.msra.mxu0 0.0
      %966 = vmatprep.subr.mxu0 0.0
      %967 = vmatpush2.msra.mxu0 0.0
      %968 = vmatprep.subr.mxu0 0.0
      %969 = vmatpush2.msra.mxu0 0.0
      %970 = vmatprep.subr.mxu0 0.0
      %971 = vmatpush2.msra.mxu0 0.0
      %972 = vmatprep.subr.mxu0 0.0
      %973 = vmatpush2.msra.mxu0 0.0
      %974 = vmatprep.subr.mxu0 0.0
      %975 = vmatpush2.msra.mxu0 0.0
      %976 = vmatprep.subr.mxu0 0.0
      %977 = vmatpush2.msra.mxu0 0.0
      %978 = vmatprep.subr.mxu0 0.0
      %979 = vmatpush2.msra.mxu0 0.0
      %980 = vmatprep.subr.mxu0 0.0
      %981 = vmatpush2.msra.mxu0 0.0
      %982 = vmatprep.subr.mxu0 0.0
      %983 = vmatpush2.msra.mxu0 0.0
      %984 = vmatprep.subr.mxu0 0.0
      %985 = vmatpush2.msra.mxu0 0.0
      %986 = vmatprep.subr.mxu0 0.0
      %987 = vmatpush2.msra.mxu0 0.0
      %988 = vmatprep.subr.mxu0 0.0
      %989 = vmatpush2.msra.mxu0 0.0
      %990 = vmatprep.subr.mxu0 0.0
      %991 = vmatpush2.msra.mxu0 0.0
      %992 = vmatprep.mubr.f32.mxu0 0.0
      %993 = vmatmul.mubr.f32.gmra.mxu0 %v926
      %v994 = vpop.f32.mrf.mxu0
      %v995 = vadd.f32 0.0, %v994
      %v996 = vpop.f32.mrf.mxu0
      %v997 = vadd.f32 0.0, %v996
      %998 = vdwg.mxu0
      %999 = vmatprep.subr.mxu0 0.0
      %1000 = vmatpush1.msra.mxu0 0.0
      %1001 = vmatprep.subr.mxu0 0.0
      %1002 = vmatpush1.msra.mxu0 0.0
      %1003 = vmatprep.subr.mxu0 0.0
      %1004 = vmatpush1.msra.mxu0 0.0
      %1005 = vmatprep.subr.mxu0 0.0
      %1006 = vmatpush1.msra.mxu0 0.0
      %1007 = vmatprep.subr.mxu0 0.0
      %1008 = vmatpush1.msra.mxu0 0.0
      %1009 = vmatprep.subr.mxu0 0.0
      %1010 = vmatpush1.msra.mxu0 0.0
      %1011 = vmatprep.subr.mxu0 0.0
      %1012 = vmatpush1.msra.mxu0 0.0
      %1013 = vmatprep.subr.mxu0 0.0
      %1014 = vmatpush1.msra.mxu0 0.0
      %1015 = vmatprep.subr.mxu0 0.0
      %1016 = vmatpush1.msra.mxu0 0.0
      %1017 = vmatprep.subr.mxu0 0.0
      %1018 = vmatpush1.msra.mxu0 0.0
      %1019 = vmatprep.subr.mxu0 0.0
      %1020 = vmatpush1.msra.mxu0 0.0
      %1021 = vmatprep.subr.mxu0 0.0
      %1022 = vmatpush1.msra.mxu0 0.0
      %1023 = vmatprep.subr.mxu0 0.0
      %1024 = vmatpush1.msra.mxu0 0.0
      %1025 = vmatprep.subr.mxu0 0.0
      %1026 = vmatpush1.msra.mxu0 0.0
      %1027 = vmatprep.subr.mxu0 0.0
      %1028 = vmatpush1.msra.mxu0 0.0
      %1029 = vmatprep.subr.mxu0 0.0
      %1030 = vmatpush1.msra.mxu0 %v921
      %1031 = vmatprep.subr.mxu0 0.0
      %1032 = vmatpush2.msra.mxu0 0.0
      %1033 = vmatprep.subr.mxu0 0.0
      %1034 = vmatpush2.msra.mxu0 0.0
      %1035 = vmatprep.subr.mxu0 0.0
      %1036 = vmatpush2.msra.mxu0 0.0
      %1037 = vmatprep.subr.mxu0 0.0
      %1038 = vmatpush2.msra.mxu0 0.0
      %1039 = vmatprep.subr.mxu0 0.0
      %1040 = vmatpush2.msra.mxu0 0.0
      %1041 = vmatprep.subr.mxu0 0.0
      %1042 = vmatpush2.msra.mxu0 0.0
      %1043 = vmatprep.subr.mxu0 0.0
      %1044 = vmatpush2.msra.mxu0 0.0
      %1045 = vmatprep.subr.mxu0 0.0
      %1046 = vmatpush2.msra.mxu0 0.0
      %1047 = vmatprep.subr.mxu0 0.0
      %1048 = vmatpush2.msra.mxu0 0.0
      %1049 = vmatprep.subr.mxu0 0.0
      %1050 = vmatpush2.msra.mxu0 0.0
      %1051 = vmatprep.subr.mxu0 0.0
      %1052 = vmatpush2.msra.mxu0 0.0
      %1053 = vmatprep.subr.mxu0 0.0
      %1054 = vmatpush2.msra.mxu0 0.0
      %1055 = vmatprep.subr.mxu0 0.0
      %1056 = vmatpush2.msra.mxu0 0.0
      %1057 = vmatprep.subr.mxu0 0.0
      %1058 = vmatpush2.msra.mxu0 0.0
      %1059 = vmatprep.subr.mxu0 0.0
      %1060 = vmatpush2.msra.mxu0 0.0
      %1061 = vmatprep.subr.mxu0 0.0
      %1062 = vmatpush2.msra.mxu0 0.0
      %1063 = vmatprep.mubr.f32.mxu0 0.0
      %1064 = vmatmul.mubr.f32.gmra.mxu0 %v926
      %v1065 = vpop.f32.mrf.mxu0
      %v1066 = vadd.f32 0.0, %v1065
      %v1067 = vpop.f32.mrf.mxu0
      %1068 = vdwg.mxu0
      %v1069 = vadd.f32 %v905, %v995
      %v1070 = vadd.f32 %v906, %v997
      %v1071 = vadd.f32 %v907, %v1066
      %s1072 = scalar_lea.vmem %s1, 32
      %v1073 = vld [vmem:[%s1072] sm:$0xff]
      %v1075 = vsel %vm440, %v1073, 0
      %1077 = vmatprep.subr.mxu0 0.0
      %1078 = vmatpush1.msra.mxu0 0.0
      %1079 = vmatprep.subr.mxu0 0.0
      %1080 = vmatpush1.msra.mxu0 0.0
      %1081 = vmatprep.subr.mxu0 0.0
      %1082 = vmatpush1.msra.mxu0 0.0
      %1083 = vmatprep.subr.mxu0 0.0
      %1084 = vmatpush1.msra.mxu0 0.0
      %1085 = vmatprep.subr.mxu0 0.0
      %1086 = vmatpush1.msra.mxu0 0.0
      %1087 = vmatprep.subr.mxu0 0.0
      %1088 = vmatpush1.msra.mxu0 0.0
      %1089 = vmatprep.subr.mxu0 0.0
      %1090 = vmatpush1.msra.mxu0 0.0
      %1091 = vmatprep.subr.mxu0 0.0
      %1092 = vmatpush1.msra.mxu0 0.0
      %1093 = vmatprep.subr.mxu0 0.0
      %1094 = vmatpush1.msra.mxu0 0.0
      %1095 = vmatprep.subr.mxu0 0.0
      %1096 = vmatpush1.msra.mxu0 0.0
      %1097 = vmatprep.subr.mxu0 0.0
      %1098 = vmatpush1.msra.mxu0 0.0
      %1099 = vmatprep.subr.mxu0 0.0
      %1100 = vmatpush1.msra.mxu0 0.0
      %1101 = vmatprep.subr.mxu0 0.0
      %1102 = vmatpush1.msra.mxu0 0.0
      %1103 = vmatprep.subr.mxu0 0.0
      %1104 = vmatpush1.msra.mxu0 0.0
      %1105 = vmatprep.subr.mxu0 0.0
      %1106 = vmatpush1.msra.mxu0 0.0
      %1107 = vmatprep.subr.mxu0 %v416
      %1108 = vmatpush1.msra.mxu0 %v415
      %1109 = vmatprep.subr.mxu0 0.0
      %1110 = vmatpush2.msra.mxu0 0.0
      %1111 = vmatprep.subr.mxu0 0.0
      %1112 = vmatpush2.msra.mxu0 0.0
      %1113 = vmatprep.subr.mxu0 0.0
      %1114 = vmatpush2.msra.mxu0 0.0
      %1115 = vmatprep.subr.mxu0 0.0
      %1116 = vmatpush2.msra.mxu0 0.0
      %1117 = vmatprep.subr.mxu0 0.0
      %1118 = vmatpush2.msra.mxu0 0.0
      %1119 = vmatprep.subr.mxu0 0.0
      %1120 = vmatpush2.msra.mxu0 0.0
      %1121 = vmatprep.subr.mxu0 0.0
      %1122 = vmatpush2.msra.mxu0 0.0
      %1123 = vmatprep.subr.mxu0 0.0
      %1124 = vmatpush2.msra.mxu0 0.0
      %1125 = vmatprep.subr.mxu0 0.0
      %1126 = vmatpush2.msra.mxu0 0.0
      %1127 = vmatprep.subr.mxu0 0.0
      %1128 = vmatpush2.msra.mxu0 0.0
      %1129 = vmatprep.subr.mxu0 0.0
      %1130 = vmatpush2.msra.mxu0 0.0
      %1131 = vmatprep.subr.mxu0 0.0
      %1132 = vmatpush2.msra.mxu0 0.0
      %1133 = vmatprep.subr.mxu0 0.0
      %1134 = vmatpush2.msra.mxu0 0.0
      %1135 = vmatprep.subr.mxu0 0.0
      %1136 = vmatpush2.msra.mxu0 0.0
      %1137 = vmatprep.subr.mxu0 0.0
      %1138 = vmatpush2.msra.mxu0 0.0
      %1139 = vmatprep.subr.mxu0 0.0
      %1140 = vmatpush2.msra.mxu0 0.0
      %1141 = vmatprep.mubr.f32.mxu0 0.0
      %1142 = vmatmul.mubr.f32.gmra.mxu0 %v1075
      %v1143 = vpop.f32.mrf.mxu0
      %v1144 = vadd.f32 0.0, %v1143
      %v1145 = vpop.f32.mrf.mxu0
      %v1146 = vadd.f32 0.0, %v1145
      %1147 = vdwg.mxu0
      %1148 = vmatprep.subr.mxu0 0.0
      %1149 = vmatpush1.msra.mxu0 0.0
      %1150 = vmatprep.subr.mxu0 0.0
      %1151 = vmatpush1.msra.mxu0 0.0
      %1152 = vmatprep.subr.mxu0 0.0
      %1153 = vmatpush1.msra.mxu0 0.0
      %1154 = vmatprep.subr.mxu0 0.0
      %1155 = vmatpush1.msra.mxu0 0.0
      %1156 = vmatprep.subr.mxu0 0.0
      %1157 = vmatpush1.msra.mxu0 0.0
      %1158 = vmatprep.subr.mxu0 0.0
      %1159 = vmatpush1.msra.mxu0 0.0
      %1160 = vmatprep.subr.mxu0 0.0
      %1161 = vmatpush1.msra.mxu0 0.0
      %1162 = vmatprep.subr.mxu0 0.0
      %1163 = vmatpush1.msra.mxu0 0.0
      %1164 = vmatprep.subr.mxu0 0.0
      %1165 = vmatpush1.msra.mxu0 0.0
      %1166 = vmatprep.subr.mxu0 0.0
      %1167 = vmatpush1.msra.mxu0 0.0
      %1168 = vmatprep.subr.mxu0 0.0
      %1169 = vmatpush1.msra.mxu0 0.0
      %1170 = vmatprep.subr.mxu0 0.0
      %1171 = vmatpush1.msra.mxu0 0.0
      %1172 = vmatprep.subr.mxu0 0.0
      %1173 = vmatpush1.msra.mxu0 0.0
      %1174 = vmatprep.subr.mxu0 0.0
      %1175 = vmatpush1.msra.mxu0 0.0
      %1176 = vmatprep.subr.mxu0 0.0
      %1177 = vmatpush1.msra.mxu0 0.0
      %1178 = vmatprep.subr.mxu0 0.0
      %1179 = vmatpush1.msra.mxu0 %v417
      %1180 = vmatprep.subr.mxu0 0.0
      %1181 = vmatpush2.msra.mxu0 0.0
      %1182 = vmatprep.subr.mxu0 0.0
      %1183 = vmatpush2.msra.mxu0 0.0
      %1184 = vmatprep.subr.mxu0 0.0
      %1185 = vmatpush2.msra.mxu0 0.0
      %1186 = vmatprep.subr.mxu0 0.0
      %1187 = vmatpush2.msra.mxu0 0.0
      %1188 = vmatprep.subr.mxu0 0.0
      %1189 = vmatpush2.msra.mxu0 0.0
      %1190 = vmatprep.subr.mxu0 0.0
      %1191 = vmatpush2.msra.mxu0 0.0
      %1192 = vmatprep.subr.mxu0 0.0
      %1193 = vmatpush2.msra.mxu0 0.0
      %1194 = vmatprep.subr.mxu0 0.0
      %1195 = vmatpush2.msra.mxu0 0.0
      %1196 = vmatprep.subr.mxu0 0.0
      %1197 = vmatpush2.msra.mxu0 0.0
      %1198 = vmatprep.subr.mxu0 0.0
      %1199 = vmatpush2.msra.mxu0 0.0
      %1200 = vmatprep.subr.mxu0 0.0
      %1201 = vmatpush2.msra.mxu0 0.0
      %1202 = vmatprep.subr.mxu0 0.0
      %1203 = vmatpush2.msra.mxu0 0.0
      %1204 = vmatprep.subr.mxu0 0.0
      %1205 = vmatpush2.msra.mxu0 0.0
      %1206 = vmatprep.subr.mxu0 0.0
      %1207 = vmatpush2.msra.mxu0 0.0
      %1208 = vmatprep.subr.mxu0 0.0
      %1209 = vmatpush2.msra.mxu0 0.0
      %1210 = vmatprep.subr.mxu0 0.0
      %1211 = vmatpush2.msra.mxu0 0.0
      %1212 = vmatprep.mubr.f32.mxu0 0.0
      %1213 = vmatmul.mubr.f32.gmra.mxu0 %v1075
      %v1214 = vpop.f32.mrf.mxu0
      %v1215 = vadd.f32 0.0, %v1214
      %v1216 = vpop.f32.mrf.mxu0
      %1217 = vdwg.mxu0
      %v1218 = vadd.f32 %v1069, %v1144
      %v1219 = vadd.f32 %v1070, %v1146
      %v1220 = vadd.f32 %v1071, %v1215
      %s1221 = scalar_lea.vmem %s1, 40
      %v1222 = vld [vmem:[%s1221] sm:$0xff]
      %1223 = vrot.lane.b32.xlu0 %v415, 127
      %v1224 = vpop.permute.xlu0 %1223
      %1225 = vrot.lane.b32.xlu0 %v416, 127
      %v1226 = vpop.permute.xlu0 %1225
      %1227 = vrot.lane.b32.xlu0 %v417, 127
      %v1228 = vpop.permute.xlu0 %1227
      %vm1229 = vcmask 1039360
      %v1230 = vsel %vm1229, %v1224, %v1226
      %v1231 = vsel %vm1229, %v1226, %v1228
      %v1236 = vsel %vm440, %v1222, 0
      %1238 = vmatprep.subr.mxu0 0.0
      %1239 = vmatpush1.msra.mxu0 0.0
      %1240 = vmatprep.subr.mxu0 0.0
      %1241 = vmatpush1.msra.mxu0 0.0
      %1242 = vmatprep.subr.mxu0 0.0
      %1243 = vmatpush1.msra.mxu0 0.0
      %1244 = vmatprep.subr.mxu0 0.0
      %1245 = vmatpush1.msra.mxu0 0.0
      %1246 = vmatprep.subr.mxu0 0.0
      %1247 = vmatpush1.msra.mxu0 0.0
      %1248 = vmatprep.subr.mxu0 0.0
      %1249 = vmatpush1.msra.mxu0 0.0
      %1250 = vmatprep.subr.mxu0 0.0
      %1251 = vmatpush1.msra.mxu0 0.0
      %1252 = vmatprep.subr.mxu0 0.0
      %1253 = vmatpush1.msra.mxu0 0.0
      %1254 = vmatprep.subr.mxu0 0.0
      %1255 = vmatpush1.msra.mxu0 0.0
      %1256 = vmatprep.subr.mxu0 0.0
      %1257 = vmatpush1.msra.mxu0 0.0
      %1258 = vmatprep.subr.mxu0 0.0
      %1259 = vmatpush1.msra.mxu0 0.0
      %1260 = vmatprep.subr.mxu0 0.0
      %1261 = vmatpush1.msra.mxu0 0.0
      %1262 = vmatprep.subr.mxu0 0.0
      %1263 = vmatpush1.msra.mxu0 0.0
      %1264 = vmatprep.subr.mxu0 0.0
      %1265 = vmatpush1.msra.mxu0 0.0
      %1266 = vmatprep.subr.mxu0 0.0
      %1267 = vmatpush1.msra.mxu0 0.0
      %1268 = vmatprep.subr.mxu0 %v1231
      %1269 = vmatpush1.msra.mxu0 %v1230
      %1270 = vmatprep.subr.mxu0 0.0
      %1271 = vmatpush2.msra.mxu0 0.0
      %1272 = vmatprep.subr.mxu0 0.0
      %1273 = vmatpush2.msra.mxu0 0.0
      %1274 = vmatprep.subr.mxu0 0.0
      %1275 = vmatpush2.msra.mxu0 0.0
      %1276 = vmatprep.subr.mxu0 0.0
      %1277 = vmatpush2.msra.mxu0 0.0
      %1278 = vmatprep.subr.mxu0 0.0
      %1279 = vmatpush2.msra.mxu0 0.0
      %1280 = vmatprep.subr.mxu0 0.0
      %1281 = vmatpush2.msra.mxu0 0.0
      %1282 = vmatprep.subr.mxu0 0.0
      %1283 = vmatpush2.msra.mxu0 0.0
      %1284 = vmatprep.subr.mxu0 0.0
      %1285 = vmatpush2.msra.mxu0 0.0
      %1286 = vmatprep.subr.mxu0 0.0
      %1287 = vmatpush2.msra.mxu0 0.0
      %1288 = vmatprep.subr.mxu0 0.0
      %1289 = vmatpush2.msra.mxu0 0.0
      %1290 = vmatprep.subr.mxu0 0.0
      %1291 = vmatpush2.msra.mxu0 0.0
      %1292 = vmatprep.subr.mxu0 0.0
      %1293 = vmatpush2.msra.mxu0 0.0
      %1294 = vmatprep.subr.mxu0 0.0
      %1295 = vmatpush2.msra.mxu0 0.0
      %1296 = vmatprep.subr.mxu0 0.0
      %1297 = vmatpush2.msra.mxu0 0.0
      %1298 = vmatprep.subr.mxu0 0.0
      %1299 = vmatpush2.msra.mxu0 0.0
      %1300 = vmatprep.subr.mxu0 0.0
      %1301 = vmatpush2.msra.mxu0 0.0
      %1302 = vmatprep.mubr.f32.mxu0 0.0
      %1303 = vmatmul.mubr.f32.gmra.mxu0 %v1236
      %v1304 = vpop.f32.mrf.mxu0
      %v1305 = vadd.f32 0.0, %v1304
      %v1306 = vpop.f32.mrf.mxu0
      %v1307 = vadd.f32 0.0, %v1306
      %1308 = vdwg.mxu0
      %1309 = vmatprep.subr.mxu0 0.0
      %1310 = vmatpush1.msra.mxu0 0.0
      %1311 = vmatprep.subr.mxu0 0.0
      %1312 = vmatpush1.msra.mxu0 0.0
      %1313 = vmatprep.subr.mxu0 0.0
      %1314 = vmatpush1.msra.mxu0 0.0
      %1315 = vmatprep.subr.mxu0 0.0
      %1316 = vmatpush1.msra.mxu0 0.0
      %1317 = vmatprep.subr.mxu0 0.0
      %1318 = vmatpush1.msra.mxu0 0.0
      %1319 = vmatprep.subr.mxu0 0.0
      %1320 = vmatpush1.msra.mxu0 0.0
      %1321 = vmatprep.subr.mxu0 0.0
      %1322 = vmatpush1.msra.mxu0 0.0
      %1323 = vmatprep.subr.mxu0 0.0
      %1324 = vmatpush1.msra.mxu0 0.0
      %1325 = vmatprep.subr.mxu0 0.0
      %1326 = vmatpush1.msra.mxu0 0.0
      %1327 = vmatprep.subr.mxu0 0.0
      %1328 = vmatpush1.msra.mxu0 0.0
      %1329 = vmatprep.subr.mxu0 0.0
      %1330 = vmatpush1.msra.mxu0 0.0
      %1331 = vmatprep.subr.mxu0 0.0
      %1332 = vmatpush1.msra.mxu0 0.0
      %1333 = vmatprep.subr.mxu0 0.0
      %1334 = vmatpush1.msra.mxu0 0.0
      %1335 = vmatprep.subr.mxu0 0.0
      %1336 = vmatpush1.msra.mxu0 0.0
      %1337 = vmatprep.subr.mxu0 0.0
      %1338 = vmatpush1.msra.mxu0 0.0
      %1339 = vmatprep.subr.mxu0 0.0
      %1340 = vmatpush1.msra.mxu0 %v1228
      %1341 = vmatprep.subr.mxu0 0.0
      %1342 = vmatpush2.msra.mxu0 0.0
      %1343 = vmatprep.subr.mxu0 0.0
      %1344 = vmatpush2.msra.mxu0 0.0
      %1345 = vmatprep.subr.mxu0 0.0
      %1346 = vmatpush2.msra.mxu0 0.0
      %1347 = vmatprep.subr.mxu0 0.0
      %1348 = vmatpush2.msra.mxu0 0.0
      %1349 = vmatprep.subr.mxu0 0.0
      %1350 = vmatpush2.msra.mxu0 0.0
      %1351 = vmatprep.subr.mxu0 0.0
      %1352 = vmatpush2.msra.mxu0 0.0
      %1353 = vmatprep.subr.mxu0 0.0
      %1354 = vmatpush2.msra.mxu0 0.0
      %1355 = vmatprep.subr.mxu0 0.0
      %1356 = vmatpush2.msra.mxu0 0.0
      %1357 = vmatprep.subr.mxu0 0.0
      %1358 = vmatpush2.msra.mxu0 0.0
      %1359 = vmatprep.subr.mxu0 0.0
      %1360 = vmatpush2.msra.mxu0 0.0
      %1361 = vmatprep.subr.mxu0 0.0
      %1362 = vmatpush2.msra.mxu0 0.0
      %1363 = vmatprep.subr.mxu0 0.0
      %1364 = vmatpush2.msra.mxu0 0.0
      %1365 = vmatprep.subr.mxu0 0.0
      %1366 = vmatpush2.msra.mxu0 0.0
      %1367 = vmatprep.subr.mxu0 0.0
      %1368 = vmatpush2.msra.mxu0 0.0
      %1369 = vmatprep.subr.mxu0 0.0
      %1370 = vmatpush2.msra.mxu0 0.0
      %1371 = vmatprep.subr.mxu0 0.0
      %1372 = vmatpush2.msra.mxu0 0.0
      %1373 = vmatprep.mubr.f32.mxu0 0.0
      %1374 = vmatmul.mubr.f32.gmra.mxu0 %v1236
      %v1375 = vpop.f32.mrf.mxu0
      %v1376 = vadd.f32 0.0, %v1375
      %v1377 = vpop.f32.mrf.mxu0
      %1378 = vdwg.mxu0
      %v1379 = vadd.f32 %v1218, %v1305
      %v1380 = vadd.f32 %v1219, %v1307
      %v1381 = vadd.f32 %v1220, %v1376
      %s1382 = scalar_lea.vmem %s1, 48
      %v1383 = vld [vmem:[%s1382] sm:$0xff]
      %1384 = vrot.lane.b32.xlu0 %v415, 111
      %v1385 = vpop.permute.xlu0 %1384
      %1386 = vrot.lane.b32.xlu0 %v416, 111
      %v1387 = vpop.permute.xlu0 %1386
      %1388 = vrot.lane.b32.xlu0 %v417, 111
      %v1389 = vpop.permute.xlu0 %1388
      %vm1390 = vcmask 908288
      %v1391 = vsel %vm1390, %v1385, %v1387
      %v1392 = vsel %vm1390, %v1387, %v1389
      %v1397 = vsel %vm440, %v1383, 0
      %1399 = vmatprep.subr.mxu0 0.0
      %1400 = vmatpush1.msra.mxu0 0.0
      %1401 = vmatprep.subr.mxu0 0.0
      %1402 = vmatpush1.msra.mxu0 0.0
      %1403 = vmatprep.subr.mxu0 0.0
      %1404 = vmatpush1.msra.mxu0 0.0
      %1405 = vmatprep.subr.mxu0 0.0
      %1406 = vmatpush1.msra.mxu0 0.0
      %1407 = vmatprep.subr.mxu0 0.0
      %1408 = vmatpush1.msra.mxu0 0.0
      %1409 = vmatprep.subr.mxu0 0.0
      %1410 = vmatpush1.msra.mxu0 0.0
      %1411 = vmatprep.subr.mxu0 0.0
      %1412 = vmatpush1.msra.mxu0 0.0
      %1413 = vmatprep.subr.mxu0 0.0
      %1414 = vmatpush1.msra.mxu0 0.0
      %1415 = vmatprep.subr.mxu0 0.0
      %1416 = vmatpush1.msra.mxu0 0.0
      %1417 = vmatprep.subr.mxu0 0.0
      %1418 = vmatpush1.msra.mxu0 0.0
      %1419 = vmatprep.subr.mxu0 0.0
      %1420 = vmatpush1.msra.mxu0 0.0
      %1421 = vmatprep.subr.mxu0 0.0
      %1422 = vmatpush1.msra.mxu0 0.0
      %1423 = vmatprep.subr.mxu0 0.0
      %1424 = vmatpush1.msra.mxu0 0.0
      %1425 = vmatprep.subr.mxu0 0.0
      %1426 = vmatpush1.msra.mxu0 0.0
      %1427 = vmatprep.subr.mxu0 0.0
      %1428 = vmatpush1.msra.mxu0 0.0
      %1429 = vmatprep.subr.mxu0 %v1392
      %1430 = vmatpush1.msra.mxu0 %v1391
      %1431 = vmatprep.subr.mxu0 0.0
      %1432 = vmatpush2.msra.mxu0 0.0
      %1433 = vmatprep.subr.mxu0 0.0
      %1434 = vmatpush2.msra.mxu0 0.0
      %1435 = vmatprep.subr.mxu0 0.0
      %1436 = vmatpush2.msra.mxu0 0.0
      %1437 = vmatprep.subr.mxu0 0.0
      %1438 = vmatpush2.msra.mxu0 0.0
      %1439 = vmatprep.subr.mxu0 0.0
      %1440 = vmatpush2.msra.mxu0 0.0
      %1441 = vmatprep.subr.mxu0 0.0
      %1442 = vmatpush2.msra.mxu0 0.0
      %1443 = vmatprep.subr.mxu0 0.0
      %1444 = vmatpush2.msra.mxu0 0.0
      %1445 = vmatprep.subr.mxu0 0.0
      %1446 = vmatpush2.msra.mxu0 0.0
      %1447 = vmatprep.subr.mxu0 0.0
      %1448 = vmatpush2.msra.mxu0 0.0
      %1449 = vmatprep.subr.mxu0 0.0
      %1450 = vmatpush2.msra.mxu0 0.0
      %1451 = vmatprep.subr.mxu0 0.0
      %1452 = vmatpush2.msra.mxu0 0.0
      %1453 = vmatprep.subr.mxu0 0.0
      %1454 = vmatpush2.msra.mxu0 0.0
      %1455 = vmatprep.subr.mxu0 0.0
      %1456 = vmatpush2.msra.mxu0 0.0
      %1457 = vmatprep.subr.mxu0 0.0
      %1458 = vmatpush2.msra.mxu0 0.0
      %1459 = vmatprep.subr.mxu0 0.0
      %1460 = vmatpush2.msra.mxu0 0.0
      %1461 = vmatprep.subr.mxu0 0.0
      %1462 = vmatpush2.msra.mxu0 0.0
      %1463 = vmatprep.mubr.f32.mxu0 0.0
      %1464 = vmatmul.mubr.f32.gmra.mxu0 %v1397
      %v1465 = vpop.f32.mrf.mxu0
      %v1466 = vadd.f32 0.0, %v1465
      %v1467 = vpop.f32.mrf.mxu0
      %v1468 = vadd.f32 0.0, %v1467
      %1469 = vdwg.mxu0
      %1470 = vmatprep.subr.mxu0 0.0
      %1471 = vmatpush1.msra.mxu0 0.0
      %1472 = vmatprep.subr.mxu0 0.0
      %1473 = vmatpush1.msra.mxu0 0.0
      %1474 = vmatprep.subr.mxu0 0.0
      %1475 = vmatpush1.msra.mxu0 0.0
      %1476 = vmatprep.subr.mxu0 0.0
      %1477 = vmatpush1.msra.mxu0 0.0
      %1478 = vmatprep.subr.mxu0 0.0
      %1479 = vmatpush1.msra.mxu0 0.0
      %1480 = vmatprep.subr.mxu0 0.0
      %1481 = vmatpush1.msra.mxu0 0.0
      %1482 = vmatprep.subr.mxu0 0.0
      %1483 = vmatpush1.msra.mxu0 0.0
      %1484 = vmatprep.subr.mxu0 0.0
      %1485 = vmatpush1.msra.mxu0 0.0
      %1486 = vmatprep.subr.mxu0 0.0
      %1487 = vmatpush1.msra.mxu0 0.0
      %1488 = vmatprep.subr.mxu0 0.0
      %1489 = vmatpush1.msra.mxu0 0.0
      %1490 = vmatprep.subr.mxu0 0.0
      %1491 = vmatpush1.msra.mxu0 0.0
      %1492 = vmatprep.subr.mxu0 0.0
      %1493 = vmatpush1.msra.mxu0 0.0
      %1494 = vmatprep.subr.mxu0 0.0
      %1495 = vmatpush1.msra.mxu0 0.0
      %1496 = vmatprep.subr.mxu0 0.0
      %1497 = vmatpush1.msra.mxu0 0.0
      %1498 = vmatprep.subr.mxu0 0.0
      %1499 = vmatpush1.msra.mxu0 0.0
      %1500 = vmatprep.subr.mxu0 0.0
      %1501 = vmatpush1.msra.mxu0 %v1389
      %1502 = vmatprep.subr.mxu0 0.0
      %1503 = vmatpush2.msra.mxu0 0.0
      %1504 = vmatprep.subr.mxu0 0.0
      %1505 = vmatpush2.msra.mxu0 0.0
      %1506 = vmatprep.subr.mxu0 0.0
      %1507 = vmatpush2.msra.mxu0 0.0
      %1508 = vmatprep.subr.mxu0 0.0
      %1509 = vmatpush2.msra.mxu0 0.0
      %1510 = vmatprep.subr.mxu0 0.0
      %1511 = vmatpush2.msra.mxu0 0.0
      %1512 = vmatprep.subr.mxu0 0.0
      %1513 = vmatpush2.msra.mxu0 0.0
      %1514 = vmatprep.subr.mxu0 0.0
      %1515 = vmatpush2.msra.mxu0 0.0
      %1516 = vmatprep.subr.mxu0 0.0
      %1517 = vmatpush2.msra.mxu0 0.0
      %1518 = vmatprep.subr.mxu0 0.0
      %1519 = vmatpush2.msra.mxu0 0.0
      %1520 = vmatprep.subr.mxu0 0.0
      %1521 = vmatpush2.msra.mxu0 0.0
      %1522 = vmatprep.subr.mxu0 0.0
      %1523 = vmatpush2.msra.mxu0 0.0
      %1524 = vmatprep.subr.mxu0 0.0
      %1525 = vmatpush2.msra.mxu0 0.0
      %1526 = vmatprep.subr.mxu0 0.0
      %1527 = vmatpush2.msra.mxu0 0.0
      %1528 = vmatprep.subr.mxu0 0.0
      %1529 = vmatpush2.msra.mxu0 0.0
      %1530 = vmatprep.subr.mxu0 0.0
      %1531 = vmatpush2.msra.mxu0 0.0
      %1532 = vmatprep.subr.mxu0 0.0
      %1533 = vmatpush2.msra.mxu0 0.0
      %1534 = vmatprep.mubr.f32.mxu0 0.0
      %1535 = vmatmul.mubr.f32.gmra.mxu0 %v1397
      %v1536 = vpop.f32.mrf.mxu0
      %v1537 = vadd.f32 0.0, %v1536
      %v1538 = vpop.f32.mrf.mxu0
      %1539 = vdwg.mxu0
      %v1540 = vadd.f32 %v1379, %v1466
      %v1541 = vadd.f32 %v1380, %v1468
      %v1542 = vadd.f32 %v1381, %v1537
      %s1543 = scalar_lea.vmem %s1, 56
      %v1544 = vld [vmem:[%s1543] sm:$0xff]
      %1545 = vrot.lane.b32.xlu0 %v415, 110
      %v1546 = vpop.permute.xlu0 %1545
      %1547 = vrot.lane.b32.xlu0 %v416, 110
      %v1548 = vpop.permute.xlu0 %1547
      %1549 = vrot.lane.b32.xlu0 %v417, 110
      %v1550 = vpop.permute.xlu0 %1549
      %vm1551 = vcmask 900096
      %v1552 = vsel %vm1551, %v1546, %v1548
      %v1553 = vsel %vm1551, %v1548, %v1550
      %v1558 = vsel %vm440, %v1544, 0
      %1560 = vmatprep.subr.mxu0 0.0
      %1561 = vmatpush1.msra.mxu0 0.0
      %1562 = vmatprep.subr.mxu0 0.0
      %1563 = vmatpush1.msra.mxu0 0.0
      %1564 = vmatprep.subr.mxu0 0.0
      %1565 = vmatpush1.msra.mxu0 0.0
      %1566 = vmatprep.subr.mxu0 0.0
      %1567 = vmatpush1.msra.mxu0 0.0
      %1568 = vmatprep.subr.mxu0 0.0
      %1569 = vmatpush1.msra.mxu0 0.0
      %1570 = vmatprep.subr.mxu0 0.0
      %1571 = vmatpush1.msra.mxu0 0.0
      %1572 = vmatprep.subr.mxu0 0.0
      %1573 = vmatpush1.msra.mxu0 0.0
      %1574 = vmatprep.subr.mxu0 0.0
      %1575 = vmatpush1.msra.mxu0 0.0
      %1576 = vmatprep.subr.mxu0 0.0
      %1577 = vmatpush1.msra.mxu0 0.0
      %1578 = vmatprep.subr.mxu0 0.0
      %1579 = vmatpush1.msra.mxu0 0.0
      %1580 = vmatprep.subr.mxu0 0.0
      %1581 = vmatpush1.msra.mxu0 0.0
      %1582 = vmatprep.subr.mxu0 0.0
      %1583 = vmatpush1.msra.mxu0 0.0
      %1584 = vmatprep.subr.mxu0 0.0
      %1585 = vmatpush1.msra.mxu0 0.0
      %1586 = vmatprep.subr.mxu0 0.0
      %1587 = vmatpush1.msra.mxu0 0.0
      %1588 = vmatprep.subr.mxu0 0.0
      %1589 = vmatpush1.msra.mxu0 0.0
      %1590 = vmatprep.subr.mxu0 %v1553
      %1591 = vmatpush1.msra.mxu0 %v1552
      %1592 = vmatprep.subr.mxu0 0.0
      %1593 = vmatpush2.msra.mxu0 0.0
      %1594 = vmatprep.subr.mxu0 0.0
      %1595 = vmatpush2.msra.mxu0 0.0
      %1596 = vmatprep.subr.mxu0 0.0
      %1597 = vmatpush2.msra.mxu0 0.0
      %1598 = vmatprep.subr.mxu0 0.0
      %1599 = vmatpush2.msra.mxu0 0.0
      %1600 = vmatprep.subr.mxu0 0.0
      %1601 = vmatpush2.msra.mxu0 0.0
      %1602 = vmatprep.subr.mxu0 0.0
      %1603 = vmatpush2.msra.mxu0 0.0
      %1604 = vmatprep.subr.mxu0 0.0
      %1605 = vmatpush2.msra.mxu0 0.0
      %1606 = vmatprep.subr.mxu0 0.0
      %1607 = vmatpush2.msra.mxu0 0.0
      %1608 = vmatprep.subr.mxu0 0.0
      %1609 = vmatpush2.msra.mxu0 0.0
      %1610 = vmatprep.subr.mxu0 0.0
      %1611 = vmatpush2.msra.mxu0 0.0
      %1612 = vmatprep.subr.mxu0 0.0
      %1613 = vmatpush2.msra.mxu0 0.0
      %1614 = vmatprep.subr.mxu0 0.0
      %1615 = vmatpush2.msra.mxu0 0.0
      %1616 = vmatprep.subr.mxu0 0.0
      %1617 = vmatpush2.msra.mxu0 0.0
      %1618 = vmatprep.subr.mxu0 0.0
      %1619 = vmatpush2.msra.mxu0 0.0
      %1620 = vmatprep.subr.mxu0 0.0
      %1621 = vmatpush2.msra.mxu0 0.0
      %1622 = vmatprep.subr.mxu0 0.0
      %1623 = vmatpush2.msra.mxu0 0.0
      %1624 = vmatprep.mubr.f32.mxu0 0.0
      %1625 = vmatmul.mubr.f32.gmra.mxu0 %v1558
      %v1626 = vpop.f32.mrf.mxu0
      %v1627 = vadd.f32 0.0, %v1626
      %v1628 = vpop.f32.mrf.mxu0
      %v1629 = vadd.f32 0.0, %v1628
      %1630 = vdwg.mxu0
      %1631 = vmatprep.subr.mxu0 0.0
      %1632 = vmatpush1.msra.mxu0 0.0
      %1633 = vmatprep.subr.mxu0 0.0
      %1634 = vmatpush1.msra.mxu0 0.0
      %1635 = vmatprep.subr.mxu0 0.0
      %1636 = vmatpush1.msra.mxu0 0.0
      %1637 = vmatprep.subr.mxu0 0.0
      %1638 = vmatpush1.msra.mxu0 0.0
      %1639 = vmatprep.subr.mxu0 0.0
      %1640 = vmatpush1.msra.mxu0 0.0
      %1641 = vmatprep.subr.mxu0 0.0
      %1642 = vmatpush1.msra.mxu0 0.0
      %1643 = vmatprep.subr.mxu0 0.0
      %1644 = vmatpush1.msra.mxu0 0.0
      %1645 = vmatprep.subr.mxu0 0.0
      %1646 = vmatpush1.msra.mxu0 0.0
      %1647 = vmatprep.subr.mxu0 0.0
      %1648 = vmatpush1.msra.mxu0 0.0
      %1649 = vmatprep.subr.mxu0 0.0
      %1650 = vmatpush1.msra.mxu0 0.0
      %1651 = vmatprep.subr.mxu0 0.0
      %1652 = vmatpush1.msra.mxu0 0.0
      %1653 = vmatprep.subr.mxu0 0.0
      %1654 = vmatpush1.msra.mxu0 0.0
      %1655 = vmatprep.subr.mxu0 0.0
      %1656 = vmatpush1.msra.mxu0 0.0
      %1657 = vmatprep.subr.mxu0 0.0
      %1658 = vmatpush1.msra.mxu0 0.0
      %1659 = vmatprep.subr.mxu0 0.0
      %1660 = vmatpush1.msra.mxu0 0.0
      %1661 = vmatprep.subr.mxu0 0.0
      %1662 = vmatpush1.msra.mxu0 %v1550
      %1663 = vmatprep.subr.mxu0 0.0
      %1664 = vmatpush2.msra.mxu0 0.0
      %1665 = vmatprep.subr.mxu0 0.0
      %1666 = vmatpush2.msra.mxu0 0.0
      %1667 = vmatprep.subr.mxu0 0.0
      %1668 = vmatpush2.msra.mxu0 0.0
      %1669 = vmatprep.subr.mxu0 0.0
      %1670 = vmatpush2.msra.mxu0 0.0
      %1671 = vmatprep.subr.mxu0 0.0
      %1672 = vmatpush2.msra.mxu0 0.0
      %1673 = vmatprep.subr.mxu0 0.0
      %1674 = vmatpush2.msra.mxu0 0.0
      %1675 = vmatprep.subr.mxu0 0.0
      %1676 = vmatpush2.msra.mxu0 0.0
      %1677 = vmatprep.subr.mxu0 0.0
      %1678 = vmatpush2.msra.mxu0 0.0
      %1679 = vmatprep.subr.mxu0 0.0
      %1680 = vmatpush2.msra.mxu0 0.0
      %1681 = vmatprep.subr.mxu0 0.0
      %1682 = vmatpush2.msra.mxu0 0.0
      %1683 = vmatprep.subr.mxu0 0.0
      %1684 = vmatpush2.msra.mxu0 0.0
      %1685 = vmatprep.subr.mxu0 0.0
      %1686 = vmatpush2.msra.mxu0 0.0
      %1687 = vmatprep.subr.mxu0 0.0
      %1688 = vmatpush2.msra.mxu0 0.0
      %1689 = vmatprep.subr.mxu0 0.0
      %1690 = vmatpush2.msra.mxu0 0.0
      %1691 = vmatprep.subr.mxu0 0.0
      %1692 = vmatpush2.msra.mxu0 0.0
      %1693 = vmatprep.subr.mxu0 0.0
      %1694 = vmatpush2.msra.mxu0 0.0
      %1695 = vmatprep.mubr.f32.mxu0 0.0
      %1696 = vmatmul.mubr.f32.gmra.mxu0 %v1558
      %v1697 = vpop.f32.mrf.mxu0
      %v1698 = vadd.f32 0.0, %v1697
      %v1699 = vpop.f32.mrf.mxu0
      %1700 = vdwg.mxu0
      %v1701 = vadd.f32 %v1540, %v1627
      %v1702 = vadd.f32 %v1541, %v1629
      %v1703 = vadd.f32 %v1542, %v1698
      %s1704 = scalar_lea.vmem %s1, 64
      %v1705 = vld [vmem:[%s1704] sm:$0xff]
      %1706 = vrot.lane.b32.xlu0 %v415, 109
      %v1707 = vpop.permute.xlu0 %1706
      %1708 = vrot.lane.b32.xlu0 %v416, 109
      %v1709 = vpop.permute.xlu0 %1708
      %1710 = vrot.lane.b32.xlu0 %v417, 109
      %v1711 = vpop.permute.xlu0 %1710
      %vm1712 = vcmask 891904
      %v1713 = vsel %vm1712, %v1707, %v1709
      %v1714 = vsel %vm1712, %v1709, %v1711
      %v1719 = vsel %vm440, %v1705, 0
      %1721 = vmatprep.subr.mxu0 0.0
      %1722 = vmatpush1.msra.mxu0 0.0
      %1723 = vmatprep.subr.mxu0 0.0
      %1724 = vmatpush1.msra.mxu0 0.0
      %1725 = vmatprep.subr.mxu0 0.0
      %1726 = vmatpush1.msra.mxu0 0.0
      %1727 = vmatprep.subr.mxu0 0.0
      %1728 = vmatpush1.msra.mxu0 0.0
      %1729 = vmatprep.subr.mxu0 0.0
      %1730 = vmatpush1.msra.mxu0 0.0
      %1731 = vmatprep.subr.mxu0 0.0
      %1732 = vmatpush1.msra.mxu0 0.0
      %1733 = vmatprep.subr.mxu0 0.0
      %1734 = vmatpush1.msra.mxu0 0.0
      %1735 = vmatprep.subr.mxu0 0.0
      %1736 = vmatpush1.msra.mxu0 0.0
      %1737 = vmatprep.subr.mxu0 0.0
      %1738 = vmatpush1.msra.mxu0 0.0
      %1739 = vmatprep.subr.mxu0 0.0
      %1740 = vmatpush1.msra.mxu0 0.0
      %1741 = vmatprep.subr.mxu0 0.0
      %1742 = vmatpush1.msra.mxu0 0.0
      %1743 = vmatprep.subr.mxu0 0.0
      %1744 = vmatpush1.msra.mxu0 0.0
      %1745 = vmatprep.subr.mxu0 0.0
      %1746 = vmatpush1.msra.mxu0 0.0
      %1747 = vmatprep.subr.mxu0 0.0
      %1748 = vmatpush1.msra.mxu0 0.0
      %1749 = vmatprep.subr.mxu0 0.0
      %1750 = vmatpush1.msra.mxu0 0.0
      %1751 = vmatprep.subr.mxu0 %v1714
      %1752 = vmatpush1.msra.mxu0 %v1713
      %1753 = vmatprep.subr.mxu0 0.0
      %1754 = vmatpush2.msra.mxu0 0.0
      %1755 = vmatprep.subr.mxu0 0.0
      %1756 = vmatpush2.msra.mxu0 0.0
      %1757 = vmatprep.subr.mxu0 0.0
      %1758 = vmatpush2.msra.mxu0 0.0
      %1759 = vmatprep.subr.mxu0 0.0
      %1760 = vmatpush2.msra.mxu0 0.0
      %1761 = vmatprep.subr.mxu0 0.0
      %1762 = vmatpush2.msra.mxu0 0.0
      %1763 = vmatprep.subr.mxu0 0.0
      %1764 = vmatpush2.msra.mxu0 0.0
      %1765 = vmatprep.subr.mxu0 0.0
      %1766 = vmatpush2.msra.mxu0 0.0
      %1767 = vmatprep.subr.mxu0 0.0
      %1768 = vmatpush2.msra.mxu0 0.0
      %1769 = vmatprep.subr.mxu0 0.0
      %1770 = vmatpush2.msra.mxu0 0.0
      %1771 = vmatprep.subr.mxu0 0.0
      %1772 = vmatpush2.msra.mxu0 0.0
      %1773 = vmatprep.subr.mxu0 0.0
      %1774 = vmatpush2.msra.mxu0 0.0
      %1775 = vmatprep.subr.mxu0 0.0
      %1776 = vmatpush2.msra.mxu0 0.0
      %1777 = vmatprep.subr.mxu0 0.0
      %1778 = vmatpush2.msra.mxu0 0.0
      %1779 = vmatprep.subr.mxu0 0.0
      %1780 = vmatpush2.msra.mxu0 0.0
      %1781 = vmatprep.subr.mxu0 0.0
      %1782 = vmatpush2.msra.mxu0 0.0
      %1783 = vmatprep.subr.mxu0 0.0
      %1784 = vmatpush2.msra.mxu0 0.0
      %1785 = vmatprep.mubr.f32.mxu0 0.0
      %1786 = vmatmul.mubr.f32.gmra.mxu0 %v1719
      %v1787 = vpop.f32.mrf.mxu0
      %v1788 = vadd.f32 0.0, %v1787
      %v1789 = vpop.f32.mrf.mxu0
      %v1790 = vadd.f32 0.0, %v1789
      %1791 = vdwg.mxu0
      %1792 = vmatprep.subr.mxu0 0.0
      %1793 = vmatpush1.msra.mxu0 0.0
      %1794 = vmatprep.subr.mxu0 0.0
      %1795 = vmatpush1.msra.mxu0 0.0
      %1796 = vmatprep.subr.mxu0 0.0
      %1797 = vmatpush1.msra.mxu0 0.0
      %1798 = vmatprep.subr.mxu0 0.0
      %1799 = vmatpush1.msra.mxu0 0.0
      %1800 = vmatprep.subr.mxu0 0.0
      %1801 = vmatpush1.msra.mxu0 0.0
      %1802 = vmatprep.subr.mxu0 0.0
      %1803 = vmatpush1.msra.mxu0 0.0
      %1804 = vmatprep.subr.mxu0 0.0
      %1805 = vmatpush1.msra.mxu0 0.0
      %1806 = vmatprep.subr.mxu0 0.0
      %1807 = vmatpush1.msra.mxu0 0.0
      %1808 = vmatprep.subr.mxu0 0.0
      %1809 = vmatpush1.msra.mxu0 0.0
      %1810 = vmatprep.subr.mxu0 0.0
      %1811 = vmatpush1.msra.mxu0 0.0
      %1812 = vmatprep.subr.mxu0 0.0
      %1813 = vmatpush1.msra.mxu0 0.0
      %1814 = vmatprep.subr.mxu0 0.0
      %1815 = vmatpush1.msra.mxu0 0.0
      %1816 = vmatprep.subr.mxu0 0.0
      %1817 = vmatpush1.msra.mxu0 0.0
      %1818 = vmatprep.subr.mxu0 0.0
      %1819 = vmatpush1.msra.mxu0 0.0
      %1820 = vmatprep.subr.mxu0 0.0
      %1821 = vmatpush1.msra.mxu0 0.0
      %1822 = vmatprep.subr.mxu0 0.0
      %1823 = vmatpush1.msra.mxu0 %v1711
      %1824 = vmatprep.subr.mxu0 0.0
      %1825 = vmatpush2.msra.mxu0 0.0
      %1826 = vmatprep.subr.mxu0 0.0
      %1827 = vmatpush2.msra.mxu0 0.0
      %1828 = vmatprep.subr.mxu0 0.0
      %1829 = vmatpush2.msra.mxu0 0.0
      %1830 = vmatprep.subr.mxu0 0.0
      %1831 = vmatpush2.msra.mxu0 0.0
      %1832 = vmatprep.subr.mxu0 0.0
      %1833 = vmatpush2.msra.mxu0 0.0
      %1834 = vmatprep.subr.mxu0 0.0
      %1835 = vmatpush2.msra.mxu0 0.0
      %1836 = vmatprep.subr.mxu0 0.0
      %1837 = vmatpush2.msra.mxu0 0.0
      %1838 = vmatprep.subr.mxu0 0.0
      %1839 = vmatpush2.msra.mxu0 0.0
      %1840 = vmatprep.subr.mxu0 0.0
      %1841 = vmatpush2.msra.mxu0 0.0
      %1842 = vmatprep.subr.mxu0 0.0
      %1843 = vmatpush2.msra.mxu0 0.0
      %1844 = vmatprep.subr.mxu0 0.0
      %1845 = vmatpush2.msra.mxu0 0.0
      %1846 = vmatprep.subr.mxu0 0.0
      %1847 = vmatpush2.msra.mxu0 0.0
      %1848 = vmatprep.subr.mxu0 0.0
      %1849 = vmatpush2.msra.mxu0 0.0
      %1850 = vmatprep.subr.mxu0 0.0
      %1851 = vmatpush2.msra.mxu0 0.0
      %1852 = vmatprep.subr.mxu0 0.0
      %1853 = vmatpush2.msra.mxu0 0.0
      %1854 = vmatprep.subr.mxu0 0.0
      %1855 = vmatpush2.msra.mxu0 0.0
      %1856 = vmatprep.mubr.f32.mxu0 0.0
      %1857 = vmatmul.mubr.f32.gmra.mxu0 %v1719
      %v1858 = vpop.f32.mrf.mxu0
      %v1859 = vadd.f32 0.0, %v1858
      %v1860 = vpop.f32.mrf.mxu0
      %1861 = vdwg.mxu0
      %v1862 = vadd.f32 %v1701, %v1788
      %v1863 = vadd.f32 %v1702, %v1790
      %v1864 = vadd.f32 %v1703, %v1859
      %v1865 = vld [vmem:[%s2] sm:$0xff]
      %1867 = vset.pattern.permute.xlu0 0
      %1868 = vperm.xlu0 %1867, %v1865
      %v1869 = vpop.permute.xlu0 %1868
      %v1871 = vadd.f32 %v1862, %v1869
      %v1872 = vadd.f32 %v1863, %v1869
      %v1873 = vadd.f32 %v1864, %v1869
      %v1874 = vmax.f32 %v1871, 0.0
      %v1875 = vmax.f32 %v1872, 0.0
      %v1876 = vmax.f32 %v1873, 0.0
      %v1878 = vlaneseq
      %v1879 = vshrl.u32 %v1878, 7
      %v1880 = vsub.s32 0, %v1879
      %v1881 = vrot.slane %v396, %v1880
      %v1882 = vlaneseq
      %v1883 = vshrl.u32 %v1882, 7
      %v1884 = vsub.s32 1, %v1883
      %v1885 = vrot.slane %v396, %v1884
      %v1886 = vlaneseq
      %v1887 = vshrl.u32 %v1886, 7
      %v1888 = vsub.s32 2, %v1887
      %v1889 = vrot.slane %v396, %v1888
      %v1893 = vmul.f32 %v1874, %v1881
      %v1894 = vmul.f32 %v1875, %v1885
      %v1895 = vmul.f32 %v1876, %v1889
      %1896 = vst [vmem:[#allocation2 + $0x28] sm:$0xff] %v1893
      %1897 = vst [vmem:[#allocation2 + $0x30] sm:$0xff] %v1894
      %1898 = vst.msk [vmem:[#allocation2 + $0x38] sm:$0xff] %vm412, %v1895
      %v1899 = vld [vmem:[#allocation2] sm:$0xff]
      %v1900 = vld [vmem:[#allocation2 + $0x8] sm:$0xff]
      %v1901 = vld [vmem:[#allocation2 + $0x10] sm:$0xff]
      %v1902 = vld [vmem:[#allocation2 + $0x18] sm:$0xff]
      %v1903 = vld [vmem:[#allocation2 + $0x20] sm:$0xff]
      %v1904 = vld [vmem:[#allocation2 + $0x28] sm:$0xff]
      %v1905 = vld [vmem:[#allocation2 + $0x30] sm:$0xff]
      %v1906 = vld [vmem:[#allocation2 + $0x38] sm:$0xff]
      %v1907 = vld [vmem:[%s3] sm:$0xff]
      %s1908 = scalar_lea.vmem %s3, 8
      %v1909 = vld [vmem:[%s1908] sm:$0xff]
      %1918 = vrot.lane.b32.xlu0 %v1899, 18
      %v1919 = vpop.permute.xlu0 %1918
      %1920 = vrot.lane.b32.xlu0 %v1900, 18
      %v1921 = vpop.permute.xlu0 %1920
      %1922 = vrot.lane.b32.xlu0 %v1901, 18
      %v1923 = vpop.permute.xlu0 %1922
      %1924 = vrot.lane.b32.xlu0 %v1902, 18
      %v1925 = vpop.permute.xlu0 %1924
      %1926 = vrot.lane.b32.xlu0 %v1903, 18
      %v1927 = vpop.permute.xlu0 %1926
      %1928 = vrot.lane.b32.xlu0 %v1904, 18
      %v1929 = vpop.permute.xlu0 %1928
      %1930 = vrot.lane.b32.xlu0 %v1905, 18
      %v1931 = vpop.permute.xlu0 %1930
      %1932 = vrot.lane.b32.xlu0 %v1906, 18
      %v1933 = vpop.permute.xlu0 %1932
      %v1934 = vsel %vm433, %v1919, %v1921
      %v1935 = vsel %vm433, %v1921, %v1923
      %v1936 = vsel %vm433, %v1923, %v1925
      %v1937 = vsel %vm433, %v1927, %v1929
      %v1938 = vsel %vm433, %v1929, %v1931
      %v1939 = vsel %vm433, %v1931, %v1933
      %vm1946 = vcmask 130048
      %v1948 = vsel %vm1946, %v1909, 0
      %1950 = vmatprep.subr.mxu0 0.0
      %1951 = vmatpush1.msra.mxu0 0.0
      %1952 = vmatprep.subr.mxu0 0.0
      %1953 = vmatpush1.msra.mxu0 0.0
      %1954 = vmatprep.subr.mxu0 0.0
      %1955 = vmatpush1.msra.mxu0 0.0
      %1956 = vmatprep.subr.mxu0 0.0
      %1957 = vmatpush1.msra.mxu0 0.0
      %1958 = vmatprep.subr.mxu0 0.0
      %1959 = vmatpush1.msra.mxu0 0.0
      %1960 = vmatprep.subr.mxu0 0.0
      %1961 = vmatpush1.msra.mxu0 0.0
      %1962 = vmatprep.subr.mxu0 0.0
      %1963 = vmatpush1.msra.mxu0 0.0
      %1964 = vmatprep.subr.mxu0 0.0
      %1965 = vmatpush1.msra.mxu0 0.0
      %1966 = vmatprep.subr.mxu0 0.0
      %1967 = vmatpush1.msra.mxu0 0.0
      %1968 = vmatprep.subr.mxu0 0.0
      %1969 = vmatpush1.msra.mxu0 0.0
      %1970 = vmatprep.subr.mxu0 0.0
      %1971 = vmatpush1.msra.mxu0 0.0
      %1972 = vmatprep.subr.mxu0 0.0
      %1973 = vmatpush1.msra.mxu0 0.0
      %1974 = vmatprep.subr.mxu0 0.0
      %1975 = vmatpush1.msra.mxu0 0.0
      %1976 = vmatprep.subr.mxu0 0.0
      %1977 = vmatpush1.msra.mxu0 0.0
      %1978 = vmatprep.subr.mxu0 %v1938
      %1979 = vmatpush1.msra.mxu0 %v1937
      %1980 = vmatprep.subr.mxu0 %v1935
      %1981 = vmatpush1.msra.mxu0 %v1934
      %1982 = vmatprep.subr.mxu0 0.0
      %1983 = vmatpush2.msra.mxu0 0.0
      %1984 = vmatprep.subr.mxu0 0.0
      %1985 = vmatpush2.msra.mxu0 0.0
      %1986 = vmatprep.subr.mxu0 0.0
      %1987 = vmatpush2.msra.mxu0 0.0
      %1988 = vmatprep.subr.mxu0 0.0
      %1989 = vmatpush2.msra.mxu0 0.0
      %1990 = vmatprep.subr.mxu0 0.0
      %1991 = vmatpush2.msra.mxu0 0.0
      %1992 = vmatprep.subr.mxu0 0.0
      %1993 = vmatpush2.msra.mxu0 0.0
      %1994 = vmatprep.subr.mxu0 0.0
      %1995 = vmatpush2.msra.mxu0 0.0
      %1996 = vmatprep.subr.mxu0 0.0
      %1997 = vmatpush2.msra.mxu0 0.0
      %1998 = vmatprep.subr.mxu0 0.0
      %1999 = vmatpush2.msra.mxu0 0.0
      %2000 = vmatprep.subr.mxu0 0.0
      %2001 = vmatpush2.msra.mxu0 0.0
      %2002 = vmatprep.subr.mxu0 0.0
      %2003 = vmatpush2.msra.mxu0 0.0
      %2004 = vmatprep.subr.mxu0 0.0
      %2005 = vmatpush2.msra.mxu0 0.0
      %2006 = vmatprep.subr.mxu0 0.0
      %2007 = vmatpush2.msra.mxu0 0.0
      %2008 = vmatprep.subr.mxu0 0.0
      %2009 = vmatpush2.msra.mxu0 0.0
      %2010 = vmatprep.subr.mxu0 0.0
      %2011 = vmatpush2.msra.mxu0 0.0
      %2012 = vmatprep.subr.mxu0 0.0
      %2013 = vmatpush2.msra.mxu0 0.0
      %2014 = vmatprep.mubr.f32.mxu0 0.0
      %2015 = vmatmul.mubr.f32.gmra.mxu0 %v1948
      %v2016 = vpop.f32.mrf.mxu0
      %v2017 = vadd.f32 0.0, %v2016
      %v2018 = vpop.f32.mrf.mxu0
      %v2019 = vadd.f32 0.0, %v2018
      %2020 = vdwg.mxu0
      %2021 = vmatprep.subr.mxu0 0.0
      %2022 = vmatpush1.msra.mxu0 0.0
      %2023 = vmatprep.subr.mxu0 0.0
      %2024 = vmatpush1.msra.mxu0 0.0
      %2025 = vmatprep.subr.mxu0 0.0
      %2026 = vmatpush1.msra.mxu0 0.0
      %2027 = vmatprep.subr.mxu0 0.0
      %2028 = vmatpush1.msra.mxu0 0.0
      %2029 = vmatprep.subr.mxu0 0.0
      %2030 = vmatpush1.msra.mxu0 0.0
      %2031 = vmatprep.subr.mxu0 0.0
      %2032 = vmatpush1.msra.mxu0 0.0
      %2033 = vmatprep.subr.mxu0 0.0
      %2034 = vmatpush1.msra.mxu0 0.0
      %2035 = vmatprep.subr.mxu0 0.0
      %2036 = vmatpush1.msra.mxu0 0.0
      %2037 = vmatprep.subr.mxu0 0.0
      %2038 = vmatpush1.msra.mxu0 0.0
      %2039 = vmatprep.subr.mxu0 0.0
      %2040 = vmatpush1.msra.mxu0 0.0
      %2041 = vmatprep.subr.mxu0 0.0
      %2042 = vmatpush1.msra.mxu0 0.0
      %2043 = vmatprep.subr.mxu0 0.0
      %2044 = vmatpush1.msra.mxu0 0.0
      %2045 = vmatprep.subr.mxu0 0.0
      %2046 = vmatpush1.msra.mxu0 0.0
      %2047 = vmatprep.subr.mxu0 0.0
      %2048 = vmatpush1.msra.mxu0 0.0
      %2049 = vmatprep.subr.mxu0 0.0
      %2050 = vmatpush1.msra.mxu0 %v1939
      %2051 = vmatprep.subr.mxu0 0.0
      %2052 = vmatpush1.msra.mxu0 %v1936
      %2053 = vmatprep.subr.mxu0 0.0
      %2054 = vmatpush2.msra.mxu0 0.0
      %2055 = vmatprep.subr.mxu0 0.0
      %2056 = vmatpush2.msra.mxu0 0.0
      %2057 = vmatprep.subr.mxu0 0.0
      %2058 = vmatpush2.msra.mxu0 0.0
      %2059 = vmatprep.subr.mxu0 0.0
      %2060 = vmatpush2.msra.mxu0 0.0
      %2061 = vmatprep.subr.mxu0 0.0
      %2062 = vmatpush2.msra.mxu0 0.0
      %2063 = vmatprep.subr.mxu0 0.0
      %2064 = vmatpush2.msra.mxu0 0.0
      %2065 = vmatprep.subr.mxu0 0.0
      %2066 = vmatpush2.msra.mxu0 0.0
      %2067 = vmatprep.subr.mxu0 0.0
      %2068 = vmatpush2.msra.mxu0 0.0
      %2069 = vmatprep.subr.mxu0 0.0
      %2070 = vmatpush2.msra.mxu0 0.0
      %2071 = vmatprep.subr.mxu0 0.0
      %2072 = vmatpush2.msra.mxu0 0.0
      %2073 = vmatprep.subr.mxu0 0.0
      %2074 = vmatpush2.msra.mxu0 0.0
      %2075 = vmatprep.subr.mxu0 0.0
      %2076 = vmatpush2.msra.mxu0 0.0
      %2077 = vmatprep.subr.mxu0 0.0
      %2078 = vmatpush2.msra.mxu0 0.0
      %2079 = vmatprep.subr.mxu0 0.0
      %2080 = vmatpush2.msra.mxu0 0.0
      %2081 = vmatprep.subr.mxu0 0.0
      %2082 = vmatpush2.msra.mxu0 0.0
      %2083 = vmatprep.subr.mxu0 0.0
      %2084 = vmatpush2.msra.mxu0 0.0
      %2085 = vmatprep.mubr.f32.mxu0 0.0
      %2086 = vmatmul.mubr.f32.gmra.mxu0 %v1948
      %v2087 = vpop.f32.mrf.mxu0
      %v2088 = vadd.f32 0.0, %v2087
      %v2089 = vpop.f32.mrf.mxu0
      %2090 = vdwg.mxu0
      %2091 = vrot.lane.b32.xlu0 %v1899, 19
      %v2092 = vpop.permute.xlu0 %2091
      %2093 = vrot.lane.b32.xlu0 %v1900, 19
      %v2094 = vpop.permute.xlu0 %2093
      %2095 = vrot.lane.b32.xlu0 %v1901, 19
      %v2096 = vpop.permute.xlu0 %2095
      %2097 = vrot.lane.b32.xlu0 %v1902, 19
      %v2098 = vpop.permute.xlu0 %2097
      %2099 = vrot.lane.b32.xlu0 %v1903, 19
      %v2100 = vpop.permute.xlu0 %2099
      %2101 = vrot.lane.b32.xlu0 %v1904, 19
      %v2102 = vpop.permute.xlu0 %2101
      %2103 = vrot.lane.b32.xlu0 %v1905, 19
      %v2104 = vpop.permute.xlu0 %2103
      %2105 = vrot.lane.b32.xlu0 %v1906, 19
      %v2106 = vpop.permute.xlu0 %2105
      %v2107 = vsel %vm593, %v2092, %v2094
      %v2108 = vsel %vm593, %v2094, %v2096
      %v2109 = vsel %vm593, %v2096, %v2098
      %v2110 = vsel %vm593, %v2100, %v2102
      %v2111 = vsel %vm593, %v2102, %v2104
      %v2112 = vsel %vm593, %v2104, %v2106
      %v2120 = vsel %vm1946, %v1907, 0
      %2122 = vmatprep.subr.mxu0 0.0
      %2123 = vmatpush1.msra.mxu0 0.0
      %2124 = vmatprep.subr.mxu0 0.0
      %2125 = vmatpush1.msra.mxu0 0.0
      %2126 = vmatprep.subr.mxu0 0.0
      %2127 = vmatpush1.msra.mxu0 0.0
      %2128 = vmatprep.subr.mxu0 0.0
      %2129 = vmatpush1.msra.mxu0 0.0
      %2130 = vmatprep.subr.mxu0 0.0
      %2131 = vmatpush1.msra.mxu0 0.0
      %2132 = vmatprep.subr.mxu0 0.0
      %2133 = vmatpush1.msra.mxu0 0.0
      %2134 = vmatprep.subr.mxu0 0.0
      %2135 = vmatpush1.msra.mxu0 0.0
      %2136 = vmatprep.subr.mxu0 0.0
      %2137 = vmatpush1.msra.mxu0 0.0
      %2138 = vmatprep.subr.mxu0 0.0
      %2139 = vmatpush1.msra.mxu0 0.0
      %2140 = vmatprep.subr.mxu0 0.0
      %2141 = vmatpush1.msra.mxu0 0.0
      %2142 = vmatprep.subr.mxu0 0.0
      %2143 = vmatpush1.msra.mxu0 0.0
      %2144 = vmatprep.subr.mxu0 0.0
      %2145 = vmatpush1.msra.mxu0 0.0
      %2146 = vmatprep.subr.mxu0 0.0
      %2147 = vmatpush1.msra.mxu0 0.0
      %2148 = vmatprep.subr.mxu0 0.0
      %2149 = vmatpush1.msra.mxu0 0.0
      %2150 = vmatprep.subr.mxu0 %v2111
      %2151 = vmatpush1.msra.mxu0 %v2110
      %2152 = vmatprep.subr.mxu0 %v2108
      %2153 = vmatpush1.msra.mxu0 %v2107
      %2154 = vmatprep.subr.mxu0 0.0
      %2155 = vmatpush2.msra.mxu0 0.0
      %2156 = vmatprep.subr.mxu0 0.0
      %2157 = vmatpush2.msra.mxu0 0.0
      %2158 = vmatprep.subr.mxu0 0.0
      %2159 = vmatpush2.msra.mxu0 0.0
      %2160 = vmatprep.subr.mxu0 0.0
      %2161 = vmatpush2.msra.mxu0 0.0
      %2162 = vmatprep.subr.mxu0 0.0
      %2163 = vmatpush2.msra.mxu0 0.0
      %2164 = vmatprep.subr.mxu0 0.0
      %2165 = vmatpush2.msra.mxu0 0.0
      %2166 = vmatprep.subr.mxu0 0.0
      %2167 = vmatpush2.msra.mxu0 0.0
      %2168 = vmatprep.subr.mxu0 0.0
      %2169 = vmatpush2.msra.mxu0 0.0
      %2170 = vmatprep.subr.mxu0 0.0
      %2171 = vmatpush2.msra.mxu0 0.0
      %2172 = vmatprep.subr.mxu0 0.0
      %2173 = vmatpush2.msra.mxu0 0.0
      %2174 = vmatprep.subr.mxu0 0.0
      %2175 = vmatpush2.msra.mxu0 0.0
      %2176 = vmatprep.subr.mxu0 0.0
      %2177 = vmatpush2.msra.mxu0 0.0
      %2178 = vmatprep.subr.mxu0 0.0
      %2179 = vmatpush2.msra.mxu0 0.0
      %2180 = vmatprep.subr.mxu0 0.0
      %2181 = vmatpush2.msra.mxu0 0.0
      %2182 = vmatprep.subr.mxu0 0.0
      %2183 = vmatpush2.msra.mxu0 0.0
      %2184 = vmatprep.subr.mxu0 0.0
      %2185 = vmatpush2.msra.mxu0 0.0
      %2186 = vmatprep.mubr.f32.mxu0 0.0
      %2187 = vmatmul.mubr.f32.gmra.mxu0 %v2120
      %v2188 = vpop.f32.mrf.mxu0
      %v2189 = vadd.f32 %v2017, %v2188
      %v2190 = vpop.f32.mrf.mxu0
      %v2191 = vadd.f32 %v2019, %v2190
      %2192 = vdwg.mxu0
      %2193 = vmatprep.subr.mxu0 0.0
      %2194 = vmatpush1.msra.mxu0 0.0
      %2195 = vmatprep.subr.mxu0 0.0
      %2196 = vmatpush1.msra.mxu0 0.0
      %2197 = vmatprep.subr.mxu0 0.0
      %2198 = vmatpush1.msra.mxu0 0.0
      %2199 = vmatprep.subr.mxu0 0.0
      %2200 = vmatpush1.msra.mxu0 0.0
      %2201 = vmatprep.subr.mxu0 0.0
      %2202 = vmatpush1.msra.mxu0 0.0
      %2203 = vmatprep.subr.mxu0 0.0
      %2204 = vmatpush1.msra.mxu0 0.0
      %2205 = vmatprep.subr.mxu0 0.0
      %2206 = vmatpush1.msra.mxu0 0.0
      %2207 = vmatprep.subr.mxu0 0.0
      %2208 = vmatpush1.msra.mxu0 0.0
      %2209 = vmatprep.subr.mxu0 0.0
      %2210 = vmatpush1.msra.mxu0 0.0
      %2211 = vmatprep.subr.mxu0 0.0
      %2212 = vmatpush1.msra.mxu0 0.0
      %2213 = vmatprep.subr.mxu0 0.0
      %2214 = vmatpush1.msra.mxu0 0.0
      %2215 = vmatprep.subr.mxu0 0.0
      %2216 = vmatpush1.msra.mxu0 0.0
      %2217 = vmatprep.subr.mxu0 0.0
      %2218 = vmatpush1.msra.mxu0 0.0
      %2219 = vmatprep.subr.mxu0 0.0
      %2220 = vmatpush1.msra.mxu0 0.0
      %2221 = vmatprep.subr.mxu0 0.0
      %2222 = vmatpush1.msra.mxu0 %v2112
      %2223 = vmatprep.subr.mxu0 0.0
      %2224 = vmatpush1.msra.mxu0 %v2109
      %2225 = vmatprep.subr.mxu0 0.0
      %2226 = vmatpush2.msra.mxu0 0.0
      %2227 = vmatprep.subr.mxu0 0.0
      %2228 = vmatpush2.msra.mxu0 0.0
      %2229 = vmatprep.subr.mxu0 0.0
      %2230 = vmatpush2.msra.mxu0 0.0
      %2231 = vmatprep.subr.mxu0 0.0
      %2232 = vmatpush2.msra.mxu0 0.0
      %2233 = vmatprep.subr.mxu0 0.0
      %2234 = vmatpush2.msra.mxu0 0.0
      %2235 = vmatprep.subr.mxu0 0.0
      %2236 = vmatpush2.msra.mxu0 0.0
      %2237 = vmatprep.subr.mxu0 0.0
      %2238 = vmatpush2.msra.mxu0 0.0
      %2239 = vmatprep.subr.mxu0 0.0
      %2240 = vmatpush2.msra.mxu0 0.0
      %2241 = vmatprep.subr.mxu0 0.0
      %2242 = vmatpush2.msra.mxu0 0.0
      %2243 = vmatprep.subr.mxu0 0.0
      %2244 = vmatpush2.msra.mxu0 0.0
      %2245 = vmatprep.subr.mxu0 0.0
      %2246 = vmatpush2.msra.mxu0 0.0
      %2247 = vmatprep.subr.mxu0 0.0
      %2248 = vmatpush2.msra.mxu0 0.0
      %2249 = vmatprep.subr.mxu0 0.0
      %2250 = vmatpush2.msra.mxu0 0.0
      %2251 = vmatprep.subr.mxu0 0.0
      %2252 = vmatpush2.msra.mxu0 0.0
      %2253 = vmatprep.subr.mxu0 0.0
      %2254 = vmatpush2.msra.mxu0 0.0
      %2255 = vmatprep.subr.mxu0 0.0
      %2256 = vmatpush2.msra.mxu0 0.0
      %2257 = vmatprep.mubr.f32.mxu0 0.0
      %2258 = vmatmul.mubr.f32.gmra.mxu0 %v2120
      %v2259 = vpop.f32.mrf.mxu0
      %v2260 = vadd.f32 %v2088, %v2259
      %v2261 = vpop.f32.mrf.mxu0
      %2262 = vdwg.mxu0
      %s2263 = scalar_lea.vmem %s3, 16
      %v2264 = vld [vmem:[%s2263] sm:$0xff]
      %2265 = vrot.lane.b32.xlu0 %v1899, 17
      %v2266 = vpop.permute.xlu0 %2265
      %2267 = vrot.lane.b32.xlu0 %v1900, 17
      %v2268 = vpop.permute.xlu0 %2267
      %2269 = vrot.lane.b32.xlu0 %v1901, 17
      %v2270 = vpop.permute.xlu0 %2269
      %2271 = vrot.lane.b32.xlu0 %v1902, 17
      %v2272 = vpop.permute.xlu0 %2271
      %2273 = vrot.lane.b32.xlu0 %v1903, 17
      %v2274 = vpop.permute.xlu0 %2273
      %2275 = vrot.lane.b32.xlu0 %v1904, 17
      %v2276 = vpop.permute.xlu0 %2275
      %2277 = vrot.lane.b32.xlu0 %v1905, 17
      %v2278 = vpop.permute.xlu0 %2277
      %2279 = vrot.lane.b32.xlu0 %v1906, 17
      %v2280 = vpop.permute.xlu0 %2279
      %v2281 = vsel %vm754, %v2266, %v2268
      %v2282 = vsel %vm754, %v2268, %v2270
      %v2283 = vsel %vm754, %v2270, %v2272
      %v2284 = vsel %vm754, %v2274, %v2276
      %v2285 = vsel %vm754, %v2276, %v2278
      %v2286 = vsel %vm754, %v2278, %v2280
      %v2294 = vsel %vm1946, %v2264, 0
      %2296 = vmatprep.subr.mxu0 0.0
      %2297 = vmatpush1.msra.mxu0 0.0
      %2298 = vmatprep.subr.mxu0 0.0
      %2299 = vmatpush1.msra.mxu0 0.0
      %2300 = vmatprep.subr.mxu0 0.0
      %2301 = vmatpush1.msra.mxu0 0.0
      %2302 = vmatprep.subr.mxu0 0.0
      %2303 = vmatpush1.msra.mxu0 0.0
      %2304 = vmatprep.subr.mxu0 0.0
      %2305 = vmatpush1.msra.mxu0 0.0
      %2306 = vmatprep.subr.mxu0 0.0
      %2307 = vmatpush1.msra.mxu0 0.0
      %2308 = vmatprep.subr.mxu0 0.0
      %2309 = vmatpush1.msra.mxu0 0.0
      %2310 = vmatprep.subr.mxu0 0.0
      %2311 = vmatpush1.msra.mxu0 0.0
      %2312 = vmatprep.subr.mxu0 0.0
      %2313 = vmatpush1.msra.mxu0 0.0
      %2314 = vmatprep.subr.mxu0 0.0
      %2315 = vmatpush1.msra.mxu0 0.0
      %2316 = vmatprep.subr.mxu0 0.0
      %2317 = vmatpush1.msra.mxu0 0.0
      %2318 = vmatprep.subr.mxu0 0.0
      %2319 = vmatpush1.msra.mxu0 0.0
      %2320 = vmatprep.subr.mxu0 0.0
      %2321 = vmatpush1.msra.mxu0 0.0
      %2322 = vmatprep.subr.mxu0 0.0
      %2323 = vmatpush1.msra.mxu0 0.0
      %2324 = vmatprep.subr.mxu0 %v2285
      %2325 = vmatpush1.msra.mxu0 %v2284
      %2326 = vmatprep.subr.mxu0 %v2282
      %2327 = vmatpush1.msra.mxu0 %v2281
      %2328 = vmatprep.subr.mxu0 0.0
      %2329 = vmatpush2.msra.mxu0 0.0
      %2330 = vmatprep.subr.mxu0 0.0
      %2331 = vmatpush2.msra.mxu0 0.0
      %2332 = vmatprep.subr.mxu0 0.0
      %2333 = vmatpush2.msra.mxu0 0.0
      %2334 = vmatprep.subr.mxu0 0.0
      %2335 = vmatpush2.msra.mxu0 0.0
      %2336 = vmatprep.subr.mxu0 0.0
      %2337 = vmatpush2.msra.mxu0 0.0
      %2338 = vmatprep.subr.mxu0 0.0
      %2339 = vmatpush2.msra.mxu0 0.0
      %2340 = vmatprep.subr.mxu0 0.0
      %2341 = vmatpush2.msra.mxu0 0.0
      %2342 = vmatprep.subr.mxu0 0.0
      %2343 = vmatpush2.msra.mxu0 0.0
      %2344 = vmatprep.subr.mxu0 0.0
      %2345 = vmatpush2.msra.mxu0 0.0
      %2346 = vmatprep.subr.mxu0 0.0
      %2347 = vmatpush2.msra.mxu0 0.0
      %2348 = vmatprep.subr.mxu0 0.0
      %2349 = vmatpush2.msra.mxu0 0.0
      %2350 = vmatprep.subr.mxu0 0.0
      %2351 = vmatpush2.msra.mxu0 0.0
      %2352 = vmatprep.subr.mxu0 0.0
      %2353 = vmatpush2.msra.mxu0 0.0
      %2354 = vmatprep.subr.mxu0 0.0
      %2355 = vmatpush2.msra.mxu0 0.0
      %2356 = vmatprep.subr.mxu0 0.0
      %2357 = vmatpush2.msra.mxu0 0.0
      %2358 = vmatprep.subr.mxu0 0.0
      %2359 = vmatpush2.msra.mxu0 0.0
      %2360 = vmatprep.mubr.f32.mxu0 0.0
      %2361 = vmatmul.mubr.f32.gmra.mxu0 %v2294
      %v2362 = vpop.f32.mrf.mxu0
      %v2363 = vadd.f32 0.0, %v2362
      %v2364 = vpop.f32.mrf.mxu0
      %v2365 = vadd.f32 0.0, %v2364
      %2366 = vdwg.mxu0
      %2367 = vmatprep.subr.mxu0 0.0
      %2368 = vmatpush1.msra.mxu0 0.0
      %2369 = vmatprep.subr.mxu0 0.0
      %2370 = vmatpush1.msra.mxu0 0.0
      %2371 = vmatprep.subr.mxu0 0.0
      %2372 = vmatpush1.msra.mxu0 0.0
      %2373 = vmatprep.subr.mxu0 0.0
      %2374 = vmatpush1.msra.mxu0 0.0
      %2375 = vmatprep.subr.mxu0 0.0
      %2376 = vmatpush1.msra.mxu0 0.0
      %2377 = vmatprep.subr.mxu0 0.0
      %2378 = vmatpush1.msra.mxu0 0.0
      %2379 = vmatprep.subr.mxu0 0.0
      %2380 = vmatpush1.msra.mxu0 0.0
      %2381 = vmatprep.subr.mxu0 0.0
      %2382 = vmatpush1.msra.mxu0 0.0
      %2383 = vmatprep.subr.mxu0 0.0
      %2384 = vmatpush1.msra.mxu0 0.0
      %2385 = vmatprep.subr.mxu0 0.0
      %2386 = vmatpush1.msra.mxu0 0.0
      %2387 = vmatprep.subr.mxu0 0.0
      %2388 = vmatpush1.msra.mxu0 0.0
      %2389 = vmatprep.subr.mxu0 0.0
      %2390 = vmatpush1.msra.mxu0 0.0
      %2391 = vmatprep.subr.mxu0 0.0
      %2392 = vmatpush1.msra.mxu0 0.0
      %2393 = vmatprep.subr.mxu0 0.0
      %2394 = vmatpush1.msra.mxu0 0.0
      %2395 = vmatprep.subr.mxu0 0.0
      %2396 = vmatpush1.msra.mxu0 %v2286
      %2397 = vmatprep.subr.mxu0 0.0
      %2398 = vmatpush1.msra.mxu0 %v2283
      %2399 = vmatprep.subr.mxu0 0.0
      %2400 = vmatpush2.msra.mxu0 0.0
      %2401 = vmatprep.subr.mxu0 0.0
      %2402 = vmatpush2.msra.mxu0 0.0
      %2403 = vmatprep.subr.mxu0 0.0
      %2404 = vmatpush2.msra.mxu0 0.0
      %2405 = vmatprep.subr.mxu0 0.0
      %2406 = vmatpush2.msra.mxu0 0.0
      %2407 = vmatprep.subr.mxu0 0.0
      %2408 = vmatpush2.msra.mxu0 0.0
      %2409 = vmatprep.subr.mxu0 0.0
      %2410 = vmatpush2.msra.mxu0 0.0
      %2411 = vmatprep.subr.mxu0 0.0
      %2412 = vmatpush2.msra.mxu0 0.0
      %2413 = vmatprep.subr.mxu0 0.0
      %2414 = vmatpush2.msra.mxu0 0.0
      %2415 = vmatprep.subr.mxu0 0.0
      %2416 = vmatpush2.msra.mxu0 0.0
      %2417 = vmatprep.subr.mxu0 0.0
      %2418 = vmatpush2.msra.mxu0 0.0
      %2419 = vmatprep.subr.mxu0 0.0
      %2420 = vmatpush2.msra.mxu0 0.0
      %2421 = vmatprep.subr.mxu0 0.0
      %2422 = vmatpush2.msra.mxu0 0.0
      %2423 = vmatprep.subr.mxu0 0.0
      %2424 = vmatpush2.msra.mxu0 0.0
      %2425 = vmatprep.subr.mxu0 0.0
      %2426 = vmatpush2.msra.mxu0 0.0
      %2427 = vmatprep.subr.mxu0 0.0
      %2428 = vmatpush2.msra.mxu0 0.0
      %2429 = vmatprep.subr.mxu0 0.0
      %2430 = vmatpush2.msra.mxu0 0.0
      %2431 = vmatprep.mubr.f32.mxu0 0.0
      %2432 = vmatmul.mubr.f32.gmra.mxu0 %v2294
      %v2433 = vpop.f32.mrf.mxu0
      %v2434 = vadd.f32 0.0, %v2433
      %v2435 = vpop.f32.mrf.mxu0
      %2436 = vdwg.mxu0
      %v2437 = vadd.f32 %v2189, %v2363
      %v2438 = vadd.f32 %v2191, %v2365
      %v2439 = vadd.f32 %v2260, %v2434
      %s2440 = scalar_lea.vmem %s3, 24
      %v2441 = vld [vmem:[%s2440] sm:$0xff]
      %2442 = vrot.lane.b32.xlu0 %v1899, 1
      %v2443 = vpop.permute.xlu0 %2442
      %2444 = vrot.lane.b32.xlu0 %v1900, 1
      %v2445 = vpop.permute.xlu0 %2444
      %2446 = vrot.lane.b32.xlu0 %v1901, 1
      %v2447 = vpop.permute.xlu0 %2446
      %2448 = vrot.lane.b32.xlu0 %v1902, 1
      %v2449 = vpop.permute.xlu0 %2448
      %2450 = vrot.lane.b32.xlu0 %v1903, 1
      %v2451 = vpop.permute.xlu0 %2450
      %2452 = vrot.lane.b32.xlu0 %v1904, 1
      %v2453 = vpop.permute.xlu0 %2452
      %2454 = vrot.lane.b32.xlu0 %v1905, 1
      %v2455 = vpop.permute.xlu0 %2454
      %2456 = vrot.lane.b32.xlu0 %v1906, 1
      %v2457 = vpop.permute.xlu0 %2456
      %v2458 = vsel %vm918, %v2443, %v2445
      %v2459 = vsel %vm918, %v2445, %v2447
      %v2460 = vsel %vm918, %v2447, %v2449
      %v2461 = vsel %vm918, %v2451, %v2453
      %v2462 = vsel %vm918, %v2453, %v2455
      %v2463 = vsel %vm918, %v2455, %v2457
      %v2471 = vsel %vm1946, %v2441, 0
      %2473 = vmatprep.subr.mxu0 0.0
      %2474 = vmatpush1.msra.mxu0 0.0
      %2475 = vmatprep.subr.mxu0 0.0
      %2476 = vmatpush1.msra.mxu0 0.0
      %2477 = vmatprep.subr.mxu0 0.0
      %2478 = vmatpush1.msra.mxu0 0.0
      %2479 = vmatprep.subr.mxu0 0.0
      %2480 = vmatpush1.msra.mxu0 0.0
      %2481 = vmatprep.subr.mxu0 0.0
      %2482 = vmatpush1.msra.mxu0 0.0
      %2483 = vmatprep.subr.mxu0 0.0
      %2484 = vmatpush1.msra.mxu0 0.0
      %2485 = vmatprep.subr.mxu0 0.0
      %2486 = vmatpush1.msra.mxu0 0.0
      %2487 = vmatprep.subr.mxu0 0.0
      %2488 = vmatpush1.msra.mxu0 0.0
      %2489 = vmatprep.subr.mxu0 0.0
      %2490 = vmatpush1.msra.mxu0 0.0
      %2491 = vmatprep.subr.mxu0 0.0
      %2492 = vmatpush1.msra.mxu0 0.0
      %2493 = vmatprep.subr.mxu0 0.0
      %2494 = vmatpush1.msra.mxu0 0.0
      %2495 = vmatprep.subr.mxu0 0.0
      %2496 = vmatpush1.msra.mxu0 0.0
      %2497 = vmatprep.subr.mxu0 0.0
      %2498 = vmatpush1.msra.mxu0 0.0
      %2499 = vmatprep.subr.mxu0 0.0
      %2500 = vmatpush1.msra.mxu0 0.0
      %2501 = vmatprep.subr.mxu0 %v2462
      %2502 = vmatpush1.msra.mxu0 %v2461
      %2503 = vmatprep.subr.mxu0 %v2459
      %2504 = vmatpush1.msra.mxu0 %v2458
      %2505 = vmatprep.subr.mxu0 0.0
      %2506 = vmatpush2.msra.mxu0 0.0
      %2507 = vmatprep.subr.mxu0 0.0
      %2508 = vmatpush2.msra.mxu0 0.0
      %2509 = vmatprep.subr.mxu0 0.0
      %2510 = vmatpush2.msra.mxu0 0.0
      %2511 = vmatprep.subr.mxu0 0.0
      %2512 = vmatpush2.msra.mxu0 0.0
      %2513 = vmatprep.subr.mxu0 0.0
      %2514 = vmatpush2.msra.mxu0 0.0
      %2515 = vmatprep.subr.mxu0 0.0
      %2516 = vmatpush2.msra.mxu0 0.0
      %2517 = vmatprep.subr.mxu0 0.0
      %2518 = vmatpush2.msra.mxu0 0.0
      %2519 = vmatprep.subr.mxu0 0.0
      %2520 = vmatpush2.msra.mxu0 0.0
      %2521 = vmatprep.subr.mxu0 0.0
      %2522 = vmatpush2.msra.mxu0 0.0
      %2523 = vmatprep.subr.mxu0 0.0
      %2524 = vmatpush2.msra.mxu0 0.0
      %2525 = vmatprep.subr.mxu0 0.0
      %2526 = vmatpush2.msra.mxu0 0.0
      %2527 = vmatprep.subr.mxu0 0.0
      %2528 = vmatpush2.msra.mxu0 0.0
      %2529 = vmatprep.subr.mxu0 0.0
      %2530 = vmatpush2.msra.mxu0 0.0
      %2531 = vmatprep.subr.mxu0 0.0
      %2532 = vmatpush2.msra.mxu0 0.0
      %2533 = vmatprep.subr.mxu0 0.0
      %2534 = vmatpush2.msra.mxu0 0.0
      %2535 = vmatprep.subr.mxu0 0.0
      %2536 = vmatpush2.msra.mxu0 0.0
      %2537 = vmatprep.mubr.f32.mxu0 0.0
      %2538 = vmatmul.mubr.f32.gmra.mxu0 %v2471
      %v2539 = vpop.f32.mrf.mxu0
      %v2540 = vadd.f32 0.0, %v2539
      %v2541 = vpop.f32.mrf.mxu0
      %v2542 = vadd.f32 0.0, %v2541
      %2543 = vdwg.mxu0
      %2544 = vmatprep.subr.mxu0 0.0
      %2545 = vmatpush1.msra.mxu0 0.0
      %2546 = vmatprep.subr.mxu0 0.0
      %2547 = vmatpush1.msra.mxu0 0.0
      %2548 = vmatprep.subr.mxu0 0.0
      %2549 = vmatpush1.msra.mxu0 0.0
      %2550 = vmatprep.subr.mxu0 0.0
      %2551 = vmatpush1.msra.mxu0 0.0
      %2552 = vmatprep.subr.mxu0 0.0
      %2553 = vmatpush1.msra.mxu0 0.0
      %2554 = vmatprep.subr.mxu0 0.0
      %2555 = vmatpush1.msra.mxu0 0.0
      %2556 = vmatprep.subr.mxu0 0.0
      %2557 = vmatpush1.msra.mxu0 0.0
      %2558 = vmatprep.subr.mxu0 0.0
      %2559 = vmatpush1.msra.mxu0 0.0
      %2560 = vmatprep.subr.mxu0 0.0
      %2561 = vmatpush1.msra.mxu0 0.0
      %2562 = vmatprep.subr.mxu0 0.0
      %2563 = vmatpush1.msra.mxu0 0.0
      %2564 = vmatprep.subr.mxu0 0.0
      %2565 = vmatpush1.msra.mxu0 0.0
      %2566 = vmatprep.subr.mxu0 0.0
      %2567 = vmatpush1.msra.mxu0 0.0
      %2568 = vmatprep.subr.mxu0 0.0
      %2569 = vmatpush1.msra.mxu0 0.0
      %2570 = vmatprep.subr.mxu0 0.0
      %2571 = vmatpush1.msra.mxu0 0.0
      %2572 = vmatprep.subr.mxu0 0.0
      %2573 = vmatpush1.msra.mxu0 %v2463
      %2574 = vmatprep.subr.mxu0 0.0
      %2575 = vmatpush1.msra.mxu0 %v2460
      %2576 = vmatprep.subr.mxu0 0.0
      %2577 = vmatpush2.msra.mxu0 0.0
      %2578 = vmatprep.subr.mxu0 0.0
      %2579 = vmatpush2.msra.mxu0 0.0
      %2580 = vmatprep.subr.mxu0 0.0
      %2581 = vmatpush2.msra.mxu0 0.0
      %2582 = vmatprep.subr.mxu0 0.0
      %2583 = vmatpush2.msra.mxu0 0.0
      %2584 = vmatprep.subr.mxu0 0.0
      %2585 = vmatpush2.msra.mxu0 0.0
      %2586 = vmatprep.subr.mxu0 0.0
      %2587 = vmatpush2.msra.mxu0 0.0
      %2588 = vmatprep.subr.mxu0 0.0
      %2589 = vmatpush2.msra.mxu0 0.0
      %2590 = vmatprep.subr.mxu0 0.0
      %2591 = vmatpush2.msra.mxu0 0.0
      %2592 = vmatprep.subr.mxu0 0.0
      %2593 = vmatpush2.msra.mxu0 0.0
      %2594 = vmatprep.subr.mxu0 0.0
      %2595 = vmatpush2.msra.mxu0 0.0
      %2596 = vmatprep.subr.mxu0 0.0
      %2597 = vmatpush2.msra.mxu0 0.0
      %2598 = vmatprep.subr.mxu0 0.0
      %2599 = vmatpush2.msra.mxu0 0.0
      %2600 = vmatprep.subr.mxu0 0.0
      %2601 = vmatpush2.msra.mxu0 0.0
      %2602 = vmatprep.subr.mxu0 0.0
      %2603 = vmatpush2.msra.mxu0 0.0
      %2604 = vmatprep.subr.mxu0 0.0
      %2605 = vmatpush2.msra.mxu0 0.0
      %2606 = vmatprep.subr.mxu0 0.0
      %2607 = vmatpush2.msra.mxu0 0.0
      %2608 = vmatprep.mubr.f32.mxu0 0.0
      %2609 = vmatmul.mubr.f32.gmra.mxu0 %v2471
      %v2610 = vpop.f32.mrf.mxu0
      %v2611 = vadd.f32 0.0, %v2610
      %v2612 = vpop.f32.mrf.mxu0
      %2613 = vdwg.mxu0
      %v2614 = vadd.f32 %v2437, %v2540
      %v2615 = vadd.f32 %v2438, %v2542
      %v2616 = vadd.f32 %v2439, %v2611
      %s2617 = scalar_lea.vmem %s3, 32
      %v2618 = vld [vmem:[%s2617] sm:$0xff]
      %v2620 = vsel %vm1946, %v2618, 0
      %2622 = vmatprep.subr.mxu0 0.0
      %2623 = vmatpush1.msra.mxu0 0.0
      %2624 = vmatprep.subr.mxu0 0.0
      %2625 = vmatpush1.msra.mxu0 0.0
      %2626 = vmatprep.subr.mxu0 0.0
      %2627 = vmatpush1.msra.mxu0 0.0
      %2628 = vmatprep.subr.mxu0 0.0
      %2629 = vmatpush1.msra.mxu0 0.0
      %2630 = vmatprep.subr.mxu0 0.0
      %2631 = vmatpush1.msra.mxu0 0.0
      %2632 = vmatprep.subr.mxu0 0.0
      %2633 = vmatpush1.msra.mxu0 0.0
      %2634 = vmatprep.subr.mxu0 0.0
      %2635 = vmatpush1.msra.mxu0 0.0
      %2636 = vmatprep.subr.mxu0 0.0
      %2637 = vmatpush1.msra.mxu0 0.0
      %2638 = vmatprep.subr.mxu0 0.0
      %2639 = vmatpush1.msra.mxu0 0.0
      %2640 = vmatprep.subr.mxu0 0.0
      %2641 = vmatpush1.msra.mxu0 0.0
      %2642 = vmatprep.subr.mxu0 0.0
      %2643 = vmatpush1.msra.mxu0 0.0
      %2644 = vmatprep.subr.mxu0 0.0
      %2645 = vmatpush1.msra.mxu0 0.0
      %2646 = vmatprep.subr.mxu0 0.0
      %2647 = vmatpush1.msra.mxu0 0.0
      %2648 = vmatprep.subr.mxu0 0.0
      %2649 = vmatpush1.msra.mxu0 0.0
      %2650 = vmatprep.subr.mxu0 %v1905
      %2651 = vmatpush1.msra.mxu0 %v1904
      %2652 = vmatprep.subr.mxu0 %v1901
      %2653 = vmatpush1.msra.mxu0 %v1900
      %2654 = vmatprep.subr.mxu0 0.0
      %2655 = vmatpush2.msra.mxu0 0.0
      %2656 = vmatprep.subr.mxu0 0.0
      %2657 = vmatpush2.msra.mxu0 0.0
      %2658 = vmatprep.subr.mxu0 0.0
      %2659 = vmatpush2.msra.mxu0 0.0
      %2660 = vmatprep.subr.mxu0 0.0
      %2661 = vmatpush2.msra.mxu0 0.0
      %2662 = vmatprep.subr.mxu0 0.0
      %2663 = vmatpush2.msra.mxu0 0.0
      %2664 = vmatprep.subr.mxu0 0.0
      %2665 = vmatpush2.msra.mxu0 0.0
      %2666 = vmatprep.subr.mxu0 0.0
      %2667 = vmatpush2.msra.mxu0 0.0
      %2668 = vmatprep.subr.mxu0 0.0
      %2669 = vmatpush2.msra.mxu0 0.0
      %2670 = vmatprep.subr.mxu0 0.0
      %2671 = vmatpush2.msra.mxu0 0.0
      %2672 = vmatprep.subr.mxu0 0.0
      %2673 = vmatpush2.msra.mxu0 0.0
      %2674 = vmatprep.subr.mxu0 0.0
      %2675 = vmatpush2.msra.mxu0 0.0
      %2676 = vmatprep.subr.mxu0 0.0
      %2677 = vmatpush2.msra.mxu0 0.0
      %2678 = vmatprep.subr.mxu0 0.0
      %2679 = vmatpush2.msra.mxu0 0.0
      %2680 = vmatprep.subr.mxu0 0.0
      %2681 = vmatpush2.msra.mxu0 0.0
      %2682 = vmatprep.subr.mxu0 0.0
      %2683 = vmatpush2.msra.mxu0 0.0
      %2684 = vmatprep.subr.mxu0 0.0
      %2685 = vmatpush2.msra.mxu0 0.0
      %2686 = vmatprep.mubr.f32.mxu0 0.0
      %2687 = vmatmul.mubr.f32.gmra.mxu0 %v2620
      %v2688 = vpop.f32.mrf.mxu0
      %v2689 = vadd.f32 0.0, %v2688
      %v2690 = vpop.f32.mrf.mxu0
      %v2691 = vadd.f32 0.0, %v2690
      %2692 = vdwg.mxu0
      %2693 = vmatprep.subr.mxu0 0.0
      %2694 = vmatpush1.msra.mxu0 0.0
      %2695 = vmatprep.subr.mxu0 0.0
      %2696 = vmatpush1.msra.mxu0 0.0
      %2697 = vmatprep.subr.mxu0 0.0
      %2698 = vmatpush1.msra.mxu0 0.0
      %2699 = vmatprep.subr.mxu0 0.0
      %2700 = vmatpush1.msra.mxu0 0.0
      %2701 = vmatprep.subr.mxu0 0.0
      %2702 = vmatpush1.msra.mxu0 0.0
      %2703 = vmatprep.subr.mxu0 0.0
      %2704 = vmatpush1.msra.mxu0 0.0
      %2705 = vmatprep.subr.mxu0 0.0
      %2706 = vmatpush1.msra.mxu0 0.0
      %2707 = vmatprep.subr.mxu0 0.0
      %2708 = vmatpush1.msra.mxu0 0.0
      %2709 = vmatprep.subr.mxu0 0.0
      %2710 = vmatpush1.msra.mxu0 0.0
      %2711 = vmatprep.subr.mxu0 0.0
      %2712 = vmatpush1.msra.mxu0 0.0
      %2713 = vmatprep.subr.mxu0 0.0
      %2714 = vmatpush1.msra.mxu0 0.0
      %2715 = vmatprep.subr.mxu0 0.0
      %2716 = vmatpush1.msra.mxu0 0.0
      %2717 = vmatprep.subr.mxu0 0.0
      %2718 = vmatpush1.msra.mxu0 0.0
      %2719 = vmatprep.subr.mxu0 0.0
      %2720 = vmatpush1.msra.mxu0 0.0
      %2721 = vmatprep.subr.mxu0 0.0
      %2722 = vmatpush1.msra.mxu0 %v1906
      %2723 = vmatprep.subr.mxu0 0.0
      %2724 = vmatpush1.msra.mxu0 %v1902
      %2725 = vmatprep.subr.mxu0 0.0
      %2726 = vmatpush2.msra.mxu0 0.0
      %2727 = vmatprep.subr.mxu0 0.0
      %2728 = vmatpush2.msra.mxu0 0.0
      %2729 = vmatprep.subr.mxu0 0.0
      %2730 = vmatpush2.msra.mxu0 0.0
      %2731 = vmatprep.subr.mxu0 0.0
      %2732 = vmatpush2.msra.mxu0 0.0
      %2733 = vmatprep.subr.mxu0 0.0
      %2734 = vmatpush2.msra.mxu0 0.0
      %2735 = vmatprep.subr.mxu0 0.0
      %2736 = vmatpush2.msra.mxu0 0.0
      %2737 = vmatprep.subr.mxu0 0.0
      %2738 = vmatpush2.msra.mxu0 0.0
      %2739 = vmatprep.subr.mxu0 0.0
      %2740 = vmatpush2.msra.mxu0 0.0
      %2741 = vmatprep.subr.mxu0 0.0
      %2742 = vmatpush2.msra.mxu0 0.0
      %2743 = vmatprep.subr.mxu0 0.0
      %2744 = vmatpush2.msra.mxu0 0.0
      %2745 = vmatprep.subr.mxu0 0.0
      %2746 = vmatpush2.msra.mxu0 0.0
      %2747 = vmatprep.subr.mxu0 0.0
      %2748 = vmatpush2.msra.mxu0 0.0
      %2749 = vmatprep.subr.mxu0 0.0
      %2750 = vmatpush2.msra.mxu0 0.0
      %2751 = vmatprep.subr.mxu0 0.0
      %2752 = vmatpush2.msra.mxu0 0.0
      %2753 = vmatprep.subr.mxu0 0.0
      %2754 = vmatpush2.msra.mxu0 0.0
      %2755 = vmatprep.subr.mxu0 0.0
      %2756 = vmatpush2.msra.mxu0 0.0
      %2757 = vmatprep.mubr.f32.mxu0 0.0
      %2758 = vmatmul.mubr.f32.gmra.mxu0 %v2620
      %v2759 = vpop.f32.mrf.mxu0
      %v2760 = vadd.f32 0.0, %v2759
      %v2761 = vpop.f32.mrf.mxu0
      %2762 = vdwg.mxu0
      %v2763 = vadd.f32 %v2614, %v2689
      %v2764 = vadd.f32 %v2615, %v2691
      %v2765 = vadd.f32 %v2616, %v2760
      %s2766 = scalar_lea.vmem %s3, 40
      %v2767 = vld [vmem:[%s2766] sm:$0xff]
      %2768 = vrot.lane.b32.xlu0 %v1900, 127
      %v2769 = vpop.permute.xlu0 %2768
      %2770 = vrot.lane.b32.xlu0 %v1901, 127
      %v2771 = vpop.permute.xlu0 %2770
      %2772 = vrot.lane.b32.xlu0 %v1902, 127
      %v2773 = vpop.permute.xlu0 %2772
      %2774 = vrot.lane.b32.xlu0 %v1904, 127
      %v2775 = vpop.permute.xlu0 %2774
      %2776 = vrot.lane.b32.xlu0 %v1905, 127
      %v2777 = vpop.permute.xlu0 %2776
      %2778 = vrot.lane.b32.xlu0 %v1906, 127
      %v2779 = vpop.permute.xlu0 %2778
      %v2780 = vsel %vm1229, %v2769, %v2771
      %v2781 = vsel %vm1229, %v2771, %v2773
      %v2782 = vsel %vm1229, %v2775, %v2777
      %v2783 = vsel %vm1229, %v2777, %v2779
      %v2791 = vsel %vm1946, %v2767, 0
      %2793 = vmatprep.subr.mxu0 0.0
      %2794 = vmatpush1.msra.mxu0 0.0
      %2795 = vmatprep.subr.mxu0 0.0
      %2796 = vmatpush1.msra.mxu0 0.0
      %2797 = vmatprep.subr.mxu0 0.0
      %2798 = vmatpush1.msra.mxu0 0.0
      %2799 = vmatprep.subr.mxu0 0.0
      %2800 = vmatpush1.msra.mxu0 0.0
      %2801 = vmatprep.subr.mxu0 0.0
      %2802 = vmatpush1.msra.mxu0 0.0
      %2803 = vmatprep.subr.mxu0 0.0
      %2804 = vmatpush1.msra.mxu0 0.0
      %2805 = vmatprep.subr.mxu0 0.0
      %2806 = vmatpush1.msra.mxu0 0.0
      %2807 = vmatprep.subr.mxu0 0.0
      %2808 = vmatpush1.msra.mxu0 0.0
      %2809 = vmatprep.subr.mxu0 0.0
      %2810 = vmatpush1.msra.mxu0 0.0
      %2811 = vmatprep.subr.mxu0 0.0
      %2812 = vmatpush1.msra.mxu0 0.0
      %2813 = vmatprep.subr.mxu0 0.0
      %2814 = vmatpush1.msra.mxu0 0.0
      %2815 = vmatprep.subr.mxu0 0.0
      %2816 = vmatpush1.msra.mxu0 0.0
      %2817 = vmatprep.subr.mxu0 0.0
      %2818 = vmatpush1.msra.mxu0 0.0
      %2819 = vmatprep.subr.mxu0 0.0
      %2820 = vmatpush1.msra.mxu0 0.0
      %2821 = vmatprep.subr.mxu0 %v2783
      %2822 = vmatpush1.msra.mxu0 %v2782
      %2823 = vmatprep.subr.mxu0 %v2781
      %2824 = vmatpush1.msra.mxu0 %v2780
      %2825 = vmatprep.subr.mxu0 0.0
      %2826 = vmatpush2.msra.mxu0 0.0
      %2827 = vmatprep.subr.mxu0 0.0
      %2828 = vmatpush2.msra.mxu0 0.0
      %2829 = vmatprep.subr.mxu0 0.0
      %2830 = vmatpush2.msra.mxu0 0.0
      %2831 = vmatprep.subr.mxu0 0.0
      %2832 = vmatpush2.msra.mxu0 0.0
      %2833 = vmatprep.subr.mxu0 0.0
      %2834 = vmatpush2.msra.mxu0 0.0
      %2835 = vmatprep.subr.mxu0 0.0
      %2836 = vmatpush2.msra.mxu0 0.0
      %2837 = vmatprep.subr.mxu0 0.0
      %2838 = vmatpush2.msra.mxu0 0.0
      %2839 = vmatprep.subr.mxu0 0.0
      %2840 = vmatpush2.msra.mxu0 0.0
      %2841 = vmatprep.subr.mxu0 0.0
      %2842 = vmatpush2.msra.mxu0 0.0
      %2843 = vmatprep.subr.mxu0 0.0
      %2844 = vmatpush2.msra.mxu0 0.0
      %2845 = vmatprep.subr.mxu0 0.0
      %2846 = vmatpush2.msra.mxu0 0.0
      %2847 = vmatprep.subr.mxu0 0.0
      %2848 = vmatpush2.msra.mxu0 0.0
      %2849 = vmatprep.subr.mxu0 0.0
      %2850 = vmatpush2.msra.mxu0 0.0
      %2851 = vmatprep.subr.mxu0 0.0
      %2852 = vmatpush2.msra.mxu0 0.0
      %2853 = vmatprep.subr.mxu0 0.0
      %2854 = vmatpush2.msra.mxu0 0.0
      %2855 = vmatprep.subr.mxu0 0.0
      %2856 = vmatpush2.msra.mxu0 0.0
      %2857 = vmatprep.mubr.f32.mxu0 0.0
      %2858 = vmatmul.mubr.f32.gmra.mxu0 %v2791
      %v2859 = vpop.f32.mrf.mxu0
      %v2860 = vadd.f32 0.0, %v2859
      %v2861 = vpop.f32.mrf.mxu0
      %v2862 = vadd.f32 0.0, %v2861
      %2863 = vdwg.mxu0
      %2864 = vmatprep.subr.mxu0 0.0
      %2865 = vmatpush1.msra.mxu0 0.0
      %2866 = vmatprep.subr.mxu0 0.0
      %2867 = vmatpush1.msra.mxu0 0.0
      %2868 = vmatprep.subr.mxu0 0.0
      %2869 = vmatpush1.msra.mxu0 0.0
      %2870 = vmatprep.subr.mxu0 0.0
      %2871 = vmatpush1.msra.mxu0 0.0
      %2872 = vmatprep.subr.mxu0 0.0
      %2873 = vmatpush1.msra.mxu0 0.0
      %2874 = vmatprep.subr.mxu0 0.0
      %2875 = vmatpush1.msra.mxu0 0.0
      %2876 = vmatprep.subr.mxu0 0.0
      %2877 = vmatpush1.msra.mxu0 0.0
      %2878 = vmatprep.subr.mxu0 0.0
      %2879 = vmatpush1.msra.mxu0 0.0
      %2880 = vmatprep.subr.mxu0 0.0
      %2881 = vmatpush1.msra.mxu0 0.0
      %2882 = vmatprep.subr.mxu0 0.0
      %2883 = vmatpush1.msra.mxu0 0.0
      %2884 = vmatprep.subr.mxu0 0.0
      %2885 = vmatpush1.msra.mxu0 0.0
      %2886 = vmatprep.subr.mxu0 0.0
      %2887 = vmatpush1.msra.mxu0 0.0
      %2888 = vmatprep.subr.mxu0 0.0
      %2889 = vmatpush1.msra.mxu0 0.0
      %2890 = vmatprep.subr.mxu0 0.0
      %2891 = vmatpush1.msra.mxu0 0.0
      %2892 = vmatprep.subr.mxu0 0.0
      %2893 = vmatpush1.msra.mxu0 %v2779
      %2894 = vmatprep.subr.mxu0 0.0
      %2895 = vmatpush1.msra.mxu0 %v2773
      %2896 = vmatprep.subr.mxu0 0.0
      %2897 = vmatpush2.msra.mxu0 0.0
      %2898 = vmatprep.subr.mxu0 0.0
      %2899 = vmatpush2.msra.mxu0 0.0
      %2900 = vmatprep.subr.mxu0 0.0
      %2901 = vmatpush2.msra.mxu0 0.0
      %2902 = vmatprep.subr.mxu0 0.0
      %2903 = vmatpush2.msra.mxu0 0.0
      %2904 = vmatprep.subr.mxu0 0.0
      %2905 = vmatpush2.msra.mxu0 0.0
      %2906 = vmatprep.subr.mxu0 0.0
      %2907 = vmatpush2.msra.mxu0 0.0
      %2908 = vmatprep.subr.mxu0 0.0
      %2909 = vmatpush2.msra.mxu0 0.0
      %2910 = vmatprep.subr.mxu0 0.0
      %2911 = vmatpush2.msra.mxu0 0.0
      %2912 = vmatprep.subr.mxu0 0.0
      %2913 = vmatpush2.msra.mxu0 0.0
      %2914 = vmatprep.subr.mxu0 0.0
      %2915 = vmatpush2.msra.mxu0 0.0
      %2916 = vmatprep.subr.mxu0 0.0
      %2917 = vmatpush2.msra.mxu0 0.0
      %2918 = vmatprep.subr.mxu0 0.0
      %2919 = vmatpush2.msra.mxu0 0.0
      %2920 = vmatprep.subr.mxu0 0.0
      %2921 = vmatpush2.msra.mxu0 0.0
      %2922 = vmatprep.subr.mxu0 0.0
      %2923 = vmatpush2.msra.mxu0 0.0
      %2924 = vmatprep.subr.mxu0 0.0
      %2925 = vmatpush2.msra.mxu0 0.0
      %2926 = vmatprep.subr.mxu0 0.0
      %2927 = vmatpush2.msra.mxu0 0.0
      %2928 = vmatprep.mubr.f32.mxu0 0.0
      %2929 = vmatmul.mubr.f32.gmra.mxu0 %v2791
      %v2930 = vpop.f32.mrf.mxu0
      %v2931 = vadd.f32 0.0, %v2930
      %v2932 = vpop.f32.mrf.mxu0
      %2933 = vdwg.mxu0
      %v2934 = vadd.f32 %v2763, %v2860
      %v2935 = vadd.f32 %v2764, %v2862
      %v2936 = vadd.f32 %v2765, %v2931
      %s2937 = scalar_lea.vmem %s3, 48
      %v2938 = vld [vmem:[%s2937] sm:$0xff]
      %2939 = vrot.lane.b32.xlu0 %v1900, 111
      %v2940 = vpop.permute.xlu0 %2939
      %2941 = vrot.lane.b32.xlu0 %v1901, 111
      %v2942 = vpop.permute.xlu0 %2941
      %2943 = vrot.lane.b32.xlu0 %v1902, 111
      %v2944 = vpop.permute.xlu0 %2943
      %2945 = vrot.lane.b32.xlu0 %v1904, 111
      %v2946 = vpop.permute.xlu0 %2945
      %2947 = vrot.lane.b32.xlu0 %v1905, 111
      %v2948 = vpop.permute.xlu0 %2947
      %2949 = vrot.lane.b32.xlu0 %v1906, 111
      %v2950 = vpop.permute.xlu0 %2949
      %v2951 = vsel %vm1390, %v2940, %v2942
      %v2952 = vsel %vm1390, %v2942, %v2944
      %v2953 = vsel %vm1390, %v2946, %v2948
      %v2954 = vsel %vm1390, %v2948, %v2950
      %v2962 = vsel %vm1946, %v2938, 0
      %2964 = vmatprep.subr.mxu0 0.0
      %2965 = vmatpush1.msra.mxu0 0.0
      %2966 = vmatprep.subr.mxu0 0.0
      %2967 = vmatpush1.msra.mxu0 0.0
      %2968 = vmatprep.subr.mxu0 0.0
      %2969 = vmatpush1.msra.mxu0 0.0
      %2970 = vmatprep.subr.mxu0 0.0
      %2971 = vmatpush1.msra.mxu0 0.0
      %2972 = vmatprep.subr.mxu0 0.0
      %2973 = vmatpush1.msra.mxu0 0.0
      %2974 = vmatprep.subr.mxu0 0.0
      %2975 = vmatpush1.msra.mxu0 0.0
      %2976 = vmatprep.subr.mxu0 0.0
      %2977 = vmatpush1.msra.mxu0 0.0
      %2978 = vmatprep.subr.mxu0 0.0
      %2979 = vmatpush1.msra.mxu0 0.0
      %2980 = vmatprep.subr.mxu0 0.0
      %2981 = vmatpush1.msra.mxu0 0.0
      %2982 = vmatprep.subr.mxu0 0.0
      %2983 = vmatpush1.msra.mxu0 0.0
      %2984 = vmatprep.subr.mxu0 0.0
      %2985 = vmatpush1.msra.mxu0 0.0
      %2986 = vmatprep.subr.mxu0 0.0
      %2987 = vmatpush1.msra.mxu0 0.0
      %2988 = vmatprep.subr.mxu0 0.0
      %2989 = vmatpush1.msra.mxu0 0.0
      %2990 = vmatprep.subr.mxu0 0.0
      %2991 = vmatpush1.msra.mxu0 0.0
      %2992 = vmatprep.subr.mxu0 %v2954
      %2993 = vmatpush1.msra.mxu0 %v2953
      %2994 = vmatprep.subr.mxu0 %v2952
      %2995 = vmatpush1.msra.mxu0 %v2951
      %2996 = vmatprep.subr.mxu0 0.0
      %2997 = vmatpush2.msra.mxu0 0.0
      %2998 = vmatprep.subr.mxu0 0.0
      %2999 = vmatpush2.msra.mxu0 0.0
      %3000 = vmatprep.subr.mxu0 0.0
      %3001 = vmatpush2.msra.mxu0 0.0
      %3002 = vmatprep.subr.mxu0 0.0
      %3003 = vmatpush2.msra.mxu0 0.0
      %3004 = vmatprep.subr.mxu0 0.0
      %3005 = vmatpush2.msra.mxu0 0.0
      %3006 = vmatprep.subr.mxu0 0.0
      %3007 = vmatpush2.msra.mxu0 0.0
      %3008 = vmatprep.subr.mxu0 0.0
      %3009 = vmatpush2.msra.mxu0 0.0
      %3010 = vmatprep.subr.mxu0 0.0
      %3011 = vmatpush2.msra.mxu0 0.0
      %3012 = vmatprep.subr.mxu0 0.0
      %3013 = vmatpush2.msra.mxu0 0.0
      %3014 = vmatprep.subr.mxu0 0.0
      %3015 = vmatpush2.msra.mxu0 0.0
      %3016 = vmatprep.subr.mxu0 0.0
      %3017 = vmatpush2.msra.mxu0 0.0
      %3018 = vmatprep.subr.mxu0 0.0
      %3019 = vmatpush2.msra.mxu0 0.0
      %3020 = vmatprep.subr.mxu0 0.0
      %3021 = vmatpush2.msra.mxu0 0.0
      %3022 = vmatprep.subr.mxu0 0.0
      %3023 = vmatpush2.msra.mxu0 0.0
      %3024 = vmatprep.subr.mxu0 0.0
      %3025 = vmatpush2.msra.mxu0 0.0
      %3026 = vmatprep.subr.mxu0 0.0
      %3027 = vmatpush2.msra.mxu0 0.0
      %3028 = vmatprep.mubr.f32.mxu0 0.0
      %3029 = vmatmul.mubr.f32.gmra.mxu0 %v2962
      %v3030 = vpop.f32.mrf.mxu0
      %v3031 = vadd.f32 0.0, %v3030
      %v3032 = vpop.f32.mrf.mxu0
      %v3033 = vadd.f32 0.0, %v3032
      %3034 = vdwg.mxu0
      %3035 = vmatprep.subr.mxu0 0.0
      %3036 = vmatpush1.msra.mxu0 0.0
      %3037 = vmatprep.subr.mxu0 0.0
      %3038 = vmatpush1.msra.mxu0 0.0
      %3039 = vmatprep.subr.mxu0 0.0
      %3040 = vmatpush1.msra.mxu0 0.0
      %3041 = vmatprep.subr.mxu0 0.0
      %3042 = vmatpush1.msra.mxu0 0.0
      %3043 = vmatprep.subr.mxu0 0.0
      %3044 = vmatpush1.msra.mxu0 0.0
      %3045 = vmatprep.subr.mxu0 0.0
      %3046 = vmatpush1.msra.mxu0 0.0
      %3047 = vmatprep.subr.mxu0 0.0
      %3048 = vmatpush1.msra.mxu0 0.0
      %3049 = vmatprep.subr.mxu0 0.0
      %3050 = vmatpush1.msra.mxu0 0.0
      %3051 = vmatprep.subr.mxu0 0.0
      %3052 = vmatpush1.msra.mxu0 0.0
      %3053 = vmatprep.subr.mxu0 0.0
      %3054 = vmatpush1.msra.mxu0 0.0
      %3055 = vmatprep.subr.mxu0 0.0
      %3056 = vmatpush1.msra.mxu0 0.0
      %3057 = vmatprep.subr.mxu0 0.0
      %3058 = vmatpush1.msra.mxu0 0.0
      %3059 = vmatprep.subr.mxu0 0.0
      %3060 = vmatpush1.msra.mxu0 0.0
      %3061 = vmatprep.subr.mxu0 0.0
      %3062 = vmatpush1.msra.mxu0 0.0
      %3063 = vmatprep.subr.mxu0 0.0
      %3064 = vmatpush1.msra.mxu0 %v2950
      %3065 = vmatprep.subr.mxu0 0.0
      %3066 = vmatpush1.msra.mxu0 %v2944
      %3067 = vmatprep.subr.mxu0 0.0
      %3068 = vmatpush2.msra.mxu0 0.0
      %3069 = vmatprep.subr.mxu0 0.0
      %3070 = vmatpush2.msra.mxu0 0.0
      %3071 = vmatprep.subr.mxu0 0.0
      %3072 = vmatpush2.msra.mxu0 0.0
      %3073 = vmatprep.subr.mxu0 0.0
      %3074 = vmatpush2.msra.mxu0 0.0
      %3075 = vmatprep.subr.mxu0 0.0
      %3076 = vmatpush2.msra.mxu0 0.0
      %3077 = vmatprep.subr.mxu0 0.0
      %3078 = vmatpush2.msra.mxu0 0.0
      %3079 = vmatprep.subr.mxu0 0.0
      %3080 = vmatpush2.msra.mxu0 0.0
      %3081 = vmatprep.subr.mxu0 0.0
      %3082 = vmatpush2.msra.mxu0 0.0
      %3083 = vmatprep.subr.mxu0 0.0
      %3084 = vmatpush2.msra.mxu0 0.0
      %3085 = vmatprep.subr.mxu0 0.0
      %3086 = vmatpush2.msra.mxu0 0.0
      %3087 = vmatprep.subr.mxu0 0.0
      %3088 = vmatpush2.msra.mxu0 0.0
      %3089 = vmatprep.subr.mxu0 0.0
      %3090 = vmatpush2.msra.mxu0 0.0
      %3091 = vmatprep.subr.mxu0 0.0
      %3092 = vmatpush2.msra.mxu0 0.0
      %3093 = vmatprep.subr.mxu0 0.0
      %3094 = vmatpush2.msra.mxu0 0.0
      %3095 = vmatprep.subr.mxu0 0.0
      %3096 = vmatpush2.msra.mxu0 0.0
      %3097 = vmatprep.subr.mxu0 0.0
      %3098 = vmatpush2.msra.mxu0 0.0
      %3099 = vmatprep.mubr.f32.mxu0 0.0
      %3100 = vmatmul.mubr.f32.gmra.mxu0 %v2962
      %v3101 = vpop.f32.mrf.mxu0
      %v3102 = vadd.f32 0.0, %v3101
      %v3103 = vpop.f32.mrf.mxu0
      %3104 = vdwg.mxu0
      %v3105 = vadd.f32 %v2934, %v3031
      %v3106 = vadd.f32 %v2935, %v3033
      %v3107 = vadd.f32 %v2936, %v3102
      %s3108 = scalar_lea.vmem %s3, 56
      %v3109 = vld [vmem:[%s3108] sm:$0xff]
      %3110 = vrot.lane.b32.xlu0 %v1900, 110
      %v3111 = vpop.permute.xlu0 %3110
      %3112 = vrot.lane.b32.xlu0 %v1901, 110
      %v3113 = vpop.permute.xlu0 %3112
      %3114 = vrot.lane.b32.xlu0 %v1902, 110
      %v3115 = vpop.permute.xlu0 %3114
      %3116 = vrot.lane.b32.xlu0 %v1904, 110
      %v3117 = vpop.permute.xlu0 %3116
      %3118 = vrot.lane.b32.xlu0 %v1905, 110
      %v3119 = vpop.permute.xlu0 %3118
      %3120 = vrot.lane.b32.xlu0 %v1906, 110
      %v3121 = vpop.permute.xlu0 %3120
      %v3122 = vsel %vm1551, %v3111, %v3113
      %v3123 = vsel %vm1551, %v3113, %v3115
      %v3124 = vsel %vm1551, %v3117, %v3119
      %v3125 = vsel %vm1551, %v3119, %v3121
      %v3133 = vsel %vm1946, %v3109, 0
      %3135 = vmatprep.subr.mxu0 0.0
      %3136 = vmatpush1.msra.mxu0 0.0
      %3137 = vmatprep.subr.mxu0 0.0
      %3138 = vmatpush1.msra.mxu0 0.0
      %3139 = vmatprep.subr.mxu0 0.0
      %3140 = vmatpush1.msra.mxu0 0.0
      %3141 = vmatprep.subr.mxu0 0.0
      %3142 = vmatpush1.msra.mxu0 0.0
      %3143 = vmatprep.subr.mxu0 0.0
      %3144 = vmatpush1.msra.mxu0 0.0
      %3145 = vmatprep.subr.mxu0 0.0
      %3146 = vmatpush1.msra.mxu0 0.0
      %3147 = vmatprep.subr.mxu0 0.0
      %3148 = vmatpush1.msra.mxu0 0.0
      %3149 = vmatprep.subr.mxu0 0.0
      %3150 = vmatpush1.msra.mxu0 0.0
      %3151 = vmatprep.subr.mxu0 0.0
      %3152 = vmatpush1.msra.mxu0 0.0
      %3153 = vmatprep.subr.mxu0 0.0
      %3154 = vmatpush1.msra.mxu0 0.0
      %3155 = vmatprep.subr.mxu0 0.0
      %3156 = vmatpush1.msra.mxu0 0.0
      %3157 = vmatprep.subr.mxu0 0.0
      %3158 = vmatpush1.msra.mxu0 0.0
      %3159 = vmatprep.subr.mxu0 0.0
      %3160 = vmatpush1.msra.mxu0 0.0
      %3161 = vmatprep.subr.mxu0 0.0
      %3162 = vmatpush1.msra.mxu0 0.0
      %3163 = vmatprep.subr.mxu0 %v3125
      %3164 = vmatpush1.msra.mxu0 %v3124
      %3165 = vmatprep.subr.mxu0 %v3123
      %3166 = vmatpush1.msra.mxu0 %v3122
      %3167 = vmatprep.subr.mxu0 0.0
      %3168 = vmatpush2.msra.mxu0 0.0
      %3169 = vmatprep.subr.mxu0 0.0
      %3170 = vmatpush2.msra.mxu0 0.0
      %3171 = vmatprep.subr.mxu0 0.0
      %3172 = vmatpush2.msra.mxu0 0.0
      %3173 = vmatprep.subr.mxu0 0.0
      %3174 = vmatpush2.msra.mxu0 0.0
      %3175 = vmatprep.subr.mxu0 0.0
      %3176 = vmatpush2.msra.mxu0 0.0
      %3177 = vmatprep.subr.mxu0 0.0
      %3178 = vmatpush2.msra.mxu0 0.0
      %3179 = vmatprep.subr.mxu0 0.0
      %3180 = vmatpush2.msra.mxu0 0.0
      %3181 = vmatprep.subr.mxu0 0.0
      %3182 = vmatpush2.msra.mxu0 0.0
      %3183 = vmatprep.subr.mxu0 0.0
      %3184 = vmatpush2.msra.mxu0 0.0
      %3185 = vmatprep.subr.mxu0 0.0
      %3186 = vmatpush2.msra.mxu0 0.0
      %3187 = vmatprep.subr.mxu0 0.0
      %3188 = vmatpush2.msra.mxu0 0.0
      %3189 = vmatprep.subr.mxu0 0.0
      %3190 = vmatpush2.msra.mxu0 0.0
      %3191 = vmatprep.subr.mxu0 0.0
      %3192 = vmatpush2.msra.mxu0 0.0
      %3193 = vmatprep.subr.mxu0 0.0
      %3194 = vmatpush2.msra.mxu0 0.0
      %3195 = vmatprep.subr.mxu0 0.0
      %3196 = vmatpush2.msra.mxu0 0.0
      %3197 = vmatprep.subr.mxu0 0.0
      %3198 = vmatpush2.msra.mxu0 0.0
      %3199 = vmatprep.mubr.f32.mxu0 0.0
      %3200 = vmatmul.mubr.f32.gmra.mxu0 %v3133
      %v3201 = vpop.f32.mrf.mxu0
      %v3202 = vadd.f32 0.0, %v3201
      %v3203 = vpop.f32.mrf.mxu0
      %v3204 = vadd.f32 0.0, %v3203
      %3205 = vdwg.mxu0
      %3206 = vmatprep.subr.mxu0 0.0
      %3207 = vmatpush1.msra.mxu0 0.0
      %3208 = vmatprep.subr.mxu0 0.0
      %3209 = vmatpush1.msra.mxu0 0.0
      %3210 = vmatprep.subr.mxu0 0.0
      %3211 = vmatpush1.msra.mxu0 0.0
      %3212 = vmatprep.subr.mxu0 0.0
      %3213 = vmatpush1.msra.mxu0 0.0
      %3214 = vmatprep.subr.mxu0 0.0
      %3215 = vmatpush1.msra.mxu0 0.0
      %3216 = vmatprep.subr.mxu0 0.0
      %3217 = vmatpush1.msra.mxu0 0.0
      %3218 = vmatprep.subr.mxu0 0.0
      %3219 = vmatpush1.msra.mxu0 0.0
      %3220 = vmatprep.subr.mxu0 0.0
      %3221 = vmatpush1.msra.mxu0 0.0
      %3222 = vmatprep.subr.mxu0 0.0
      %3223 = vmatpush1.msra.mxu0 0.0
      %3224 = vmatprep.subr.mxu0 0.0
      %3225 = vmatpush1.msra.mxu0 0.0
      %3226 = vmatprep.subr.mxu0 0.0
      %3227 = vmatpush1.msra.mxu0 0.0
      %3228 = vmatprep.subr.mxu0 0.0
      %3229 = vmatpush1.msra.mxu0 0.0
      %3230 = vmatprep.subr.mxu0 0.0
      %3231 = vmatpush1.msra.mxu0 0.0
      %3232 = vmatprep.subr.mxu0 0.0
      %3233 = vmatpush1.msra.mxu0 0.0
      %3234 = vmatprep.subr.mxu0 0.0
      %3235 = vmatpush1.msra.mxu0 %v3121
      %3236 = vmatprep.subr.mxu0 0.0
      %3237 = vmatpush1.msra.mxu0 %v3115
      %3238 = vmatprep.subr.mxu0 0.0
      %3239 = vmatpush2.msra.mxu0 0.0
      %3240 = vmatprep.subr.mxu0 0.0
      %3241 = vmatpush2.msra.mxu0 0.0
      %3242 = vmatprep.subr.mxu0 0.0
      %3243 = vmatpush2.msra.mxu0 0.0
      %3244 = vmatprep.subr.mxu0 0.0
      %3245 = vmatpush2.msra.mxu0 0.0
      %3246 = vmatprep.subr.mxu0 0.0
      %3247 = vmatpush2.msra.mxu0 0.0
      %3248 = vmatprep.subr.mxu0 0.0
      %3249 = vmatpush2.msra.mxu0 0.0
      %3250 = vmatprep.subr.mxu0 0.0
      %3251 = vmatpush2.msra.mxu0 0.0
      %3252 = vmatprep.subr.mxu0 0.0
      %3253 = vmatpush2.msra.mxu0 0.0
      %3254 = vmatprep.subr.mxu0 0.0
      %3255 = vmatpush2.msra.mxu0 0.0
      %3256 = vmatprep.subr.mxu0 0.0
      %3257 = vmatpush2.msra.mxu0 0.0
      %3258 = vmatprep.subr.mxu0 0.0
      %3259 = vmatpush2.msra.mxu0 0.0
      %3260 = vmatprep.subr.mxu0 0.0
      %3261 = vmatpush2.msra.mxu0 0.0
      %3262 = vmatprep.subr.mxu0 0.0
      %3263 = vmatpush2.msra.mxu0 0.0
      %3264 = vmatprep.subr.mxu0 0.0
      %3265 = vmatpush2.msra.mxu0 0.0
      %3266 = vmatprep.subr.mxu0 0.0
      %3267 = vmatpush2.msra.mxu0 0.0
      %3268 = vmatprep.subr.mxu0 0.0
      %3269 = vmatpush2.msra.mxu0 0.0
      %3270 = vmatprep.mubr.f32.mxu0 0.0
      %3271 = vmatmul.mubr.f32.gmra.mxu0 %v3133
      %v3272 = vpop.f32.mrf.mxu0
      %v3273 = vadd.f32 0.0, %v3272
      %v3274 = vpop.f32.mrf.mxu0
      %3275 = vdwg.mxu0
      %v3276 = vadd.f32 %v3105, %v3202
      %v3277 = vadd.f32 %v3106, %v3204
      %v3278 = vadd.f32 %v3107, %v3273
      %s3279 = scalar_lea.vmem %s3, 64
      %v3280 = vld [vmem:[%s3279] sm:$0xff]
      %3281 = vrot.lane.b32.xlu0 %v1900, 109
      %v3282 = vpop.permute.xlu0 %3281
      %3283 = vrot.lane.b32.xlu0 %v1901, 109
      %v3284 = vpop.permute.xlu0 %3283
      %3285 = vrot.lane.b32.xlu0 %v1902, 109
      %v3286 = vpop.permute.xlu0 %3285
      %3287 = vrot.lane.b32.xlu0 %v1904, 109
      %v3288 = vpop.permute.xlu0 %3287
      %3289 = vrot.lane.b32.xlu0 %v1905, 109
      %v3290 = vpop.permute.xlu0 %3289
      %3291 = vrot.lane.b32.xlu0 %v1906, 109
      %v3292 = vpop.permute.xlu0 %3291
      %v3293 = vsel %vm1712, %v3282, %v3284
      %v3294 = vsel %vm1712, %v3284, %v3286
      %v3295 = vsel %vm1712, %v3288, %v3290
      %v3296 = vsel %vm1712, %v3290, %v3292
      %v3304 = vsel %vm1946, %v3280, 0
      %3306 = vmatprep.subr.mxu0 0.0
      %3307 = vmatpush1.msra.mxu0 0.0
      %3308 = vmatprep.subr.mxu0 0.0
      %3309 = vmatpush1.msra.mxu0 0.0
      %3310 = vmatprep.subr.mxu0 0.0
      %3311 = vmatpush1.msra.mxu0 0.0
      %3312 = vmatprep.subr.mxu0 0.0
      %3313 = vmatpush1.msra.mxu0 0.0
      %3314 = vmatprep.subr.mxu0 0.0
      %3315 = vmatpush1.msra.mxu0 0.0
      %3316 = vmatprep.subr.mxu0 0.0
      %3317 = vmatpush1.msra.mxu0 0.0
      %3318 = vmatprep.subr.mxu0 0.0
      %3319 = vmatpush1.msra.mxu0 0.0
      %3320 = vmatprep.subr.mxu0 0.0
      %3321 = vmatpush1.msra.mxu0 0.0
      %3322 = vmatprep.subr.mxu0 0.0
      %3323 = vmatpush1.msra.mxu0 0.0
      %3324 = vmatprep.subr.mxu0 0.0
      %3325 = vmatpush1.msra.mxu0 0.0
      %3326 = vmatprep.subr.mxu0 0.0
      %3327 = vmatpush1.msra.mxu0 0.0
      %3328 = vmatprep.subr.mxu0 0.0
      %3329 = vmatpush1.msra.mxu0 0.0
      %3330 = vmatprep.subr.mxu0 0.0
      %3331 = vmatpush1.msra.mxu0 0.0
      %3332 = vmatprep.subr.mxu0 0.0
      %3333 = vmatpush1.msra.mxu0 0.0
      %3334 = vmatprep.subr.mxu0 %v3296
      %3335 = vmatpush1.msra.mxu0 %v3295
      %3336 = vmatprep.subr.mxu0 %v3294
      %3337 = vmatpush1.msra.mxu0 %v3293
      %3338 = vmatprep.subr.mxu0 0.0
      %3339 = vmatpush2.msra.mxu0 0.0
      %3340 = vmatprep.subr.mxu0 0.0
      %3341 = vmatpush2.msra.mxu0 0.0
      %3342 = vmatprep.subr.mxu0 0.0
      %3343 = vmatpush2.msra.mxu0 0.0
      %3344 = vmatprep.subr.mxu0 0.0
      %3345 = vmatpush2.msra.mxu0 0.0
      %3346 = vmatprep.subr.mxu0 0.0
      %3347 = vmatpush2.msra.mxu0 0.0
      %3348 = vmatprep.subr.mxu0 0.0
      %3349 = vmatpush2.msra.mxu0 0.0
      %3350 = vmatprep.subr.mxu0 0.0
      %3351 = vmatpush2.msra.mxu0 0.0
      %3352 = vmatprep.subr.mxu0 0.0
      %3353 = vmatpush2.msra.mxu0 0.0
      %3354 = vmatprep.subr.mxu0 0.0
      %3355 = vmatpush2.msra.mxu0 0.0
      %3356 = vmatprep.subr.mxu0 0.0
      %3357 = vmatpush2.msra.mxu0 0.0
      %3358 = vmatprep.subr.mxu0 0.0
      %3359 = vmatpush2.msra.mxu0 0.0
      %3360 = vmatprep.subr.mxu0 0.0
      %3361 = vmatpush2.msra.mxu0 0.0
      %3362 = vmatprep.subr.mxu0 0.0
      %3363 = vmatpush2.msra.mxu0 0.0
      %3364 = vmatprep.subr.mxu0 0.0
      %3365 = vmatpush2.msra.mxu0 0.0
      %3366 = vmatprep.subr.mxu0 0.0
      %3367 = vmatpush2.msra.mxu0 0.0
      %3368 = vmatprep.subr.mxu0 0.0
      %3369 = vmatpush2.msra.mxu0 0.0
      %3370 = vmatprep.mubr.f32.mxu0 0.0
      %3371 = vmatmul.mubr.f32.gmra.mxu0 %v3304
      %v3372 = vpop.f32.mrf.mxu0
      %v3373 = vadd.f32 0.0, %v3372
      %v3374 = vpop.f32.mrf.mxu0
      %v3375 = vadd.f32 0.0, %v3374
      %3376 = vdwg.mxu0
      %3377 = vmatprep.subr.mxu0 0.0
      %3378 = vmatpush1.msra.mxu0 0.0
      %3379 = vmatprep.subr.mxu0 0.0
      %3380 = vmatpush1.msra.mxu0 0.0
      %3381 = vmatprep.subr.mxu0 0.0
      %3382 = vmatpush1.msra.mxu0 0.0
      %3383 = vmatprep.subr.mxu0 0.0
      %3384 = vmatpush1.msra.mxu0 0.0
      %3385 = vmatprep.subr.mxu0 0.0
      %3386 = vmatpush1.msra.mxu0 0.0
      %3387 = vmatprep.subr.mxu0 0.0
      %3388 = vmatpush1.msra.mxu0 0.0
      %3389 = vmatprep.subr.mxu0 0.0
      %3390 = vmatpush1.msra.mxu0 0.0
      %3391 = vmatprep.subr.mxu0 0.0
      %3392 = vmatpush1.msra.mxu0 0.0
      %3393 = vmatprep.subr.mxu0 0.0
      %3394 = vmatpush1.msra.mxu0 0.0
      %3395 = vmatprep.subr.mxu0 0.0
      %3396 = vmatpush1.msra.mxu0 0.0
      %3397 = vmatprep.subr.mxu0 0.0
      %3398 = vmatpush1.msra.mxu0 0.0
      %3399 = vmatprep.subr.mxu0 0.0
      %3400 = vmatpush1.msra.mxu0 0.0
      %3401 = vmatprep.subr.mxu0 0.0
      %3402 = vmatpush1.msra.mxu0 0.0
      %3403 = vmatprep.subr.mxu0 0.0
      %3404 = vmatpush1.msra.mxu0 0.0
      %3405 = vmatprep.subr.mxu0 0.0
      %3406 = vmatpush1.msra.mxu0 %v3292
      %3407 = vmatprep.subr.mxu0 0.0
      %3408 = vmatpush1.msra.mxu0 %v3286
      %3409 = vmatprep.subr.mxu0 0.0
      %3410 = vmatpush2.msra.mxu0 0.0
      %3411 = vmatprep.subr.mxu0 0.0
      %3412 = vmatpush2.msra.mxu0 0.0
      %3413 = vmatprep.subr.mxu0 0.0
      %3414 = vmatpush2.msra.mxu0 0.0
      %3415 = vmatprep.subr.mxu0 0.0
      %3416 = vmatpush2.msra.mxu0 0.0
      %3417 = vmatprep.subr.mxu0 0.0
      %3418 = vmatpush2.msra.mxu0 0.0
      %3419 = vmatprep.subr.mxu0 0.0
      %3420 = vmatpush2.msra.mxu0 0.0
      %3421 = vmatprep.subr.mxu0 0.0
      %3422 = vmatpush2.msra.mxu0 0.0
      %3423 = vmatprep.subr.mxu0 0.0
      %3424 = vmatpush2.msra.mxu0 0.0
      %3425 = vmatprep.subr.mxu0 0.0
      %3426 = vmatpush2.msra.mxu0 0.0
      %3427 = vmatprep.subr.mxu0 0.0
      %3428 = vmatpush2.msra.mxu0 0.0
      %3429 = vmatprep.subr.mxu0 0.0
      %3430 = vmatpush2.msra.mxu0 0.0
      %3431 = vmatprep.subr.mxu0 0.0
      %3432 = vmatpush2.msra.mxu0 0.0
      %3433 = vmatprep.subr.mxu0 0.0
      %3434 = vmatpush2.msra.mxu0 0.0
      %3435 = vmatprep.subr.mxu0 0.0
      %3436 = vmatpush2.msra.mxu0 0.0
      %3437 = vmatprep.subr.mxu0 0.0
      %3438 = vmatpush2.msra.mxu0 0.0
      %3439 = vmatprep.subr.mxu0 0.0
      %3440 = vmatpush2.msra.mxu0 0.0
      %3441 = vmatprep.mubr.f32.mxu0 0.0
      %3442 = vmatmul.mubr.f32.gmra.mxu0 %v3304
      %v3443 = vpop.f32.mrf.mxu0
      %v3444 = vadd.f32 0.0, %v3443
      %v3445 = vpop.f32.mrf.mxu0
      %3446 = vdwg.mxu0
      %v3447 = vadd.f32 %v3276, %v3373
      %v3448 = vadd.f32 %v3277, %v3375
      %v3449 = vadd.f32 %v3278, %v3444
      %v3450 = vld [vmem:[%s4] sm:$0xff]
      %3452 = vset.pattern.permute.xlu0 0
      %3453 = vperm.xlu0 %3452, %v3450
      %v3454 = vpop.permute.xlu0 %3453
      %v3456 = vadd.f32 %v3447, %v3454
      %v3457 = vadd.f32 %v3448, %v3454
      %v3458 = vadd.f32 %v3449, %v3454
      %v3459 = vmax.f32 %v3456, 0.0
      %v3460 = vmax.f32 %v3457, 0.0
      %v3461 = vmax.f32 %v3458, 0.0
      %v3462 = vmul.f32 %v3459, %v1881
      %v3463 = vmul.f32 %v3460, %v1885
      %v3464 = vmul.f32 %v3461, %v1889
      %3465 = vst [vmem:[#allocation2 + $0x48] sm:$0xff] %v3462
      %3466 = vst [vmem:[#allocation2 + $0x50] sm:$0xff] %v3463
      %3467 = vst.msk [vmem:[#allocation2 + $0x58] sm:$0xff] %vm412, %v3464
      %v3468 = vld [vmem:[#allocation2] sm:$0xff]
      %v3469 = vld [vmem:[#allocation2 + $0x8] sm:$0xff]
      %v3470 = vld [vmem:[#allocation2 + $0x10] sm:$0xff]
      %v3471 = vld [vmem:[#allocation2 + $0x18] sm:$0xff]
      %v3472 = vld [vmem:[#allocation2 + $0x20] sm:$0xff]
      %v3473 = vld [vmem:[#allocation2 + $0x28] sm:$0xff]
      %v3474 = vld [vmem:[#allocation2 + $0x30] sm:$0xff]
      %v3475 = vld [vmem:[#allocation2 + $0x38] sm:$0xff]
      %v3476 = vld [vmem:[#allocation2 + $0x40] sm:$0xff]
      %v3477 = vld [vmem:[#allocation2 + $0x48] sm:$0xff]
      %v3478 = vld [vmem:[#allocation2 + $0x50] sm:$0xff]
      %v3479 = vld [vmem:[#allocation2 + $0x58] sm:$0xff]
      %v3480 = vld [vmem:[%s5] sm:$0xff]
      %s3481 = scalar_lea.vmem %s5, 8
      %v3482 = vld [vmem:[%s3481] sm:$0xff]
      %3495 = vrot.lane.b32.xlu0 %v3468, 18
      %v3496 = vpop.permute.xlu0 %3495
      %3497 = vrot.lane.b32.xlu0 %v3469, 18
      %v3498 = vpop.permute.xlu0 %3497
      %3499 = vrot.lane.b32.xlu0 %v3470, 18
      %v3500 = vpop.permute.xlu0 %3499
      %3501 = vrot.lane.b32.xlu0 %v3471, 18
      %v3502 = vpop.permute.xlu0 %3501
      %3503 = vrot.lane.b32.xlu0 %v3472, 18
      %v3504 = vpop.permute.xlu0 %3503
      %3505 = vrot.lane.b32.xlu0 %v3473, 18
      %v3506 = vpop.permute.xlu0 %3505
      %3507 = vrot.lane.b32.xlu0 %v3474, 18
      %v3508 = vpop.permute.xlu0 %3507
      %3509 = vrot.lane.b32.xlu0 %v3475, 18
      %v3510 = vpop.permute.xlu0 %3509
      %3511 = vrot.lane.b32.xlu0 %v3476, 18
      %v3512 = vpop.permute.xlu0 %3511
      %3513 = vrot.lane.b32.xlu0 %v3477, 18
      %v3514 = vpop.permute.xlu0 %3513
      %3515 = vrot.lane.b32.xlu0 %v3478, 18
      %v3516 = vpop.permute.xlu0 %3515
      %3517 = vrot.lane.b32.xlu0 %v3479, 18
      %v3518 = vpop.permute.xlu0 %3517
      %v3519 = vsel %vm433, %v3496, %v3498
      %v3520 = vsel %vm433, %v3498, %v3500
      %v3521 = vsel %vm433, %v3500, %v3502
      %v3522 = vsel %vm433, %v3504, %v3506
      %v3523 = vsel %vm433, %v3506, %v3508
      %v3524 = vsel %vm433, %v3508, %v3510
      %v3525 = vsel %vm433, %v3512, %v3514
      %v3526 = vsel %vm433, %v3514, %v3516
      %v3527 = vsel %vm433, %v3516, %v3518
      %vm3537 = vcmask 195584
      %v3539 = vsel %vm3537, %v3482, 0
      %3541 = vmatprep.subr.mxu0 0.0
      %3542 = vmatpush1.msra.mxu0 0.0
      %3543 = vmatprep.subr.mxu0 0.0
      %3544 = vmatpush1.msra.mxu0 0.0
      %3545 = vmatprep.subr.mxu0 0.0
      %3546 = vmatpush1.msra.mxu0 0.0
      %3547 = vmatprep.subr.mxu0 0.0
      %3548 = vmatpush1.msra.mxu0 0.0
      %3549 = vmatprep.subr.mxu0 0.0
      %3550 = vmatpush1.msra.mxu0 0.0
      %3551 = vmatprep.subr.mxu0 0.0
      %3552 = vmatpush1.msra.mxu0 0.0
      %3553 = vmatprep.subr.mxu0 0.0
      %3554 = vmatpush1.msra.mxu0 0.0
      %3555 = vmatprep.subr.mxu0 0.0
      %3556 = vmatpush1.msra.mxu0 0.0
      %3557 = vmatprep.subr.mxu0 0.0
      %3558 = vmatpush1.msra.mxu0 0.0
      %3559 = vmatprep.subr.mxu0 0.0
      %3560 = vmatpush1.msra.mxu0 0.0
      %3561 = vmatprep.subr.mxu0 0.0
      %3562 = vmatpush1.msra.mxu0 0.0
      %3563 = vmatprep.subr.mxu0 0.0
      %3564 = vmatpush1.msra.mxu0 0.0
      %3565 = vmatprep.subr.mxu0 0.0
      %3566 = vmatpush1.msra.mxu0 0.0
      %3567 = vmatprep.subr.mxu0 %v3526
      %3568 = vmatpush1.msra.mxu0 %v3525
      %3569 = vmatprep.subr.mxu0 %v3523
      %3570 = vmatpush1.msra.mxu0 %v3522
      %3571 = vmatprep.subr.mxu0 %v3520
      %3572 = vmatpush1.msra.mxu0 %v3519
      %3573 = vmatprep.subr.mxu0 0.0
      %3574 = vmatpush2.msra.mxu0 0.0
      %3575 = vmatprep.subr.mxu0 0.0
      %3576 = vmatpush2.msra.mxu0 0.0
      %3577 = vmatprep.subr.mxu0 0.0
      %3578 = vmatpush2.msra.mxu0 0.0
      %3579 = vmatprep.subr.mxu0 0.0
      %3580 = vmatpush2.msra.mxu0 0.0
      %3581 = vmatprep.subr.mxu0 0.0
      %3582 = vmatpush2.msra.mxu0 0.0
      %3583 = vmatprep.subr.mxu0 0.0
      %3584 = vmatpush2.msra.mxu0 0.0
      %3585 = vmatprep.subr.mxu0 0.0
      %3586 = vmatpush2.msra.mxu0 0.0
      %3587 = vmatprep.subr.mxu0 0.0
      %3588 = vmatpush2.msra.mxu0 0.0
      %3589 = vmatprep.subr.mxu0 0.0
      %3590 = vmatpush2.msra.mxu0 0.0
      %3591 = vmatprep.subr.mxu0 0.0
      %3592 = vmatpush2.msra.mxu0 0.0
      %3593 = vmatprep.subr.mxu0 0.0
      %3594 = vmatpush2.msra.mxu0 0.0
      %3595 = vmatprep.subr.mxu0 0.0
      %3596 = vmatpush2.msra.mxu0 0.0
      %3597 = vmatprep.subr.mxu0 0.0
      %3598 = vmatpush2.msra.mxu0 0.0
      %3599 = vmatprep.subr.mxu0 0.0
      %3600 = vmatpush2.msra.mxu0 0.0
      %3601 = vmatprep.subr.mxu0 0.0
      %3602 = vmatpush2.msra.mxu0 0.0
      %3603 = vmatprep.subr.mxu0 0.0
      %3604 = vmatpush2.msra.mxu0 0.0
      %3605 = vmatprep.mubr.f32.mxu0 0.0
      %3606 = vmatmul.mubr.f32.gmra.mxu0 %v3539
      %v3607 = vpop.f32.mrf.mxu0
      %v3608 = vadd.f32 0.0, %v3607
      %v3609 = vpop.f32.mrf.mxu0
      %v3610 = vadd.f32 0.0, %v3609
      %3611 = vdwg.mxu0
      %3612 = vmatprep.subr.mxu0 0.0
      %3613 = vmatpush1.msra.mxu0 0.0
      %3614 = vmatprep.subr.mxu0 0.0
      %3615 = vmatpush1.msra.mxu0 0.0
      %3616 = vmatprep.subr.mxu0 0.0
      %3617 = vmatpush1.msra.mxu0 0.0
      %3618 = vmatprep.subr.mxu0 0.0
      %3619 = vmatpush1.msra.mxu0 0.0
      %3620 = vmatprep.subr.mxu0 0.0
      %3621 = vmatpush1.msra.mxu0 0.0
      %3622 = vmatprep.subr.mxu0 0.0
      %3623 = vmatpush1.msra.mxu0 0.0
      %3624 = vmatprep.subr.mxu0 0.0
      %3625 = vmatpush1.msra.mxu0 0.0
      %3626 = vmatprep.subr.mxu0 0.0
      %3627 = vmatpush1.msra.mxu0 0.0
      %3628 = vmatprep.subr.mxu0 0.0
      %3629 = vmatpush1.msra.mxu0 0.0
      %3630 = vmatprep.subr.mxu0 0.0
      %3631 = vmatpush1.msra.mxu0 0.0
      %3632 = vmatprep.subr.mxu0 0.0
      %3633 = vmatpush1.msra.mxu0 0.0
      %3634 = vmatprep.subr.mxu0 0.0
      %3635 = vmatpush1.msra.mxu0 0.0
      %3636 = vmatprep.subr.mxu0 0.0
      %3637 = vmatpush1.msra.mxu0 0.0
      %3638 = vmatprep.subr.mxu0 0.0
      %3639 = vmatpush1.msra.mxu0 %v3527
      %3640 = vmatprep.subr.mxu0 0.0
      %3641 = vmatpush1.msra.mxu0 %v3524
      %3642 = vmatprep.subr.mxu0 0.0
      %3643 = vmatpush1.msra.mxu0 %v3521
      %3644 = vmatprep.subr.mxu0 0.0
      %3645 = vmatpush2.msra.mxu0 0.0
      %3646 = vmatprep.subr.mxu0 0.0
      %3647 = vmatpush2.msra.mxu0 0.0
      %3648 = vmatprep.subr.mxu0 0.0
      %3649 = vmatpush2.msra.mxu0 0.0
      %3650 = vmatprep.subr.mxu0 0.0
      %3651 = vmatpush2.msra.mxu0 0.0
      %3652 = vmatprep.subr.mxu0 0.0
      %3653 = vmatpush2.msra.mxu0 0.0
      %3654 = vmatprep.subr.mxu0 0.0
      %3655 = vmatpush2.msra.mxu0 0.0
      %3656 = vmatprep.subr.mxu0 0.0
      %3657 = vmatpush2.msra.mxu0 0.0
      %3658 = vmatprep.subr.mxu0 0.0
      %3659 = vmatpush2.msra.mxu0 0.0
      %3660 = vmatprep.subr.mxu0 0.0
      %3661 = vmatpush2.msra.mxu0 0.0
      %3662 = vmatprep.subr.mxu0 0.0
      %3663 = vmatpush2.msra.mxu0 0.0
      %3664 = vmatprep.subr.mxu0 0.0
      %3665 = vmatpush2.msra.mxu0 0.0
      %3666 = vmatprep.subr.mxu0 0.0
      %3667 = vmatpush2.msra.mxu0 0.0
      %3668 = vmatprep.subr.mxu0 0.0
      %3669 = vmatpush2.msra.mxu0 0.0
      %3670 = vmatprep.subr.mxu0 0.0
      %3671 = vmatpush2.msra.mxu0 0.0
      %3672 = vmatprep.subr.mxu0 0.0
      %3673 = vmatpush2.msra.mxu0 0.0
      %3674 = vmatprep.subr.mxu0 0.0
      %3675 = vmatpush2.msra.mxu0 0.0
      %3676 = vmatprep.mubr.f32.mxu0 0.0
      %3677 = vmatmul.mubr.f32.gmra.mxu0 %v3539
      %v3678 = vpop.f32.mrf.mxu0
      %v3679 = vadd.f32 0.0, %v3678
      %v3680 = vpop.f32.mrf.mxu0
      %3681 = vdwg.mxu0
      %3682 = vrot.lane.b32.xlu0 %v3468, 19
      %v3683 = vpop.permute.xlu0 %3682
      %3684 = vrot.lane.b32.xlu0 %v3469, 19
      %v3685 = vpop.permute.xlu0 %3684
      %3686 = vrot.lane.b32.xlu0 %v3470, 19
      %v3687 = vpop.permute.xlu0 %3686
      %3688 = vrot.lane.b32.xlu0 %v3471, 19
      %v3689 = vpop.permute.xlu0 %3688
      %3690 = vrot.lane.b32.xlu0 %v3472, 19
      %v3691 = vpop.permute.xlu0 %3690
      %3692 = vrot.lane.b32.xlu0 %v3473, 19
      %v3693 = vpop.permute.xlu0 %3692
      %3694 = vrot.lane.b32.xlu0 %v3474, 19
      %v3695 = vpop.permute.xlu0 %3694
      %3696 = vrot.lane.b32.xlu0 %v3475, 19
      %v3697 = vpop.permute.xlu0 %3696
      %3698 = vrot.lane.b32.xlu0 %v3476, 19
      %v3699 = vpop.permute.xlu0 %3698
      %3700 = vrot.lane.b32.xlu0 %v3477, 19
      %v3701 = vpop.permute.xlu0 %3700
      %3702 = vrot.lane.b32.xlu0 %v3478, 19
      %v3703 = vpop.permute.xlu0 %3702
      %3704 = vrot.lane.b32.xlu0 %v3479, 19
      %v3705 = vpop.permute.xlu0 %3704
      %v3706 = vsel %vm593, %v3683, %v3685
      %v3707 = vsel %vm593, %v3685, %v3687
      %v3708 = vsel %vm593, %v3687, %v3689
      %v3709 = vsel %vm593, %v3691, %v3693
      %v3710 = vsel %vm593, %v3693, %v3695
      %v3711 = vsel %vm593, %v3695, %v3697
      %v3712 = vsel %vm593, %v3699, %v3701
      %v3713 = vsel %vm593, %v3701, %v3703
      %v3714 = vsel %vm593, %v3703, %v3705
      %v3725 = vsel %vm3537, %v3480, 0
      %3727 = vmatprep.subr.mxu0 0.0
      %3728 = vmatpush1.msra.mxu0 0.0
      %3729 = vmatprep.subr.mxu0 0.0
      %3730 = vmatpush1.msra.mxu0 0.0
      %3731 = vmatprep.subr.mxu0 0.0
      %3732 = vmatpush1.msra.mxu0 0.0
      %3733 = vmatprep.subr.mxu0 0.0
      %3734 = vmatpush1.msra.mxu0 0.0
      %3735 = vmatprep.subr.mxu0 0.0
      %3736 = vmatpush1.msra.mxu0 0.0
      %3737 = vmatprep.subr.mxu0 0.0
      %3738 = vmatpush1.msra.mxu0 0.0
      %3739 = vmatprep.subr.mxu0 0.0
      %3740 = vmatpush1.msra.mxu0 0.0
      %3741 = vmatprep.subr.mxu0 0.0
      %3742 = vmatpush1.msra.mxu0 0.0
      %3743 = vmatprep.subr.mxu0 0.0
      %3744 = vmatpush1.msra.mxu0 0.0
      %3745 = vmatprep.subr.mxu0 0.0
      %3746 = vmatpush1.msra.mxu0 0.0
      %3747 = vmatprep.subr.mxu0 0.0
      %3748 = vmatpush1.msra.mxu0 0.0
      %3749 = vmatprep.subr.mxu0 0.0
      %3750 = vmatpush1.msra.mxu0 0.0
      %3751 = vmatprep.subr.mxu0 0.0
      %3752 = vmatpush1.msra.mxu0 0.0
      %3753 = vmatprep.subr.mxu0 %v3713
      %3754 = vmatpush1.msra.mxu0 %v3712
      %3755 = vmatprep.subr.mxu0 %v3710
      %3756 = vmatpush1.msra.mxu0 %v3709
      %3757 = vmatprep.subr.mxu0 %v3707
      %3758 = vmatpush1.msra.mxu0 %v3706
      %3759 = vmatprep.subr.mxu0 0.0
      %3760 = vmatpush2.msra.mxu0 0.0
      %3761 = vmatprep.subr.mxu0 0.0
      %3762 = vmatpush2.msra.mxu0 0.0
      %3763 = vmatprep.subr.mxu0 0.0
      %3764 = vmatpush2.msra.mxu0 0.0
      %3765 = vmatprep.subr.mxu0 0.0
      %3766 = vmatpush2.msra.mxu0 0.0
      %3767 = vmatprep.subr.mxu0 0.0
      %3768 = vmatpush2.msra.mxu0 0.0
      %3769 = vmatprep.subr.mxu0 0.0
      %3770 = vmatpush2.msra.mxu0 0.0
      %3771 = vmatprep.subr.mxu0 0.0
      %3772 = vmatpush2.msra.mxu0 0.0
      %3773 = vmatprep.subr.mxu0 0.0
      %3774 = vmatpush2.msra.mxu0 0.0
      %3775 = vmatprep.subr.mxu0 0.0
      %3776 = vmatpush2.msra.mxu0 0.0
      %3777 = vmatprep.subr.mxu0 0.0
      %3778 = vmatpush2.msra.mxu0 0.0
      %3779 = vmatprep.subr.mxu0 0.0
      %3780 = vmatpush2.msra.mxu0 0.0
      %3781 = vmatprep.subr.mxu0 0.0
      %3782 = vmatpush2.msra.mxu0 0.0
      %3783 = vmatprep.subr.mxu0 0.0
      %3784 = vmatpush2.msra.mxu0 0.0
      %3785 = vmatprep.subr.mxu0 0.0
      %3786 = vmatpush2.msra.mxu0 0.0
      %3787 = vmatprep.subr.mxu0 0.0
      %3788 = vmatpush2.msra.mxu0 0.0
      %3789 = vmatprep.subr.mxu0 0.0
      %3790 = vmatpush2.msra.mxu0 0.0
      %3791 = vmatprep.mubr.f32.mxu0 0.0
      %3792 = vmatmul.mubr.f32.gmra.mxu0 %v3725
      %v3793 = vpop.f32.mrf.mxu0
      %v3794 = vadd.f32 %v3608, %v3793
      %v3795 = vpop.f32.mrf.mxu0
      %v3796 = vadd.f32 %v3610, %v3795
      %3797 = vdwg.mxu0
      %3798 = vmatprep.subr.mxu0 0.0
      %3799 = vmatpush1.msra.mxu0 0.0
      %3800 = vmatprep.subr.mxu0 0.0
      %3801 = vmatpush1.msra.mxu0 0.0
      %3802 = vmatprep.subr.mxu0 0.0
      %3803 = vmatpush1.msra.mxu0 0.0
      %3804 = vmatprep.subr.mxu0 0.0
      %3805 = vmatpush1.msra.mxu0 0.0
      %3806 = vmatprep.subr.mxu0 0.0
      %3807 = vmatpush1.msra.mxu0 0.0
      %3808 = vmatprep.subr.mxu0 0.0
      %3809 = vmatpush1.msra.mxu0 0.0
      %3810 = vmatprep.subr.mxu0 0.0
      %3811 = vmatpush1.msra.mxu0 0.0
      %3812 = vmatprep.subr.mxu0 0.0
      %3813 = vmatpush1.msra.mxu0 0.0
      %3814 = vmatprep.subr.mxu0 0.0
      %3815 = vmatpush1.msra.mxu0 0.0
      %3816 = vmatprep.subr.mxu0 0.0
      %3817 = vmatpush1.msra.mxu0 0.0
      %3818 = vmatprep.subr.mxu0 0.0
      %3819 = vmatpush1.msra.mxu0 0.0
      %3820 = vmatprep.subr.mxu0 0.0
      %3821 = vmatpush1.msra.mxu0 0.0
      %3822 = vmatprep.subr.mxu0 0.0
      %3823 = vmatpush1.msra.mxu0 0.0
      %3824 = vmatprep.subr.mxu0 0.0
      %3825 = vmatpush1.msra.mxu0 %v3714
      %3826 = vmatprep.subr.mxu0 0.0
      %3827 = vmatpush1.msra.mxu0 %v3711
      %3828 = vmatprep.subr.mxu0 0.0
      %3829 = vmatpush1.msra.mxu0 %v3708
      %3830 = vmatprep.subr.mxu0 0.0
      %3831 = vmatpush2.msra.mxu0 0.0
      %3832 = vmatprep.subr.mxu0 0.0
      %3833 = vmatpush2.msra.mxu0 0.0
      %3834 = vmatprep.subr.mxu0 0.0
      %3835 = vmatpush2.msra.mxu0 0.0
      %3836 = vmatprep.subr.mxu0 0.0
      %3837 = vmatpush2.msra.mxu0 0.0
      %3838 = vmatprep.subr.mxu0 0.0
      %3839 = vmatpush2.msra.mxu0 0.0
      %3840 = vmatprep.subr.mxu0 0.0
      %3841 = vmatpush2.msra.mxu0 0.0
      %3842 = vmatprep.subr.mxu0 0.0
      %3843 = vmatpush2.msra.mxu0 0.0
      %3844 = vmatprep.subr.mxu0 0.0
      %3845 = vmatpush2.msra.mxu0 0.0
      %3846 = vmatprep.subr.mxu0 0.0
      %3847 = vmatpush2.msra.mxu0 0.0
      %3848 = vmatprep.subr.mxu0 0.0
      %3849 = vmatpush2.msra.mxu0 0.0
      %3850 = vmatprep.subr.mxu0 0.0
      %3851 = vmatpush2.msra.mxu0 0.0
      %3852 = vmatprep.subr.mxu0 0.0
      %3853 = vmatpush2.msra.mxu0 0.0
      %3854 = vmatprep.subr.mxu0 0.0
      %3855 = vmatpush2.msra.mxu0 0.0
      %3856 = vmatprep.subr.mxu0 0.0
      %3857 = vmatpush2.msra.mxu0 0.0
      %3858 = vmatprep.subr.mxu0 0.0
      %3859 = vmatpush2.msra.mxu0 0.0
      %3860 = vmatprep.subr.mxu0 0.0
      %3861 = vmatpush2.msra.mxu0 0.0
      %3862 = vmatprep.mubr.f32.mxu0 0.0
      %3863 = vmatmul.mubr.f32.gmra.mxu0 %v3725
      %v3864 = vpop.f32.mrf.mxu0
      %v3865 = vadd.f32 %v3679, %v3864
      %v3866 = vpop.f32.mrf.mxu0
      %3867 = vdwg.mxu0
      %s3868 = scalar_lea.vmem %s5, 16
      %v3869 = vld [vmem:[%s3868] sm:$0xff]
      %3870 = vrot.lane.b32.xlu0 %v3468, 17
      %v3871 = vpop.permute.xlu0 %3870
      %3872 = vrot.lane.b32.xlu0 %v3469, 17
      %v3873 = vpop.permute.xlu0 %3872
      %3874 = vrot.lane.b32.xlu0 %v3470, 17
      %v3875 = vpop.permute.xlu0 %3874
      %3876 = vrot.lane.b32.xlu0 %v3471, 17
      %v3877 = vpop.permute.xlu0 %3876
      %3878 = vrot.lane.b32.xlu0 %v3472, 17
      %v3879 = vpop.permute.xlu0 %3878
      %3880 = vrot.lane.b32.xlu0 %v3473, 17
      %v3881 = vpop.permute.xlu0 %3880
      %3882 = vrot.lane.b32.xlu0 %v3474, 17
      %v3883 = vpop.permute.xlu0 %3882
      %3884 = vrot.lane.b32.xlu0 %v3475, 17
      %v3885 = vpop.permute.xlu0 %3884
      %3886 = vrot.lane.b32.xlu0 %v3476, 17
      %v3887 = vpop.permute.xlu0 %3886
      %3888 = vrot.lane.b32.xlu0 %v3477, 17
      %v3889 = vpop.permute.xlu0 %3888
      %3890 = vrot.lane.b32.xlu0 %v3478, 17
      %v3891 = vpop.permute.xlu0 %3890
      %3892 = vrot.lane.b32.xlu0 %v3479, 17
      %v3893 = vpop.permute.xlu0 %3892
      %v3894 = vsel %vm754, %v3871, %v3873
      %v3895 = vsel %vm754, %v3873, %v3875
      %v3896 = vsel %vm754, %v3875, %v3877
      %v3897 = vsel %vm754, %v3879, %v3881
      %v3898 = vsel %vm754, %v3881, %v3883
      %v3899 = vsel %vm754, %v3883, %v3885
      %v3900 = vsel %vm754, %v3887, %v3889
      %v3901 = vsel %vm754, %v3889, %v3891
      %v3902 = vsel %vm754, %v3891, %v3893
      %v3913 = vsel %vm3537, %v3869, 0
      %3915 = vmatprep.subr.mxu0 0.0
      %3916 = vmatpush1.msra.mxu0 0.0
      %3917 = vmatprep.subr.mxu0 0.0
      %3918 = vmatpush1.msra.mxu0 0.0
      %3919 = vmatprep.subr.mxu0 0.0
      %3920 = vmatpush1.msra.mxu0 0.0
      %3921 = vmatprep.subr.mxu0 0.0
      %3922 = vmatpush1.msra.mxu0 0.0
      %3923 = vmatprep.subr.mxu0 0.0
      %3924 = vmatpush1.msra.mxu0 0.0
      %3925 = vmatprep.subr.mxu0 0.0
      %3926 = vmatpush1.msra.mxu0 0.0
      %3927 = vmatprep.subr.mxu0 0.0
      %3928 = vmatpush1.msra.mxu0 0.0
      %3929 = vmatprep.subr.mxu0 0.0
      %3930 = vmatpush1.msra.mxu0 0.0
      %3931 = vmatprep.subr.mxu0 0.0
      %3932 = vmatpush1.msra.mxu0 0.0
      %3933 = vmatprep.subr.mxu0 0.0
      %3934 = vmatpush1.msra.mxu0 0.0
      %3935 = vmatprep.subr.mxu0 0.0
      %3936 = vmatpush1.msra.mxu0 0.0
      %3937 = vmatprep.subr.mxu0 0.0
      %3938 = vmatpush1.msra.mxu0 0.0
      %3939 = vmatprep.subr.mxu0 0.0
      %3940 = vmatpush1.msra.mxu0 0.0
      %3941 = vmatprep.subr.mxu0 %v3901
      %3942 = vmatpush1.msra.mxu0 %v3900
      %3943 = vmatprep.subr.mxu0 %v3898
      %3944 = vmatpush1.msra.mxu0 %v3897
      %3945 = vmatprep.subr.mxu0 %v3895
      %3946 = vmatpush1.msra.mxu0 %v3894
      %3947 = vmatprep.subr.mxu0 0.0
      %3948 = vmatpush2.msra.mxu0 0.0
      %3949 = vmatprep.subr.mxu0 0.0
      %3950 = vmatpush2.msra.mxu0 0.0
      %3951 = vmatprep.subr.mxu0 0.0
      %3952 = vmatpush2.msra.mxu0 0.0
      %3953 = vmatprep.subr.mxu0 0.0
      %3954 = vmatpush2.msra.mxu0 0.0
      %3955 = vmatprep.subr.mxu0 0.0
      %3956 = vmatpush2.msra.mxu0 0.0
      %3957 = vmatprep.subr.mxu0 0.0
      %3958 = vmatpush2.msra.mxu0 0.0
      %3959 = vmatprep.subr.mxu0 0.0
      %3960 = vmatpush2.msra.mxu0 0.0
      %3961 = vmatprep.subr.mxu0 0.0
      %3962 = vmatpush2.msra.mxu0 0.0
      %3963 = vmatprep.subr.mxu0 0.0
      %3964 = vmatpush2.msra.mxu0 0.0
      %3965 = vmatprep.subr.mxu0 0.0
      %3966 = vmatpush2.msra.mxu0 0.0
      %3967 = vmatprep.subr.mxu0 0.0
      %3968 = vmatpush2.msra.mxu0 0.0
      %3969 = vmatprep.subr.mxu0 0.0
      %3970 = vmatpush2.msra.mxu0 0.0
      %3971 = vmatprep.subr.mxu0 0.0
      %3972 = vmatpush2.msra.mxu0 0.0
      %3973 = vmatprep.subr.mxu0 0.0
      %3974 = vmatpush2.msra.mxu0 0.0
      %3975 = vmatprep.subr.mxu0 0.0
      %3976 = vmatpush2.msra.mxu0 0.0
      %3977 = vmatprep.subr.mxu0 0.0
      %3978 = vmatpush2.msra.mxu0 0.0
      %3979 = vmatprep.mubr.f32.mxu0 0.0
      %3980 = vmatmul.mubr.f32.gmra.mxu0 %v3913
      %v3981 = vpop.f32.mrf.mxu0
      %v3982 = vadd.f32 0.0, %v3981
      %v3983 = vpop.f32.mrf.mxu0
      %v3984 = vadd.f32 0.0, %v3983
      %3985 = vdwg.mxu0
      %3986 = vmatprep.subr.mxu0 0.0
      %3987 = vmatpush1.msra.mxu0 0.0
      %3988 = vmatprep.subr.mxu0 0.0
      %3989 = vmatpush1.msra.mxu0 0.0
      %3990 = vmatprep.subr.mxu0 0.0
      %3991 = vmatpush1.msra.mxu0 0.0
      %3992 = vmatprep.subr.mxu0 0.0
      %3993 = vmatpush1.msra.mxu0 0.0
      %3994 = vmatprep.subr.mxu0 0.0
      %3995 = vmatpush1.msra.mxu0 0.0
      %3996 = vmatprep.subr.mxu0 0.0
      %3997 = vmatpush1.msra.mxu0 0.0
      %3998 = vmatprep.subr.mxu0 0.0
      %3999 = vmatpush1.msra.mxu0 0.0
      %4000 = vmatprep.subr.mxu0 0.0
      %4001 = vmatpush1.msra.mxu0 0.0
      %4002 = vmatprep.subr.mxu0 0.0
      %4003 = vmatpush1.msra.mxu0 0.0
      %4004 = vmatprep.subr.mxu0 0.0
      %4005 = vmatpush1.msra.mxu0 0.0
      %4006 = vmatprep.subr.mxu0 0.0
      %4007 = vmatpush1.msra.mxu0 0.0
      %4008 = vmatprep.subr.mxu0 0.0
      %4009 = vmatpush1.msra.mxu0 0.0
      %4010 = vmatprep.subr.mxu0 0.0
      %4011 = vmatpush1.msra.mxu0 0.0
      %4012 = vmatprep.subr.mxu0 0.0
      %4013 = vmatpush1.msra.mxu0 %v3902
      %4014 = vmatprep.subr.mxu0 0.0
      %4015 = vmatpush1.msra.mxu0 %v3899
      %4016 = vmatprep.subr.mxu0 0.0
      %4017 = vmatpush1.msra.mxu0 %v3896
      %4018 = vmatprep.subr.mxu0 0.0
      %4019 = vmatpush2.msra.mxu0 0.0
      %4020 = vmatprep.subr.mxu0 0.0
      %4021 = vmatpush2.msra.mxu0 0.0
      %4022 = vmatprep.subr.mxu0 0.0
      %4023 = vmatpush2.msra.mxu0 0.0
      %4024 = vmatprep.subr.mxu0 0.0
      %4025 = vmatpush2.msra.mxu0 0.0
      %4026 = vmatprep.subr.mxu0 0.0
      %4027 = vmatpush2.msra.mxu0 0.0
      %4028 = vmatprep.subr.mxu0 0.0
      %4029 = vmatpush2.msra.mxu0 0.0
      %4030 = vmatprep.subr.mxu0 0.0
      %4031 = vmatpush2.msra.mxu0 0.0
      %4032 = vmatprep.subr.mxu0 0.0
      %4033 = vmatpush2.msra.mxu0 0.0
      %4034 = vmatprep.subr.mxu0 0.0
      %4035 = vmatpush2.msra.mxu0 0.0
      %4036 = vmatprep.subr.mxu0 0.0
      %4037 = vmatpush2.msra.mxu0 0.0
      %4038 = vmatprep.subr.mxu0 0.0
      %4039 = vmatpush2.msra.mxu0 0.0
      %4040 = vmatprep.subr.mxu0 0.0
      %4041 = vmatpush2.msra.mxu0 0.0
      %4042 = vmatprep.subr.mxu0 0.0
      %4043 = vmatpush2.msra.mxu0 0.0
      %4044 = vmatprep.subr.mxu0 0.0
      %4045 = vmatpush2.msra.mxu0 0.0
      %4046 = vmatprep.subr.mxu0 0.0
      %4047 = vmatpush2.msra.mxu0 0.0
      %4048 = vmatprep.subr.mxu0 0.0
      %4049 = vmatpush2.msra.mxu0 0.0
      %4050 = vmatprep.mubr.f32.mxu0 0.0
      %4051 = vmatmul.mubr.f32.gmra.mxu0 %v3913
      %v4052 = vpop.f32.mrf.mxu0
      %v4053 = vadd.f32 0.0, %v4052
      %v4054 = vpop.f32.mrf.mxu0
      %4055 = vdwg.mxu0
      %v4056 = vadd.f32 %v3794, %v3982
      %v4057 = vadd.f32 %v3796, %v3984
      %v4058 = vadd.f32 %v3865, %v4053
      %s4059 = scalar_lea.vmem %s5, 24
      %v4060 = vld [vmem:[%s4059] sm:$0xff]
      %4061 = vrot.lane.b32.xlu0 %v3468, 1
      %v4062 = vpop.permute.xlu0 %4061
      %4063 = vrot.lane.b32.xlu0 %v3469, 1
      %v4064 = vpop.permute.xlu0 %4063
      %4065 = vrot.lane.b32.xlu0 %v3470, 1
      %v4066 = vpop.permute.xlu0 %4065
      %4067 = vrot.lane.b32.xlu0 %v3471, 1
      %v4068 = vpop.permute.xlu0 %4067
      %4069 = vrot.lane.b32.xlu0 %v3472, 1
      %v4070 = vpop.permute.xlu0 %4069
      %4071 = vrot.lane.b32.xlu0 %v3473, 1
      %v4072 = vpop.permute.xlu0 %4071
      %4073 = vrot.lane.b32.xlu0 %v3474, 1
      %v4074 = vpop.permute.xlu0 %4073
      %4075 = vrot.lane.b32.xlu0 %v3475, 1
      %v4076 = vpop.permute.xlu0 %4075
      %4077 = vrot.lane.b32.xlu0 %v3476, 1
      %v4078 = vpop.permute.xlu0 %4077
      %4079 = vrot.lane.b32.xlu0 %v3477, 1
      %v4080 = vpop.permute.xlu0 %4079
      %4081 = vrot.lane.b32.xlu0 %v3478, 1
      %v4082 = vpop.permute.xlu0 %4081
      %4083 = vrot.lane.b32.xlu0 %v3479, 1
      %v4084 = vpop.permute.xlu0 %4083
      %v4085 = vsel %vm918, %v4062, %v4064
      %v4086 = vsel %vm918, %v4064, %v4066
      %v4087 = vsel %vm918, %v4066, %v4068
      %v4088 = vsel %vm918, %v4070, %v4072
      %v4089 = vsel %vm918, %v4072, %v4074
      %v4090 = vsel %vm918, %v4074, %v4076
      %v4091 = vsel %vm918, %v4078, %v4080
      %v4092 = vsel %vm918, %v4080, %v4082
      %v4093 = vsel %vm918, %v4082, %v4084
      %v4104 = vsel %vm3537, %v4060, 0
      %4106 = vmatprep.subr.mxu0 0.0
      %4107 = vmatpush1.msra.mxu0 0.0
      %4108 = vmatprep.subr.mxu0 0.0
      %4109 = vmatpush1.msra.mxu0 0.0
      %4110 = vmatprep.subr.mxu0 0.0
      %4111 = vmatpush1.msra.mxu0 0.0
      %4112 = vmatprep.subr.mxu0 0.0
      %4113 = vmatpush1.msra.mxu0 0.0
      %4114 = vmatprep.subr.mxu0 0.0
      %4115 = vmatpush1.msra.mxu0 0.0
      %4116 = vmatprep.subr.mxu0 0.0
      %4117 = vmatpush1.msra.mxu0 0.0
      %4118 = vmatprep.subr.mxu0 0.0
      %4119 = vmatpush1.msra.mxu0 0.0
      %4120 = vmatprep.subr.mxu0 0.0
      %4121 = vmatpush1.msra.mxu0 0.0
      %4122 = vmatprep.subr.mxu0 0.0
      %4123 = vmatpush1.msra.mxu0 0.0
      %4124 = vmatprep.subr.mxu0 0.0
      %4125 = vmatpush1.msra.mxu0 0.0
      %4126 = vmatprep.subr.mxu0 0.0
      %4127 = vmatpush1.msra.mxu0 0.0
      %4128 = vmatprep.subr.mxu0 0.0
      %4129 = vmatpush1.msra.mxu0 0.0
      %4130 = vmatprep.subr.mxu0 0.0
      %4131 = vmatpush1.msra.mxu0 0.0
      %4132 = vmatprep.subr.mxu0 %v4092
      %4133 = vmatpush1.msra.mxu0 %v4091
      %4134 = vmatprep.subr.mxu0 %v4089
      %4135 = vmatpush1.msra.mxu0 %v4088
      %4136 = vmatprep.subr.mxu0 %v4086
      %4137 = vmatpush1.msra.mxu0 %v4085
      %4138 = vmatprep.subr.mxu0 0.0
      %4139 = vmatpush2.msra.mxu0 0.0
      %4140 = vmatprep.subr.mxu0 0.0
      %4141 = vmatpush2.msra.mxu0 0.0
      %4142 = vmatprep.subr.mxu0 0.0
      %4143 = vmatpush2.msra.mxu0 0.0
      %4144 = vmatprep.subr.mxu0 0.0
      %4145 = vmatpush2.msra.mxu0 0.0
      %4146 = vmatprep.subr.mxu0 0.0
      %4147 = vmatpush2.msra.mxu0 0.0
      %4148 = vmatprep.subr.mxu0 0.0
      %4149 = vmatpush2.msra.mxu0 0.0
      %4150 = vmatprep.subr.mxu0 0.0
      %4151 = vmatpush2.msra.mxu0 0.0
      %4152 = vmatprep.subr.mxu0 0.0
      %4153 = vmatpush2.msra.mxu0 0.0
      %4154 = vmatprep.subr.mxu0 0.0
      %4155 = vmatpush2.msra.mxu0 0.0
      %4156 = vmatprep.subr.mxu0 0.0
      %4157 = vmatpush2.msra.mxu0 0.0
      %4158 = vmatprep.subr.mxu0 0.0
      %4159 = vmatpush2.msra.mxu0 0.0
      %4160 = vmatprep.subr.mxu0 0.0
      %4161 = vmatpush2.msra.mxu0 0.0
      %4162 = vmatprep.subr.mxu0 0.0
      %4163 = vmatpush2.msra.mxu0 0.0
      %4164 = vmatprep.subr.mxu0 0.0
      %4165 = vmatpush2.msra.mxu0 0.0
      %4166 = vmatprep.subr.mxu0 0.0
      %4167 = vmatpush2.msra.mxu0 0.0
      %4168 = vmatprep.subr.mxu0 0.0
      %4169 = vmatpush2.msra.mxu0 0.0
      %4170 = vmatprep.mubr.f32.mxu0 0.0
      %4171 = vmatmul.mubr.f32.gmra.mxu0 %v4104
      %v4172 = vpop.f32.mrf.mxu0
      %v4173 = vadd.f32 0.0, %v4172
      %v4174 = vpop.f32.mrf.mxu0
      %v4175 = vadd.f32 0.0, %v4174
      %4176 = vdwg.mxu0
      %4177 = vmatprep.subr.mxu0 0.0
      %4178 = vmatpush1.msra.mxu0 0.0
      %4179 = vmatprep.subr.mxu0 0.0
      %4180 = vmatpush1.msra.mxu0 0.0
      %4181 = vmatprep.subr.mxu0 0.0
      %4182 = vmatpush1.msra.mxu0 0.0
      %4183 = vmatprep.subr.mxu0 0.0
      %4184 = vmatpush1.msra.mxu0 0.0
      %4185 = vmatprep.subr.mxu0 0.0
      %4186 = vmatpush1.msra.mxu0 0.0
      %4187 = vmatprep.subr.mxu0 0.0
      %4188 = vmatpush1.msra.mxu0 0.0
      %4189 = vmatprep.subr.mxu0 0.0
      %4190 = vmatpush1.msra.mxu0 0.0
      %4191 = vmatprep.subr.mxu0 0.0
      %4192 = vmatpush1.msra.mxu0 0.0
      %4193 = vmatprep.subr.mxu0 0.0
      %4194 = vmatpush1.msra.mxu0 0.0
      %4195 = vmatprep.subr.mxu0 0.0
      %4196 = vmatpush1.msra.mxu0 0.0
      %4197 = vmatprep.subr.mxu0 0.0
      %4198 = vmatpush1.msra.mxu0 0.0
      %4199 = vmatprep.subr.mxu0 0.0
      %4200 = vmatpush1.msra.mxu0 0.0
      %4201 = vmatprep.subr.mxu0 0.0
      %4202 = vmatpush1.msra.mxu0 0.0
      %4203 = vmatprep.subr.mxu0 0.0
      %4204 = vmatpush1.msra.mxu0 %v4093
      %4205 = vmatprep.subr.mxu0 0.0
      %4206 = vmatpush1.msra.mxu0 %v4090
      %4207 = vmatprep.subr.mxu0 0.0
      %4208 = vmatpush1.msra.mxu0 %v4087
      %4209 = vmatprep.subr.mxu0 0.0
      %4210 = vmatpush2.msra.mxu0 0.0
      %4211 = vmatprep.subr.mxu0 0.0
      %4212 = vmatpush2.msra.mxu0 0.0
      %4213 = vmatprep.subr.mxu0 0.0
      %4214 = vmatpush2.msra.mxu0 0.0
      %4215 = vmatprep.subr.mxu0 0.0
      %4216 = vmatpush2.msra.mxu0 0.0
      %4217 = vmatprep.subr.mxu0 0.0
      %4218 = vmatpush2.msra.mxu0 0.0
      %4219 = vmatprep.subr.mxu0 0.0
      %4220 = vmatpush2.msra.mxu0 0.0
      %4221 = vmatprep.subr.mxu0 0.0
      %4222 = vmatpush2.msra.mxu0 0.0
      %4223 = vmatprep.subr.mxu0 0.0
      %4224 = vmatpush2.msra.mxu0 0.0
      %4225 = vmatprep.subr.mxu0 0.0
      %4226 = vmatpush2.msra.mxu0 0.0
      %4227 = vmatprep.subr.mxu0 0.0
      %4228 = vmatpush2.msra.mxu0 0.0
      %4229 = vmatprep.subr.mxu0 0.0
      %4230 = vmatpush2.msra.mxu0 0.0
      %4231 = vmatprep.subr.mxu0 0.0
      %4232 = vmatpush2.msra.mxu0 0.0
      %4233 = vmatprep.subr.mxu0 0.0
      %4234 = vmatpush2.msra.mxu0 0.0
      %4235 = vmatprep.subr.mxu0 0.0
      %4236 = vmatpush2.msra.mxu0 0.0
      %4237 = vmatprep.subr.mxu0 0.0
      %4238 = vmatpush2.msra.mxu0 0.0
      %4239 = vmatprep.subr.mxu0 0.0
      %4240 = vmatpush2.msra.mxu0 0.0
      %4241 = vmatprep.mubr.f32.mxu0 0.0
      %4242 = vmatmul.mubr.f32.gmra.mxu0 %v4104
      %v4243 = vpop.f32.mrf.mxu0
      %v4244 = vadd.f32 0.0, %v4243
      %v4245 = vpop.f32.mrf.mxu0
      %4246 = vdwg.mxu0
      %v4247 = vadd.f32 %v4056, %v4173
      %v4248 = vadd.f32 %v4057, %v4175
      %v4249 = vadd.f32 %v4058, %v4244
      %s4250 = scalar_lea.vmem %s5, 32
      %v4251 = vld [vmem:[%s4250] sm:$0xff]
      %v4253 = vsel %vm3537, %v4251, 0
      %4255 = vmatprep.subr.mxu0 0.0
      %4256 = vmatpush1.msra.mxu0 0.0
      %4257 = vmatprep.subr.mxu0 0.0
      %4258 = vmatpush1.msra.mxu0 0.0
      %4259 = vmatprep.subr.mxu0 0.0
      %4260 = vmatpush1.msra.mxu0 0.0
      %4261 = vmatprep.subr.mxu0 0.0
      %4262 = vmatpush1.msra.mxu0 0.0
      %4263 = vmatprep.subr.mxu0 0.0
      %4264 = vmatpush1.msra.mxu0 0.0
      %4265 = vmatprep.subr.mxu0 0.0
      %4266 = vmatpush1.msra.mxu0 0.0
      %4267 = vmatprep.subr.mxu0 0.0
      %4268 = vmatpush1.msra.mxu0 0.0
      %4269 = vmatprep.subr.mxu0 0.0
      %4270 = vmatpush1.msra.mxu0 0.0
      %4271 = vmatprep.subr.mxu0 0.0
      %4272 = vmatpush1.msra.mxu0 0.0
      %4273 = vmatprep.subr.mxu0 0.0
      %4274 = vmatpush1.msra.mxu0 0.0
      %4275 = vmatprep.subr.mxu0 0.0
      %4276 = vmatpush1.msra.mxu0 0.0
      %4277 = vmatprep.subr.mxu0 0.0
      %4278 = vmatpush1.msra.mxu0 0.0
      %4279 = vmatprep.subr.mxu0 0.0
      %4280 = vmatpush1.msra.mxu0 0.0
      %4281 = vmatprep.subr.mxu0 %v3478
      %4282 = vmatpush1.msra.mxu0 %v3477
      %4283 = vmatprep.subr.mxu0 %v3474
      %4284 = vmatpush1.msra.mxu0 %v3473
      %4285 = vmatprep.subr.mxu0 %v3470
      %4286 = vmatpush1.msra.mxu0 %v3469
      %4287 = vmatprep.subr.mxu0 0.0
      %4288 = vmatpush2.msra.mxu0 0.0
      %4289 = vmatprep.subr.mxu0 0.0
      %4290 = vmatpush2.msra.mxu0 0.0
      %4291 = vmatprep.subr.mxu0 0.0
      %4292 = vmatpush2.msra.mxu0 0.0
      %4293 = vmatprep.subr.mxu0 0.0
      %4294 = vmatpush2.msra.mxu0 0.0
      %4295 = vmatprep.subr.mxu0 0.0
      %4296 = vmatpush2.msra.mxu0 0.0
      %4297 = vmatprep.subr.mxu0 0.0
      %4298 = vmatpush2.msra.mxu0 0.0
      %4299 = vmatprep.subr.mxu0 0.0
      %4300 = vmatpush2.msra.mxu0 0.0
      %4301 = vmatprep.subr.mxu0 0.0
      %4302 = vmatpush2.msra.mxu0 0.0
      %4303 = vmatprep.subr.mxu0 0.0
      %4304 = vmatpush2.msra.mxu0 0.0
      %4305 = vmatprep.subr.mxu0 0.0
      %4306 = vmatpush2.msra.mxu0 0.0
      %4307 = vmatprep.subr.mxu0 0.0
      %4308 = vmatpush2.msra.mxu0 0.0
      %4309 = vmatprep.subr.mxu0 0.0
      %4310 = vmatpush2.msra.mxu0 0.0
      %4311 = vmatprep.subr.mxu0 0.0
      %4312 = vmatpush2.msra.mxu0 0.0
      %4313 = vmatprep.subr.mxu0 0.0
      %4314 = vmatpush2.msra.mxu0 0.0
      %4315 = vmatprep.subr.mxu0 0.0
      %4316 = vmatpush2.msra.mxu0 0.0
      %4317 = vmatprep.subr.mxu0 0.0
      %4318 = vmatpush2.msra.mxu0 0.0
      %4319 = vmatprep.mubr.f32.mxu0 0.0
      %4320 = vmatmul.mubr.f32.gmra.mxu0 %v4253
      %v4321 = vpop.f32.mrf.mxu0
      %v4322 = vadd.f32 0.0, %v4321
      %v4323 = vpop.f32.mrf.mxu0
      %v4324 = vadd.f32 0.0, %v4323
      %4325 = vdwg.mxu0
      %4326 = vmatprep.subr.mxu0 0.0
      %4327 = vmatpush1.msra.mxu0 0.0
      %4328 = vmatprep.subr.mxu0 0.0
      %4329 = vmatpush1.msra.mxu0 0.0
      %4330 = vmatprep.subr.mxu0 0.0
      %4331 = vmatpush1.msra.mxu0 0.0
      %4332 = vmatprep.subr.mxu0 0.0
      %4333 = vmatpush1.msra.mxu0 0.0
      %4334 = vmatprep.subr.mxu0 0.0
      %4335 = vmatpush1.msra.mxu0 0.0
      %4336 = vmatprep.subr.mxu0 0.0
      %4337 = vmatpush1.msra.mxu0 0.0
      %4338 = vmatprep.subr.mxu0 0.0
      %4339 = vmatpush1.msra.mxu0 0.0
      %4340 = vmatprep.subr.mxu0 0.0
      %4341 = vmatpush1.msra.mxu0 0.0
      %4342 = vmatprep.subr.mxu0 0.0
      %4343 = vmatpush1.msra.mxu0 0.0
      %4344 = vmatprep.subr.mxu0 0.0
      %4345 = vmatpush1.msra.mxu0 0.0
      %4346 = vmatprep.subr.mxu0 0.0
      %4347 = vmatpush1.msra.mxu0 0.0
      %4348 = vmatprep.subr.mxu0 0.0
      %4349 = vmatpush1.msra.mxu0 0.0
      %4350 = vmatprep.subr.mxu0 0.0
      %4351 = vmatpush1.msra.mxu0 0.0
      %4352 = vmatprep.subr.mxu0 0.0
      %4353 = vmatpush1.msra.mxu0 %v3479
      %4354 = vmatprep.subr.mxu0 0.0
      %4355 = vmatpush1.msra.mxu0 %v3475
      %4356 = vmatprep.subr.mxu0 0.0
      %4357 = vmatpush1.msra.mxu0 %v3471
      %4358 = vmatprep.subr.mxu0 0.0
      %4359 = vmatpush2.msra.mxu0 0.0
      %4360 = vmatprep.subr.mxu0 0.0
      %4361 = vmatpush2.msra.mxu0 0.0
      %4362 = vmatprep.subr.mxu0 0.0
      %4363 = vmatpush2.msra.mxu0 0.0
      %4364 = vmatprep.subr.mxu0 0.0
      %4365 = vmatpush2.msra.mxu0 0.0
      %4366 = vmatprep.subr.mxu0 0.0
      %4367 = vmatpush2.msra.mxu0 0.0
      %4368 = vmatprep.subr.mxu0 0.0
      %4369 = vmatpush2.msra.mxu0 0.0
      %4370 = vmatprep.subr.mxu0 0.0
      %4371 = vmatpush2.msra.mxu0 0.0
      %4372 = vmatprep.subr.mxu0 0.0
      %4373 = vmatpush2.msra.mxu0 0.0
      %4374 = vmatprep.subr.mxu0 0.0
      %4375 = vmatpush2.msra.mxu0 0.0
      %4376 = vmatprep.subr.mxu0 0.0
      %4377 = vmatpush2.msra.mxu0 0.0
      %4378 = vmatprep.subr.mxu0 0.0
      %4379 = vmatpush2.msra.mxu0 0.0
      %4380 = vmatprep.subr.mxu0 0.0
      %4381 = vmatpush2.msra.mxu0 0.0
      %4382 = vmatprep.subr.mxu0 0.0
      %4383 = vmatpush2.msra.mxu0 0.0
      %4384 = vmatprep.subr.mxu0 0.0
      %4385 = vmatpush2.msra.mxu0 0.0
      %4386 = vmatprep.subr.mxu0 0.0
      %4387 = vmatpush2.msra.mxu0 0.0
      %4388 = vmatprep.subr.mxu0 0.0
      %4389 = vmatpush2.msra.mxu0 0.0
      %4390 = vmatprep.mubr.f32.mxu0 0.0
      %4391 = vmatmul.mubr.f32.gmra.mxu0 %v4253
      %v4392 = vpop.f32.mrf.mxu0
      %v4393 = vadd.f32 0.0, %v4392
      %v4394 = vpop.f32.mrf.mxu0
      %4395 = vdwg.mxu0
      %v4396 = vadd.f32 %v4247, %v4322
      %v4397 = vadd.f32 %v4248, %v4324
      %v4398 = vadd.f32 %v4249, %v4393
      %s4399 = scalar_lea.vmem %s5, 40
      %v4400 = vld [vmem:[%s4399] sm:$0xff]
      %4401 = vrot.lane.b32.xlu0 %v3469, 127
      %v4402 = vpop.permute.xlu0 %4401
      %4403 = vrot.lane.b32.xlu0 %v3470, 127
      %v4404 = vpop.permute.xlu0 %4403
      %4405 = vrot.lane.b32.xlu0 %v3471, 127
      %v4406 = vpop.permute.xlu0 %4405
      %4407 = vrot.lane.b32.xlu0 %v3473, 127
      %v4408 = vpop.permute.xlu0 %4407
      %4409 = vrot.lane.b32.xlu0 %v3474, 127
      %v4410 = vpop.permute.xlu0 %4409
      %4411 = vrot.lane.b32.xlu0 %v3475, 127
      %v4412 = vpop.permute.xlu0 %4411
      %4413 = vrot.lane.b32.xlu0 %v3477, 127
      %v4414 = vpop.permute.xlu0 %4413
      %4415 = vrot.lane.b32.xlu0 %v3478, 127
      %v4416 = vpop.permute.xlu0 %4415
      %4417 = vrot.lane.b32.xlu0 %v3479, 127
      %v4418 = vpop.permute.xlu0 %4417
      %v4419 = vsel %vm1229, %v4402, %v4404
      %v4420 = vsel %vm1229, %v4404, %v4406
      %v4421 = vsel %vm1229, %v4408, %v4410
      %v4422 = vsel %vm1229, %v4410, %v4412
      %v4423 = vsel %vm1229, %v4414, %v4416
      %v4424 = vsel %vm1229, %v4416, %v4418
      %v4435 = vsel %vm3537, %v4400, 0
      %4437 = vmatprep.subr.mxu0 0.0
      %4438 = vmatpush1.msra.mxu0 0.0
      %4439 = vmatprep.subr.mxu0 0.0
      %4440 = vmatpush1.msra.mxu0 0.0
      %4441 = vmatprep.subr.mxu0 0.0
      %4442 = vmatpush1.msra.mxu0 0.0
      %4443 = vmatprep.subr.mxu0 0.0
      %4444 = vmatpush1.msra.mxu0 0.0
      %4445 = vmatprep.subr.mxu0 0.0
      %4446 = vmatpush1.msra.mxu0 0.0
      %4447 = vmatprep.subr.mxu0 0.0
      %4448 = vmatpush1.msra.mxu0 0.0
      %4449 = vmatprep.subr.mxu0 0.0
      %4450 = vmatpush1.msra.mxu0 0.0
      %4451 = vmatprep.subr.mxu0 0.0
      %4452 = vmatpush1.msra.mxu0 0.0
      %4453 = vmatprep.subr.mxu0 0.0
      %4454 = vmatpush1.msra.mxu0 0.0
      %4455 = vmatprep.subr.mxu0 0.0
      %4456 = vmatpush1.msra.mxu0 0.0
      %4457 = vmatprep.subr.mxu0 0.0
      %4458 = vmatpush1.msra.mxu0 0.0
      %4459 = vmatprep.subr.mxu0 0.0
      %4460 = vmatpush1.msra.mxu0 0.0
      %4461 = vmatprep.subr.mxu0 0.0
      %4462 = vmatpush1.msra.mxu0 0.0
      %4463 = vmatprep.subr.mxu0 %v4424
      %4464 = vmatpush1.msra.mxu0 %v4423
      %4465 = vmatprep.subr.mxu0 %v4422
      %4466 = vmatpush1.msra.mxu0 %v4421
      %4467 = vmatprep.subr.mxu0 %v4420
      %4468 = vmatpush1.msra.mxu0 %v4419
      %4469 = vmatprep.subr.mxu0 0.0
      %4470 = vmatpush2.msra.mxu0 0.0
      %4471 = vmatprep.subr.mxu0 0.0
      %4472 = vmatpush2.msra.mxu0 0.0
      %4473 = vmatprep.subr.mxu0 0.0
      %4474 = vmatpush2.msra.mxu0 0.0
      %4475 = vmatprep.subr.mxu0 0.0
      %4476 = vmatpush2.msra.mxu0 0.0
      %4477 = vmatprep.subr.mxu0 0.0
      %4478 = vmatpush2.msra.mxu0 0.0
      %4479 = vmatprep.subr.mxu0 0.0
      %4480 = vmatpush2.msra.mxu0 0.0
      %4481 = vmatprep.subr.mxu0 0.0
      %4482 = vmatpush2.msra.mxu0 0.0
      %4483 = vmatprep.subr.mxu0 0.0
      %4484 = vmatpush2.msra.mxu0 0.0
      %4485 = vmatprep.subr.mxu0 0.0
      %4486 = vmatpush2.msra.mxu0 0.0
      %4487 = vmatprep.subr.mxu0 0.0
      %4488 = vmatpush2.msra.mxu0 0.0
      %4489 = vmatprep.subr.mxu0 0.0
      %4490 = vmatpush2.msra.mxu0 0.0
      %4491 = vmatprep.subr.mxu0 0.0
      %4492 = vmatpush2.msra.mxu0 0.0
      %4493 = vmatprep.subr.mxu0 0.0
      %4494 = vmatpush2.msra.mxu0 0.0
      %4495 = vmatprep.subr.mxu0 0.0
      %4496 = vmatpush2.msra.mxu0 0.0
      %4497 = vmatprep.subr.mxu0 0.0
      %4498 = vmatpush2.msra.mxu0 0.0
      %4499 = vmatprep.subr.mxu0 0.0
      %4500 = vmatpush2.msra.mxu0 0.0
      %4501 = vmatprep.mubr.f32.mxu0 0.0
      %4502 = vmatmul.mubr.f32.gmra.mxu0 %v4435
      %v4503 = vpop.f32.mrf.mxu0
      %v4504 = vadd.f32 0.0, %v4503
      %v4505 = vpop.f32.mrf.mxu0
      %v4506 = vadd.f32 0.0, %v4505
      %4507 = vdwg.mxu0
      %4508 = vmatprep.subr.mxu0 0.0
      %4509 = vmatpush1.msra.mxu0 0.0
      %4510 = vmatprep.subr.mxu0 0.0
      %4511 = vmatpush1.msra.mxu0 0.0
      %4512 = vmatprep.subr.mxu0 0.0
      %4513 = vmatpush1.msra.mxu0 0.0
      %4514 = vmatprep.subr.mxu0 0.0
      %4515 = vmatpush1.msra.mxu0 0.0
      %4516 = vmatprep.subr.mxu0 0.0
      %4517 = vmatpush1.msra.mxu0 0.0
      %4518 = vmatprep.subr.mxu0 0.0
      %4519 = vmatpush1.msra.mxu0 0.0
      %4520 = vmatprep.subr.mxu0 0.0
      %4521 = vmatpush1.msra.mxu0 0.0
      %4522 = vmatprep.subr.mxu0 0.0
      %4523 = vmatpush1.msra.mxu0 0.0
      %4524 = vmatprep.subr.mxu0 0.0
      %4525 = vmatpush1.msra.mxu0 0.0
      %4526 = vmatprep.subr.mxu0 0.0
      %4527 = vmatpush1.msra.mxu0 0.0
      %4528 = vmatprep.subr.mxu0 0.0
      %4529 = vmatpush1.msra.mxu0 0.0
      %4530 = vmatprep.subr.mxu0 0.0
      %4531 = vmatpush1.msra.mxu0 0.0
      %4532 = vmatprep.subr.mxu0 0.0
      %4533 = vmatpush1.msra.mxu0 0.0
      %4534 = vmatprep.subr.mxu0 0.0
      %4535 = vmatpush1.msra.mxu0 %v4418
      %4536 = vmatprep.subr.mxu0 0.0
      %4537 = vmatpush1.msra.mxu0 %v4412
      %4538 = vmatprep.subr.mxu0 0.0
      %4539 = vmatpush1.msra.mxu0 %v4406
      %4540 = vmatprep.subr.mxu0 0.0
      %4541 = vmatpush2.msra.mxu0 0.0
      %4542 = vmatprep.subr.mxu0 0.0
      %4543 = vmatpush2.msra.mxu0 0.0
      %4544 = vmatprep.subr.mxu0 0.0
      %4545 = vmatpush2.msra.mxu0 0.0
      %4546 = vmatprep.subr.mxu0 0.0
      %4547 = vmatpush2.msra.mxu0 0.0
      %4548 = vmatprep.subr.mxu0 0.0
      %4549 = vmatpush2.msra.mxu0 0.0
      %4550 = vmatprep.subr.mxu0 0.0
      %4551 = vmatpush2.msra.mxu0 0.0
      %4552 = vmatprep.subr.mxu0 0.0
      %4553 = vmatpush2.msra.mxu0 0.0
      %4554 = vmatprep.subr.mxu0 0.0
      %4555 = vmatpush2.msra.mxu0 0.0
      %4556 = vmatprep.subr.mxu0 0.0
      %4557 = vmatpush2.msra.mxu0 0.0
      %4558 = vmatprep.subr.mxu0 0.0
      %4559 = vmatpush2.msra.mxu0 0.0
      %4560 = vmatprep.subr.mxu0 0.0
      %4561 = vmatpush2.msra.mxu0 0.0
      %4562 = vmatprep.subr.mxu0 0.0
      %4563 = vmatpush2.msra.mxu0 0.0
      %4564 = vmatprep.subr.mxu0 0.0
      %4565 = vmatpush2.msra.mxu0 0.0
      %4566 = vmatprep.subr.mxu0 0.0
      %4567 = vmatpush2.msra.mxu0 0.0
      %4568 = vmatprep.subr.mxu0 0.0
      %4569 = vmatpush2.msra.mxu0 0.0
      %4570 = vmatprep.subr.mxu0 0.0
      %4571 = vmatpush2.msra.mxu0 0.0
      %4572 = vmatprep.mubr.f32.mxu0 0.0
      %4573 = vmatmul.mubr.f32.gmra.mxu0 %v4435
      %v4574 = vpop.f32.mrf.mxu0
      %v4575 = vadd.f32 0.0, %v4574
      %v4576 = vpop.f32.mrf.mxu0
      %4577 = vdwg.mxu0
      %v4578 = vadd.f32 %v4396, %v4504
      %v4579 = vadd.f32 %v4397, %v4506
      %v4580 = vadd.f32 %v4398, %v4575
      %s4581 = scalar_lea.vmem %s5, 48
      %v4582 = vld [vmem:[%s4581] sm:$0xff]
      %4583 = vrot.lane.b32.xlu0 %v3469, 111
      %v4584 = vpop.permute.xlu0 %4583
      %4585 = vrot.lane.b32.xlu0 %v3470, 111
      %v4586 = vpop.permute.xlu0 %4585
      %4587 = vrot.lane.b32.xlu0 %v3471, 111
      %v4588 = vpop.permute.xlu0 %4587
      %4589 = vrot.lane.b32.xlu0 %v3473, 111
      %v4590 = vpop.permute.xlu0 %4589
      %4591 = vrot.lane.b32.xlu0 %v3474, 111
      %v4592 = vpop.permute.xlu0 %4591
      %4593 = vrot.lane.b32.xlu0 %v3475, 111
      %v4594 = vpop.permute.xlu0 %4593
      %4595 = vrot.lane.b32.xlu0 %v3477, 111
      %v4596 = vpop.permute.xlu0 %4595
      %4597 = vrot.lane.b32.xlu0 %v3478, 111
      %v4598 = vpop.permute.xlu0 %4597
      %4599 = vrot.lane.b32.xlu0 %v3479, 111
      %v4600 = vpop.permute.xlu0 %4599
      %v4601 = vsel %vm1390, %v4584, %v4586
      %v4602 = vsel %vm1390, %v4586, %v4588
      %v4603 = vsel %vm1390, %v4590, %v4592
      %v4604 = vsel %vm1390, %v4592, %v4594
      %v4605 = vsel %vm1390, %v4596, %v4598
      %v4606 = vsel %vm1390, %v4598, %v4600
      %v4617 = vsel %vm3537, %v4582, 0
      %4619 = vmatprep.subr.mxu0 0.0
      %4620 = vmatpush1.msra.mxu0 0.0
      %4621 = vmatprep.subr.mxu0 0.0
      %4622 = vmatpush1.msra.mxu0 0.0
      %4623 = vmatprep.subr.mxu0 0.0
      %4624 = vmatpush1.msra.mxu0 0.0
      %4625 = vmatprep.subr.mxu0 0.0
      %4626 = vmatpush1.msra.mxu0 0.0
      %4627 = vmatprep.subr.mxu0 0.0
      %4628 = vmatpush1.msra.mxu0 0.0
      %4629 = vmatprep.subr.mxu0 0.0
      %4630 = vmatpush1.msra.mxu0 0.0
      %4631 = vmatprep.subr.mxu0 0.0
      %4632 = vmatpush1.msra.mxu0 0.0
      %4633 = vmatprep.subr.mxu0 0.0
      %4634 = vmatpush1.msra.mxu0 0.0
      %4635 = vmatprep.subr.mxu0 0.0
      %4636 = vmatpush1.msra.mxu0 0.0
      %4637 = vmatprep.subr.mxu0 0.0
      %4638 = vmatpush1.msra.mxu0 0.0
      %4639 = vmatprep.subr.mxu0 0.0
      %4640 = vmatpush1.msra.mxu0 0.0
      %4641 = vmatprep.subr.mxu0 0.0
      %4642 = vmatpush1.msra.mxu0 0.0
      %4643 = vmatprep.subr.mxu0 0.0
      %4644 = vmatpush1.msra.mxu0 0.0
      %4645 = vmatprep.subr.mxu0 %v4606
      %4646 = vmatpush1.msra.mxu0 %v4605
      %4647 = vmatprep.subr.mxu0 %v4604
      %4648 = vmatpush1.msra.mxu0 %v4603
      %4649 = vmatprep.subr.mxu0 %v4602
      %4650 = vmatpush1.msra.mxu0 %v4601
      %4651 = vmatprep.subr.mxu0 0.0
      %4652 = vmatpush2.msra.mxu0 0.0
      %4653 = vmatprep.subr.mxu0 0.0
      %4654 = vmatpush2.msra.mxu0 0.0
      %4655 = vmatprep.subr.mxu0 0.0
      %4656 = vmatpush2.msra.mxu0 0.0
      %4657 = vmatprep.subr.mxu0 0.0
      %4658 = vmatpush2.msra.mxu0 0.0
      %4659 = vmatprep.subr.mxu0 0.0
      %4660 = vmatpush2.msra.mxu0 0.0
      %4661 = vmatprep.subr.mxu0 0.0
      %4662 = vmatpush2.msra.mxu0 0.0
      %4663 = vmatprep.subr.mxu0 0.0
      %4664 = vmatpush2.msra.mxu0 0.0
      %4665 = vmatprep.subr.mxu0 0.0
      %4666 = vmatpush2.msra.mxu0 0.0
      %4667 = vmatprep.subr.mxu0 0.0
      %4668 = vmatpush2.msra.mxu0 0.0
      %4669 = vmatprep.subr.mxu0 0.0
      %4670 = vmatpush2.msra.mxu0 0.0
      %4671 = vmatprep.subr.mxu0 0.0
      %4672 = vmatpush2.msra.mxu0 0.0
      %4673 = vmatprep.subr.mxu0 0.0
      %4674 = vmatpush2.msra.mxu0 0.0
      %4675 = vmatprep.subr.mxu0 0.0
      %4676 = vmatpush2.msra.mxu0 0.0
      %4677 = vmatprep.subr.mxu0 0.0
      %4678 = vmatpush2.msra.mxu0 0.0
      %4679 = vmatprep.subr.mxu0 0.0
      %4680 = vmatpush2.msra.mxu0 0.0
      %4681 = vmatprep.subr.mxu0 0.0
      %4682 = vmatpush2.msra.mxu0 0.0
      %4683 = vmatprep.mubr.f32.mxu0 0.0
      %4684 = vmatmul.mubr.f32.gmra.mxu0 %v4617
      %v4685 = vpop.f32.mrf.mxu0
      %v4686 = vadd.f32 0.0, %v4685
      %v4687 = vpop.f32.mrf.mxu0
      %v4688 = vadd.f32 0.0, %v4687
      %4689 = vdwg.mxu0
      %4690 = vmatprep.subr.mxu0 0.0
      %4691 = vmatpush1.msra.mxu0 0.0
      %4692 = vmatprep.subr.mxu0 0.0
      %4693 = vmatpush1.msra.mxu0 0.0
      %4694 = vmatprep.subr.mxu0 0.0
      %4695 = vmatpush1.msra.mxu0 0.0
      %4696 = vmatprep.subr.mxu0 0.0
      %4697 = vmatpush1.msra.mxu0 0.0
      %4698 = vmatprep.subr.mxu0 0.0
      %4699 = vmatpush1.msra.mxu0 0.0
      %4700 = vmatprep.subr.mxu0 0.0
      %4701 = vmatpush1.msra.mxu0 0.0
      %4702 = vmatprep.subr.mxu0 0.0
      %4703 = vmatpush1.msra.mxu0 0.0
      %4704 = vmatprep.subr.mxu0 0.0
      %4705 = vmatpush1.msra.mxu0 0.0
      %4706 = vmatprep.subr.mxu0 0.0
      %4707 = vmatpush1.msra.mxu0 0.0
      %4708 = vmatprep.subr.mxu0 0.0
      %4709 = vmatpush1.msra.mxu0 0.0
      %4710 = vmatprep.subr.mxu0 0.0
      %4711 = vmatpush1.msra.mxu0 0.0
      %4712 = vmatprep.subr.mxu0 0.0
      %4713 = vmatpush1.msra.mxu0 0.0
      %4714 = vmatprep.subr.mxu0 0.0
      %4715 = vmatpush1.msra.mxu0 0.0
      %4716 = vmatprep.subr.mxu0 0.0
      %4717 = vmatpush1.msra.mxu0 %v4600
      %4718 = vmatprep.subr.mxu0 0.0
      %4719 = vmatpush1.msra.mxu0 %v4594
      %4720 = vmatprep.subr.mxu0 0.0
      %4721 = vmatpush1.msra.mxu0 %v4588
      %4722 = vmatprep.subr.mxu0 0.0
      %4723 = vmatpush2.msra.mxu0 0.0
      %4724 = vmatprep.subr.mxu0 0.0
      %4725 = vmatpush2.msra.mxu0 0.0
      %4726 = vmatprep.subr.mxu0 0.0
      %4727 = vmatpush2.msra.mxu0 0.0
      %4728 = vmatprep.subr.mxu0 0.0
      %4729 = vmatpush2.msra.mxu0 0.0
      %4730 = vmatprep.subr.mxu0 0.0
      %4731 = vmatpush2.msra.mxu0 0.0
      %4732 = vmatprep.subr.mxu0 0.0
      %4733 = vmatpush2.msra.mxu0 0.0
      %4734 = vmatprep.subr.mxu0 0.0
      %4735 = vmatpush2.msra.mxu0 0.0
      %4736 = vmatprep.subr.mxu0 0.0
      %4737 = vmatpush2.msra.mxu0 0.0
      %4738 = vmatprep.subr.mxu0 0.0
      %4739 = vmatpush2.msra.mxu0 0.0
      %4740 = vmatprep.subr.mxu0 0.0
      %4741 = vmatpush2.msra.mxu0 0.0
      %4742 = vmatprep.subr.mxu0 0.0
      %4743 = vmatpush2.msra.mxu0 0.0
      %4744 = vmatprep.subr.mxu0 0.0
      %4745 = vmatpush2.msra.mxu0 0.0
      %4746 = vmatprep.subr.mxu0 0.0
      %4747 = vmatpush2.msra.mxu0 0.0
      %4748 = vmatprep.subr.mxu0 0.0
      %4749 = vmatpush2.msra.mxu0 0.0
      %4750 = vmatprep.subr.mxu0 0.0
      %4751 = vmatpush2.msra.mxu0 0.0
      %4752 = vmatprep.subr.mxu0 0.0
      %4753 = vmatpush2.msra.mxu0 0.0
      %4754 = vmatprep.mubr.f32.mxu0 0.0
      %4755 = vmatmul.mubr.f32.gmra.mxu0 %v4617
      %v4756 = vpop.f32.mrf.mxu0
      %v4757 = vadd.f32 0.0, %v4756
      %v4758 = vpop.f32.mrf.mxu0
      %4759 = vdwg.mxu0
      %v4760 = vadd.f32 %v4578, %v4686
      %v4761 = vadd.f32 %v4579, %v4688
      %v4762 = vadd.f32 %v4580, %v4757
      %s4763 = scalar_lea.vmem %s5, 56
      %v4764 = vld [vmem:[%s4763] sm:$0xff]
      %4765 = vrot.lane.b32.xlu0 %v3469, 110
      %v4766 = vpop.permute.xlu0 %4765
      %4767 = vrot.lane.b32.xlu0 %v3470, 110
      %v4768 = vpop.permute.xlu0 %4767
      %4769 = vrot.lane.b32.xlu0 %v3471, 110
      %v4770 = vpop.permute.xlu0 %4769
      %4771 = vrot.lane.b32.xlu0 %v3473, 110
      %v4772 = vpop.permute.xlu0 %4771
      %4773 = vrot.lane.b32.xlu0 %v3474, 110
      %v4774 = vpop.permute.xlu0 %4773
      %4775 = vrot.lane.b32.xlu0 %v3475, 110
      %v4776 = vpop.permute.xlu0 %4775
      %4777 = vrot.lane.b32.xlu0 %v3477, 110
      %v4778 = vpop.permute.xlu0 %4777
      %4779 = vrot.lane.b32.xlu0 %v3478, 110
      %v4780 = vpop.permute.xlu0 %4779
      %4781 = vrot.lane.b32.xlu0 %v3479, 110
      %v4782 = vpop.permute.xlu0 %4781
      %v4783 = vsel %vm1551, %v4766, %v4768
      %v4784 = vsel %vm1551, %v4768, %v4770
      %v4785 = vsel %vm1551, %v4772, %v4774
      %v4786 = vsel %vm1551, %v4774, %v4776
      %v4787 = vsel %vm1551, %v4778, %v4780
      %v4788 = vsel %vm1551, %v4780, %v4782
      %v4799 = vsel %vm3537, %v4764, 0
      %4801 = vmatprep.subr.mxu0 0.0
      %4802 = vmatpush1.msra.mxu0 0.0
      %4803 = vmatprep.subr.mxu0 0.0
      %4804 = vmatpush1.msra.mxu0 0.0
      %4805 = vmatprep.subr.mxu0 0.0
      %4806 = vmatpush1.msra.mxu0 0.0
      %4807 = vmatprep.subr.mxu0 0.0
      %4808 = vmatpush1.msra.mxu0 0.0
      %4809 = vmatprep.subr.mxu0 0.0
      %4810 = vmatpush1.msra.mxu0 0.0
      %4811 = vmatprep.subr.mxu0 0.0
      %4812 = vmatpush1.msra.mxu0 0.0
      %4813 = vmatprep.subr.mxu0 0.0
      %4814 = vmatpush1.msra.mxu0 0.0
      %4815 = vmatprep.subr.mxu0 0.0
      %4816 = vmatpush1.msra.mxu0 0.0
      %4817 = vmatprep.subr.mxu0 0.0
      %4818 = vmatpush1.msra.mxu0 0.0
      %4819 = vmatprep.subr.mxu0 0.0
      %4820 = vmatpush1.msra.mxu0 0.0
      %4821 = vmatprep.subr.mxu0 0.0
      %4822 = vmatpush1.msra.mxu0 0.0
      %4823 = vmatprep.subr.mxu0 0.0
      %4824 = vmatpush1.msra.mxu0 0.0
      %4825 = vmatprep.subr.mxu0 0.0
      %4826 = vmatpush1.msra.mxu0 0.0
      %4827 = vmatprep.subr.mxu0 %v4788
      %4828 = vmatpush1.msra.mxu0 %v4787
      %4829 = vmatprep.subr.mxu0 %v4786
      %4830 = vmatpush1.msra.mxu0 %v4785
      %4831 = vmatprep.subr.mxu0 %v4784
      %4832 = vmatpush1.msra.mxu0 %v4783
      %4833 = vmatprep.subr.mxu0 0.0
      %4834 = vmatpush2.msra.mxu0 0.0
      %4835 = vmatprep.subr.mxu0 0.0
      %4836 = vmatpush2.msra.mxu0 0.0
      %4837 = vmatprep.subr.mxu0 0.0
      %4838 = vmatpush2.msra.mxu0 0.0
      %4839 = vmatprep.subr.mxu0 0.0
      %4840 = vmatpush2.msra.mxu0 0.0
      %4841 = vmatprep.subr.mxu0 0.0
      %4842 = vmatpush2.msra.mxu0 0.0
      %4843 = vmatprep.subr.mxu0 0.0
      %4844 = vmatpush2.msra.mxu0 0.0
      %4845 = vmatprep.subr.mxu0 0.0
      %4846 = vmatpush2.msra.mxu0 0.0
      %4847 = vmatprep.subr.mxu0 0.0
      %4848 = vmatpush2.msra.mxu0 0.0
      %4849 = vmatprep.subr.mxu0 0.0
      %4850 = vmatpush2.msra.mxu0 0.0
      %4851 = vmatprep.subr.mxu0 0.0
      %4852 = vmatpush2.msra.mxu0 0.0
      %4853 = vmatprep.subr.mxu0 0.0
      %4854 = vmatpush2.msra.mxu0 0.0
      %4855 = vmatprep.subr.mxu0 0.0
      %4856 = vmatpush2.msra.mxu0 0.0
      %4857 = vmatprep.subr.mxu0 0.0
      %4858 = vmatpush2.msra.mxu0 0.0
      %4859 = vmatprep.subr.mxu0 0.0
      %4860 = vmatpush2.msra.mxu0 0.0
      %4861 = vmatprep.subr.mxu0 0.0
      %4862 = vmatpush2.msra.mxu0 0.0
      %4863 = vmatprep.subr.mxu0 0.0
      %4864 = vmatpush2.msra.mxu0 0.0
      %4865 = vmatprep.mubr.f32.mxu0 0.0
      %4866 = vmatmul.mubr.f32.gmra.mxu0 %v4799
      %v4867 = vpop.f32.mrf.mxu0
      %v4868 = vadd.f32 0.0, %v4867
      %v4869 = vpop.f32.mrf.mxu0
      %v4870 = vadd.f32 0.0, %v4869
      %4871 = vdwg.mxu0
      %4872 = vmatprep.subr.mxu0 0.0
      %4873 = vmatpush1.msra.mxu0 0.0
      %4874 = vmatprep.subr.mxu0 0.0
      %4875 = vmatpush1.msra.mxu0 0.0
      %4876 = vmatprep.subr.mxu0 0.0
      %4877 = vmatpush1.msra.mxu0 0.0
      %4878 = vmatprep.subr.mxu0 0.0
      %4879 = vmatpush1.msra.mxu0 0.0
      %4880 = vmatprep.subr.mxu0 0.0
      %4881 = vmatpush1.msra.mxu0 0.0
      %4882 = vmatprep.subr.mxu0 0.0
      %4883 = vmatpush1.msra.mxu0 0.0
      %4884 = vmatprep.subr.mxu0 0.0
      %4885 = vmatpush1.msra.mxu0 0.0
      %4886 = vmatprep.subr.mxu0 0.0
      %4887 = vmatpush1.msra.mxu0 0.0
      %4888 = vmatprep.subr.mxu0 0.0
      %4889 = vmatpush1.msra.mxu0 0.0
      %4890 = vmatprep.subr.mxu0 0.0
      %4891 = vmatpush1.msra.mxu0 0.0
      %4892 = vmatprep.subr.mxu0 0.0
      %4893 = vmatpush1.msra.mxu0 0.0
      %4894 = vmatprep.subr.mxu0 0.0
      %4895 = vmatpush1.msra.mxu0 0.0
      %4896 = vmatprep.subr.mxu0 0.0
      %4897 = vmatpush1.msra.mxu0 0.0
      %4898 = vmatprep.subr.mxu0 0.0
      %4899 = vmatpush1.msra.mxu0 %v4782
      %4900 = vmatprep.subr.mxu0 0.0
      %4901 = vmatpush1.msra.mxu0 %v4776
      %4902 = vmatprep.subr.mxu0 0.0
      %4903 = vmatpush1.msra.mxu0 %v4770
      %4904 = vmatprep.subr.mxu0 0.0
      %4905 = vmatpush2.msra.mxu0 0.0
      %4906 = vmatprep.subr.mxu0 0.0
      %4907 = vmatpush2.msra.mxu0 0.0
      %4908 = vmatprep.subr.mxu0 0.0
      %4909 = vmatpush2.msra.mxu0 0.0
      %4910 = vmatprep.subr.mxu0 0.0
      %4911 = vmatpush2.msra.mxu0 0.0
      %4912 = vmatprep.subr.mxu0 0.0
      %4913 = vmatpush2.msra.mxu0 0.0
      %4914 = vmatprep.subr.mxu0 0.0
      %4915 = vmatpush2.msra.mxu0 0.0
      %4916 = vmatprep.subr.mxu0 0.0
      %4917 = vmatpush2.msra.mxu0 0.0
      %4918 = vmatprep.subr.mxu0 0.0
      %4919 = vmatpush2.msra.mxu0 0.0
      %4920 = vmatprep.subr.mxu0 0.0
      %4921 = vmatpush2.msra.mxu0 0.0
      %4922 = vmatprep.subr.mxu0 0.0
      %4923 = vmatpush2.msra.mxu0 0.0
      %4924 = vmatprep.subr.mxu0 0.0
      %4925 = vmatpush2.msra.mxu0 0.0
      %4926 = vmatprep.subr.mxu0 0.0
      %4927 = vmatpush2.msra.mxu0 0.0
      %4928 = vmatprep.subr.mxu0 0.0
      %4929 = vmatpush2.msra.mxu0 0.0
      %4930 = vmatprep.subr.mxu0 0.0
      %4931 = vmatpush2.msra.mxu0 0.0
      %4932 = vmatprep.subr.mxu0 0.0
      %4933 = vmatpush2.msra.mxu0 0.0
      %4934 = vmatprep.subr.mxu0 0.0
      %4935 = vmatpush2.msra.mxu0 0.0
      %4936 = vmatprep.mubr.f32.mxu0 0.0
      %4937 = vmatmul.mubr.f32.gmra.mxu0 %v4799
      %v4938 = vpop.f32.mrf.mxu0
      %v4939 = vadd.f32 0.0, %v4938
      %v4940 = vpop.f32.mrf.mxu0
      %4941 = vdwg.mxu0
      %v4942 = vadd.f32 %v4760, %v4868
      %v4943 = vadd.f32 %v4761, %v4870
      %v4944 = vadd.f32 %v4762, %v4939
      %s4945 = scalar_lea.vmem %s5, 64
      %v4946 = vld [vmem:[%s4945] sm:$0xff]
      %4947 = vrot.lane.b32.xlu0 %v3469, 109
      %v4948 = vpop.permute.xlu0 %4947
      %4949 = vrot.lane.b32.xlu0 %v3470, 109
      %v4950 = vpop.permute.xlu0 %4949
      %4951 = vrot.lane.b32.xlu0 %v3471, 109
      %v4952 = vpop.permute.xlu0 %4951
      %4953 = vrot.lane.b32.xlu0 %v3473, 109
      %v4954 = vpop.permute.xlu0 %4953
      %4955 = vrot.lane.b32.xlu0 %v3474, 109
      %v4956 = vpop.permute.xlu0 %4955
      %4957 = vrot.lane.b32.xlu0 %v3475, 109
      %v4958 = vpop.permute.xlu0 %4957
      %4959 = vrot.lane.b32.xlu0 %v3477, 109
      %v4960 = vpop.permute.xlu0 %4959
      %4961 = vrot.lane.b32.xlu0 %v3478, 109
      %v4962 = vpop.permute.xlu0 %4961
      %4963 = vrot.lane.b32.xlu0 %v3479, 109
      %v4964 = vpop.permute.xlu0 %4963
      %v4965 = vsel %vm1712, %v4948, %v4950
      %v4966 = vsel %vm1712, %v4950, %v4952
      %v4967 = vsel %vm1712, %v4954, %v4956
      %v4968 = vsel %vm1712, %v4956, %v4958
      %v4969 = vsel %vm1712, %v4960, %v4962
      %v4970 = vsel %vm1712, %v4962, %v4964
      %v4981 = vsel %vm3537, %v4946, 0
      %4983 = vmatprep.subr.mxu0 0.0
      %4984 = vmatpush1.msra.mxu0 0.0
      %4985 = vmatprep.subr.mxu0 0.0
      %4986 = vmatpush1.msra.mxu0 0.0
      %4987 = vmatprep.subr.mxu0 0.0
      %4988 = vmatpush1.msra.mxu0 0.0
      %4989 = vmatprep.subr.mxu0 0.0
      %4990 = vmatpush1.msra.mxu0 0.0
      %4991 = vmatprep.subr.mxu0 0.0
      %4992 = vmatpush1.msra.mxu0 0.0
      %4993 = vmatprep.subr.mxu0 0.0
      %4994 = vmatpush1.msra.mxu0 0.0
      %4995 = vmatprep.subr.mxu0 0.0
      %4996 = vmatpush1.msra.mxu0 0.0
      %4997 = vmatprep.subr.mxu0 0.0
      %4998 = vmatpush1.msra.mxu0 0.0
      %4999 = vmatprep.subr.mxu0 0.0
      %5000 = vmatpush1.msra.mxu0 0.0
      %5001 = vmatprep.subr.mxu0 0.0
      %5002 = vmatpush1.msra.mxu0 0.0
      %5003 = vmatprep.subr.mxu0 0.0
      %5004 = vmatpush1.msra.mxu0 0.0
      %5005 = vmatprep.subr.mxu0 0.0
      %5006 = vmatpush1.msra.mxu0 0.0
      %5007 = vmatprep.subr.mxu0 0.0
      %5008 = vmatpush1.msra.mxu0 0.0
      %5009 = vmatprep.subr.mxu0 %v4970
      %5010 = vmatpush1.msra.mxu0 %v4969
      %5011 = vmatprep.subr.mxu0 %v4968
      %5012 = vmatpush1.msra.mxu0 %v4967
      %5013 = vmatprep.subr.mxu0 %v4966
      %5014 = vmatpush1.msra.mxu0 %v4965
      %5015 = vmatprep.subr.mxu0 0.0
      %5016 = vmatpush2.msra.mxu0 0.0
      %5017 = vmatprep.subr.mxu0 0.0
      %5018 = vmatpush2.msra.mxu0 0.0
      %5019 = vmatprep.subr.mxu0 0.0
      %5020 = vmatpush2.msra.mxu0 0.0
      %5021 = vmatprep.subr.mxu0 0.0
      %5022 = vmatpush2.msra.mxu0 0.0
      %5023 = vmatprep.subr.mxu0 0.0
      %5024 = vmatpush2.msra.mxu0 0.0
      %5025 = vmatprep.subr.mxu0 0.0
      %5026 = vmatpush2.msra.mxu0 0.0
      %5027 = vmatprep.subr.mxu0 0.0
      %5028 = vmatpush2.msra.mxu0 0.0
      %5029 = vmatprep.subr.mxu0 0.0
      %5030 = vmatpush2.msra.mxu0 0.0
      %5031 = vmatprep.subr.mxu0 0.0
      %5032 = vmatpush2.msra.mxu0 0.0
      %5033 = vmatprep.subr.mxu0 0.0
      %5034 = vmatpush2.msra.mxu0 0.0
      %5035 = vmatprep.subr.mxu0 0.0
      %5036 = vmatpush2.msra.mxu0 0.0
      %5037 = vmatprep.subr.mxu0 0.0
      %5038 = vmatpush2.msra.mxu0 0.0
      %5039 = vmatprep.subr.mxu0 0.0
      %5040 = vmatpush2.msra.mxu0 0.0
      %5041 = vmatprep.subr.mxu0 0.0
      %5042 = vmatpush2.msra.mxu0 0.0
      %5043 = vmatprep.subr.mxu0 0.0
      %5044 = vmatpush2.msra.mxu0 0.0
      %5045 = vmatprep.subr.mxu0 0.0
      %5046 = vmatpush2.msra.mxu0 0.0
      %5047 = vmatprep.mubr.f32.mxu0 0.0
      %5048 = vmatmul.mubr.f32.gmra.mxu0 %v4981
      %v5049 = vpop.f32.mrf.mxu0
      %v5050 = vadd.f32 0.0, %v5049
      %v5051 = vpop.f32.mrf.mxu0
      %v5052 = vadd.f32 0.0, %v5051
      %5053 = vdwg.mxu0
      %5054 = vmatprep.subr.mxu0 0.0
      %5055 = vmatpush1.msra.mxu0 0.0
      %5056 = vmatprep.subr.mxu0 0.0
      %5057 = vmatpush1.msra.mxu0 0.0
      %5058 = vmatprep.subr.mxu0 0.0
      %5059 = vmatpush1.msra.mxu0 0.0
      %5060 = vmatprep.subr.mxu0 0.0
      %5061 = vmatpush1.msra.mxu0 0.0
      %5062 = vmatprep.subr.mxu0 0.0
      %5063 = vmatpush1.msra.mxu0 0.0
      %5064 = vmatprep.subr.mxu0 0.0
      %5065 = vmatpush1.msra.mxu0 0.0
      %5066 = vmatprep.subr.mxu0 0.0
      %5067 = vmatpush1.msra.mxu0 0.0
      %5068 = vmatprep.subr.mxu0 0.0
      %5069 = vmatpush1.msra.mxu0 0.0
      %5070 = vmatprep.subr.mxu0 0.0
      %5071 = vmatpush1.msra.mxu0 0.0
      %5072 = vmatprep.subr.mxu0 0.0
      %5073 = vmatpush1.msra.mxu0 0.0
      %5074 = vmatprep.subr.mxu0 0.0
      %5075 = vmatpush1.msra.mxu0 0.0
      %5076 = vmatprep.subr.mxu0 0.0
      %5077 = vmatpush1.msra.mxu0 0.0
      %5078 = vmatprep.subr.mxu0 0.0
      %5079 = vmatpush1.msra.mxu0 0.0
      %5080 = vmatprep.subr.mxu0 0.0
      %5081 = vmatpush1.msra.mxu0 %v4964
      %5082 = vmatprep.subr.mxu0 0.0
      %5083 = vmatpush1.msra.mxu0 %v4958
      %5084 = vmatprep.subr.mxu0 0.0
      %5085 = vmatpush1.msra.mxu0 %v4952
      %5086 = vmatprep.subr.mxu0 0.0
      %5087 = vmatpush2.msra.mxu0 0.0
      %5088 = vmatprep.subr.mxu0 0.0
      %5089 = vmatpush2.msra.mxu0 0.0
      %5090 = vmatprep.subr.mxu0 0.0
      %5091 = vmatpush2.msra.mxu0 0.0
      %5092 = vmatprep.subr.mxu0 0.0
      %5093 = vmatpush2.msra.mxu0 0.0
      %5094 = vmatprep.subr.mxu0 0.0
      %5095 = vmatpush2.msra.mxu0 0.0
      %5096 = vmatprep.subr.mxu0 0.0
      %5097 = vmatpush2.msra.mxu0 0.0
      %5098 = vmatprep.subr.mxu0 0.0
      %5099 = vmatpush2.msra.mxu0 0.0
      %5100 = vmatprep.subr.mxu0 0.0
      %5101 = vmatpush2.msra.mxu0 0.0
      %5102 = vmatprep.subr.mxu0 0.0
      %5103 = vmatpush2.msra.mxu0 0.0
      %5104 = vmatprep.subr.mxu0 0.0
      %5105 = vmatpush2.msra.mxu0 0.0
      %5106 = vmatprep.subr.mxu0 0.0
      %5107 = vmatpush2.msra.mxu0 0.0
      %5108 = vmatprep.subr.mxu0 0.0
      %5109 = vmatpush2.msra.mxu0 0.0
      %5110 = vmatprep.subr.mxu0 0.0
      %5111 = vmatpush2.msra.mxu0 0.0
      %5112 = vmatprep.subr.mxu0 0.0
      %5113 = vmatpush2.msra.mxu0 0.0
      %5114 = vmatprep.subr.mxu0 0.0
      %5115 = vmatpush2.msra.mxu0 0.0
      %5116 = vmatprep.subr.mxu0 0.0
      %5117 = vmatpush2.msra.mxu0 0.0
      %5118 = vmatprep.mubr.f32.mxu0 0.0
      %5119 = vmatmul.mubr.f32.gmra.mxu0 %v4981
      %v5120 = vpop.f32.mrf.mxu0
      %v5121 = vadd.f32 0.0, %v5120
      %v5122 = vpop.f32.mrf.mxu0
      %5123 = vdwg.mxu0
      %v5124 = vadd.f32 %v4942, %v5050
      %v5125 = vadd.f32 %v4943, %v5052
      %v5126 = vadd.f32 %v4944, %v5121
      %v5127 = vld [vmem:[%s6] sm:$0xff]
      %5129 = vset.pattern.permute.xlu0 0
      %5130 = vperm.xlu0 %5129, %v5127
      %v5131 = vpop.permute.xlu0 %5130
      %v5133 = vadd.f32 %v5124, %v5131
      %v5134 = vadd.f32 %v5125, %v5131
      %v5135 = vadd.f32 %v5126, %v5131
      %v5136 = vmax.f32 %v5133, 0.0
      %v5137 = vmax.f32 %v5134, 0.0
      %v5138 = vmax.f32 %v5135, 0.0
      %v5139 = vmul.f32 %v5136, %v1881
      %v5140 = vmul.f32 %v5137, %v1885
      %v5141 = vmul.f32 %v5138, %v1889
      %5142 = vst [vmem:[#allocation2 + $0x68] sm:$0xff] %v5139
      %5143 = vst [vmem:[#allocation2 + $0x70] sm:$0xff] %v5140
      %5144 = vst.msk [vmem:[#allocation2 + $0x78] sm:$0xff] %vm412, %v5141
      %v5145 = vld [vmem:[#allocation2 + $0x8] sm:$0xff]
      %v5146 = vld [vmem:[#allocation2 + $0x10] sm:$0xff]
      %v5147 = vld [vmem:[#allocation2 + $0x18] sm:$0xff]
      %v5148 = vld [vmem:[#allocation2 + $0x28] sm:$0xff]
      %v5149 = vld [vmem:[#allocation2 + $0x30] sm:$0xff]
      %v5150 = vld [vmem:[#allocation2 + $0x38] sm:$0xff]
      %v5151 = vld [vmem:[#allocation2 + $0x48] sm:$0xff]
      %v5152 = vld [vmem:[#allocation2 + $0x50] sm:$0xff]
      %v5153 = vld [vmem:[#allocation2 + $0x58] sm:$0xff]
      %v5154 = vld [vmem:[#allocation2 + $0x68] sm:$0xff]
      %v5155 = vld [vmem:[#allocation2 + $0x70] sm:$0xff]
      %v5156 = vld [vmem:[#allocation2 + $0x78] sm:$0xff]
      %v5157 = vld [vmem:[%s7] sm:$0xff]
      %v5158 = vld [vmem:[%s8] sm:$0xff]
      %5160 = vset.pattern.permute.xlu0 0
      %5161 = vperm.xlu0 %5160, %v5158
      %v5162 = vpop.permute.xlu0 %5161
      %v5165 = vsel %vm412, %v5157, 0
      %5167 = vmatprep.subr.mxu0 0.0
      %5168 = vmatpush1.msra.mxu0 0.0
      %5169 = vmatprep.subr.mxu0 0.0
      %5170 = vmatpush1.msra.mxu0 0.0
      %5171 = vmatprep.subr.mxu0 0.0
      %5172 = vmatpush1.msra.mxu0 0.0
      %5173 = vmatprep.subr.mxu0 0.0
      %5174 = vmatpush1.msra.mxu0 0.0
      %5175 = vmatprep.subr.mxu0 0.0
      %5176 = vmatpush1.msra.mxu0 0.0
      %5177 = vmatprep.subr.mxu0 0.0
      %5178 = vmatpush1.msra.mxu0 0.0
      %5179 = vmatprep.subr.mxu0 0.0
      %5180 = vmatpush1.msra.mxu0 0.0
      %5181 = vmatprep.subr.mxu0 0.0
      %5182 = vmatpush1.msra.mxu0 0.0
      %5183 = vmatprep.subr.mxu0 0.0
      %5184 = vmatpush1.msra.mxu0 0.0
      %5185 = vmatprep.subr.mxu0 0.0
      %5186 = vmatpush1.msra.mxu0 0.0
      %5187 = vmatprep.subr.mxu0 0.0
      %5188 = vmatpush1.msra.mxu0 0.0
      %5189 = vmatprep.subr.mxu0 0.0
      %5190 = vmatpush1.msra.mxu0 0.0
      %5191 = vmatprep.subr.mxu0 %v5155
      %5192 = vmatpush1.msra.mxu0 %v5154
      %5193 = vmatprep.subr.mxu0 %v5152
      %5194 = vmatpush1.msra.mxu0 %v5151
      %5195 = vmatprep.subr.mxu0 %v5149
      %5196 = vmatpush1.msra.mxu0 %v5148
      %5197 = vmatprep.subr.mxu0 %v5146
      %5198 = vmatpush1.msra.mxu0 %v5145
      %5199 = vmatprep.subr.mxu0 0.0
      %5200 = vmatpush2.msra.mxu0 0.0
      %5201 = vmatprep.subr.mxu0 0.0
      %5202 = vmatpush2.msra.mxu0 0.0
      %5203 = vmatprep.subr.mxu0 0.0
      %5204 = vmatpush2.msra.mxu0 0.0
      %5205 = vmatprep.subr.mxu0 0.0
      %5206 = vmatpush2.msra.mxu0 0.0
      %5207 = vmatprep.subr.mxu0 0.0
      %5208 = vmatpush2.msra.mxu0 0.0
      %5209 = vmatprep.subr.mxu0 0.0
      %5210 = vmatpush2.msra.mxu0 0.0
      %5211 = vmatprep.subr.mxu0 0.0
      %5212 = vmatpush2.msra.mxu0 0.0
      %5213 = vmatprep.subr.mxu0 0.0
      %5214 = vmatpush2.msra.mxu0 0.0
      %5215 = vmatprep.subr.mxu0 0.0
      %5216 = vmatpush2.msra.mxu0 0.0
      %5217 = vmatprep.subr.mxu0 0.0
      %5218 = vmatpush2.msra.mxu0 0.0
      %5219 = vmatprep.subr.mxu0 0.0
      %5220 = vmatpush2.msra.mxu0 0.0
      %5221 = vmatprep.subr.mxu0 0.0
      %5222 = vmatpush2.msra.mxu0 0.0
      %5223 = vmatprep.subr.mxu0 0.0
      %5224 = vmatpush2.msra.mxu0 0.0
      %5225 = vmatprep.subr.mxu0 0.0
      %5226 = vmatpush2.msra.mxu0 0.0
      %5227 = vmatprep.subr.mxu0 0.0
      %5228 = vmatpush2.msra.mxu0 0.0
      %5229 = vmatprep.subr.mxu0 0.0
      %5230 = vmatpush2.msra.mxu0 0.0
      %5231 = vmatprep.mubr.f32.mxu0 0.0
      %5232 = vmatmul.mubr.f32.gmra.mxu0 %v5165
      %v5233 = vpop.f32.mrf.mxu0
      %v5234 = vadd.f32 %v5162, %v5233
      %v5235 = vpop.f32.mrf.mxu0
      %v5236 = vadd.f32 %v5162, %v5235
      %5237 = vdwg.mxu0
      %5238 = vmatprep.subr.mxu0 0.0
      %5239 = vmatpush1.msra.mxu0 0.0
      %5240 = vmatprep.subr.mxu0 0.0
      %5241 = vmatpush1.msra.mxu0 0.0
      %5242 = vmatprep.subr.mxu0 0.0
      %5243 = vmatpush1.msra.mxu0 0.0
      %5244 = vmatprep.subr.mxu0 0.0
      %5245 = vmatpush1.msra.mxu0 0.0
      %5246 = vmatprep.subr.mxu0 0.0
      %5247 = vmatpush1.msra.mxu0 0.0
      %5248 = vmatprep.subr.mxu0 0.0
      %5249 = vmatpush1.msra.mxu0 0.0
      %5250 = vmatprep.subr.mxu0 0.0
      %5251 = vmatpush1.msra.mxu0 0.0
      %5252 = vmatprep.subr.mxu0 0.0
      %5253 = vmatpush1.msra.mxu0 0.0
      %5254 = vmatprep.subr.mxu0 0.0
      %5255 = vmatpush1.msra.mxu0 0.0
      %5256 = vmatprep.subr.mxu0 0.0
      %5257 = vmatpush1.msra.mxu0 0.0
      %5258 = vmatprep.subr.mxu0 0.0
      %5259 = vmatpush1.msra.mxu0 0.0
      %5260 = vmatprep.subr.mxu0 0.0
      %5261 = vmatpush1.msra.mxu0 0.0
      %5262 = vmatprep.subr.mxu0 0.0
      %5263 = vmatpush1.msra.mxu0 %v5156
      %5264 = vmatprep.subr.mxu0 0.0
      %5265 = vmatpush1.msra.mxu0 %v5153
      %5266 = vmatprep.subr.mxu0 0.0
      %5267 = vmatpush1.msra.mxu0 %v5150
      %5268 = vmatprep.subr.mxu0 0.0
      %5269 = vmatpush1.msra.mxu0 %v5147
      %5270 = vmatprep.subr.mxu0 0.0
      %5271 = vmatpush2.msra.mxu0 0.0
      %5272 = vmatprep.subr.mxu0 0.0
      %5273 = vmatpush2.msra.mxu0 0.0
      %5274 = vmatprep.subr.mxu0 0.0
      %5275 = vmatpush2.msra.mxu0 0.0
      %5276 = vmatprep.subr.mxu0 0.0
      %5277 = vmatpush2.msra.mxu0 0.0
      %5278 = vmatprep.subr.mxu0 0.0
      %5279 = vmatpush2.msra.mxu0 0.0
      %5280 = vmatprep.subr.mxu0 0.0
      %5281 = vmatpush2.msra.mxu0 0.0
      %5282 = vmatprep.subr.mxu0 0.0
      %5283 = vmatpush2.msra.mxu0 0.0
      %5284 = vmatprep.subr.mxu0 0.0
      %5285 = vmatpush2.msra.mxu0 0.0
      %5286 = vmatprep.subr.mxu0 0.0
      %5287 = vmatpush2.msra.mxu0 0.0
      %5288 = vmatprep.subr.mxu0 0.0
      %5289 = vmatpush2.msra.mxu0 0.0
      %5290 = vmatprep.subr.mxu0 0.0
      %5291 = vmatpush2.msra.mxu0 0.0
      %5292 = vmatprep.subr.mxu0 0.0
      %5293 = vmatpush2.msra.mxu0 0.0
      %5294 = vmatprep.subr.mxu0 0.0
      %5295 = vmatpush2.msra.mxu0 0.0
      %5296 = vmatprep.subr.mxu0 0.0
      %5297 = vmatpush2.msra.mxu0 0.0
      %5298 = vmatprep.subr.mxu0 0.0
      %5299 = vmatpush2.msra.mxu0 0.0
      %5300 = vmatprep.subr.mxu0 0.0
      %5301 = vmatpush2.msra.mxu0 0.0
      %5302 = vmatprep.mubr.f32.mxu0 0.0
      %5303 = vmatmul.mubr.f32.gmra.mxu0 %v5165
      %v5304 = vpop.f32.mrf.mxu0
      %v5305 = vadd.f32 %v5162, %v5304
      %v5306 = vpop.f32.mrf.mxu0
      %5307 = vdwg.mxu0
      %v5308 = vadd.f32 %v5234, %v407
      %v5309 = vadd.f32 %v5236, %v408
      %v5310 = vadd.f32 %v5305, %v409
      %v5311 = vmul.f32 %v5308, %v1881
      %v5312 = vmul.f32 %v5309, %v1885
      %v5313 = vmul.f32 %v5310, %v1889
      %5314 = vst [vmem:[%s392] sm:$0xff] %v5311
      %5315 = vst [vmem:[%s392 + $0x8] sm:$0xff] %v5312
      %5316 = vst.msk [vmem:[%s392 + $0x10] sm:$0xff] %vm412, %v5313
      %v5317 = vmul.f32 %v5311, %v5311
      %v5318 = vmul.f32 %v5312, %v5312
      %v5319 = vmul.f32 %v5313, %v5313
      %v5320 = vadd.f32 %v5317, %v5318
      %v5321 = vsel %vm412, %v5319, 0.0
      %v5322 = vadd.f32 %v5320, %v5321
      %5323 = vadd.xlane.f32.xlu0 %v5322
      %v5324 = vpop.xlane.xlu0 %5323
      %v5325 = vrot.slane %v5324, 4
      %v5326 = vadd.f32 %v5324, %v5325
      %v5327 = vrot.slane %v5326, 2
      %v5328 = vadd.f32 %v5326, %v5327
      %v5329 = vrot.slane %v5328, 1
      %v5330 = vadd.f32 %v5328, %v5329
      %s5331 = vtos %v5330
      %v5332 = vstv %s5331
      %5333 = vst [vmem:[%s395] sm:$0x1] %v5332
      %p5334 = scmp.lt.s32.totalorder %s23, 1
      %s5335 = scalar_select %p5334, %s23, 1
      %s5336 = smul.addr %s5335, 3
      %s5337 = smul.addr %s5336, 8
      %s5338 = scalar_lea.vmem %s10, %s5337
      %p5339 = scmp.lt.s32.totalorder %s23, 1
      %s5340 = scalar_select %p5339, %s23, 1
      %s5341 = scalar_lea.vmem %s11, %s5340
      // Predicated region
      $region61: #{_rdb_core.1} parent=59 // pred_check
        %p5342 = pneg %p256
      $region62: #{_rdb_core.1} parent=59 // pred_check_branch
        %5344 = sbr.rel (%p5342) target = $region64
      $region63: #{_rdb_core.1} parent=59 // pred_region
        _
      $region64: #{_rdb_core.1} parent=59 // pred_fallthru
        _
      // Predicated region
      $region65: #{_rdb_core.1} parent=59 // pred_check
        %p5345 = pneg %p282
      $region66: #{_rdb_core.1} parent=59 // pred_check_branch
        %5347 = sbr.rel (%p5345) target = $region68
      $region67: #{_rdb_core.1} parent=59 // pred_region
        _
      $region68: #{_rdb_core.1} parent=59 // pred_fallthru
        _
    $region60: #{_rdb_core.1} parent=5 // pred_fallthru
      _
    %p5348 = scmp.le.s32.totalorder 2, %s18
    // Predicated region
    $region69: #{_rdb_core.1} parent=5 // pred_check
      %p5349 = pneg %p5348
    $region70: #{_rdb_core.1} parent=5 // pred_check_branch
      %5351 = sbr.rel (%p5349) target = $region72
    $region71: #{_rdb_core.1} parent=5 // pred_region
      %s5352 = ssub.s32 %s18, 2
      // Predicated region
      $region73: #{_rdb_core.1} parent=71 // pred_check
        %p5353 = pneg %p262
      $region74: #{_rdb_core.1} parent=71 // pred_check_branch
        %5355 = sbr.rel (%p5353) target = $region76
      $region75: #{_rdb_core.1} parent=71 // pred_region
        %p5356 = scmp.lt.s32.totalorder %s24, 1
        %s5357 = scalar_select %p5356, %s24, 1
        %s5358 = smul.addr %s5357, 3
        %s5359 = smul.addr %s5358, 8
        %s5360 = scalar_lea.vmem %s10, %s5359
      $region76: #{_rdb_core.1} parent=71 // pred_fallthru
        _
      // Predicated region
      $region77: #{_rdb_core.1} parent=71 // pred_check
        %p5361 = pneg %p288
      $region78: #{_rdb_core.1} parent=71 // pred_check_branch
        %5363 = sbr.rel (%p5361) target = $region80
      $region79: #{_rdb_core.1} parent=71 // pred_region
        %p5364 = scmp.lt.s32.totalorder %s24, 1
        %s5365 = scalar_select %p5364, %s24, 1
        %s5366 = scalar_lea.vmem %s11, %s5365
      $region80: #{_rdb_core.1} parent=71 // pred_fallthru
        _
    $region72: #{_rdb_core.1} parent=5 // pred_fallthru
      _
  $region6: #{_rdb_core.1} parent=0 // loop_footer
    %s22 = sadd.s32 1, %s18
  $region7: #{_rdb_core.1} parent=0 // loop_footer_branch
    %17 = sbr.rel target = $region3
  $region8: #{_rdb_core.1} parent=0 // loop_exit
    _

</llo_original>
